<compile_context>
chip_gen: v6e
topology: v6e:2x2x1
jax: 0.10.0
libtpu: 0.0.40
codegen_flags: <defaults>
</compile_context>

<pallas_src>
import jax
import jax.numpy as jnp
from jax import lax
from jax.experimental import pallas as pl
from jax.experimental.pallas import tpu as pltpu


IMAGE_SIZE = 28
CHANNELS = 3
NUM_CLASSES = 10
LATENT = 100
BN_EPS = 1e-5
LRELU_SLOPE = 0.2

IN_DIM = LATENT + NUM_CLASSES                    # 110
IN_PAD = 128                                     # lane-aligned K for layer 1
HID = 1024                                       # layer-4 width
OUT_DIM = CHANNELS * IMAGE_SIZE * IMAGE_SIZE     # 2352
OUT_PAD = pl.cdiv(OUT_DIM, 128) * 128            # 2432 = 19 * 128
BATCH_PACK = 16                                  # bf16 sublane pack
MAX_TILE_B = 256                                 # batch tile for layer 5
VMEM_LIMIT = 32 * 1024 * 1024                    # safe on v5e/v6e/v7x


def _leaky_relu(x):
    return jnp.where(x > 0, x, LRELU_SLOPE * x)


def _bn_lrelu_block(h_in, w_ref, b_ref, g_ref, be_ref, mask):
    """Linear -> BatchNorm1d (training-mode batch stats, biased var) -> LeakyReLU.

    `mask` holds 1/n_real for real batch rows and 0 for padded rows, so masked
    sums are directly the batch means (padded rows excluded from statistics).
    """
    h = jnp.dot(h_in.astype(jnp.bfloat16), w_ref[...],
                preferred_element_type=jnp.float32) + b_ref[...]
    hm = h * mask
    mean = jnp.sum(hm, axis=0, keepdims=True)
    ex2 = jnp.sum(hm * h, axis=0, keepdims=True)
    var = ex2 - mean * mean                       # biased batch variance
    scale = g_ref[...] * lax.rsqrt(var + BN_EPS)  # folded BN: one scale/shift
    shift = be_ref[...] - mean * scale
    return _leaky_relu(h * scale + shift)


def features_kernel(
    mask_ref,                         # (Np, 1)   f32  normalized batch mask
    x_ref,                            # (Np, 128) bf16 padded [noise | label-emb]
    w1_ref, b1_ref,                   # 128 -> 128
    w2_ref, b2_ref, g2_ref, be2_ref,  # 128 -> 256 (+BN)
    w3_ref, b3_ref, g3_ref, be3_ref,  # 256 -> 512 (+BN)
    w4_ref, b4_ref, g4_ref, be4_ref,  # 512 -> 1024 (+BN)
    h_ref,                            # (Np, 1024) bf16 output
):
    """Layers 1-4: need the whole batch resident (batch-statistics BatchNorm)."""
    mask = mask_ref[...]
    h = jnp.dot(x_ref[...], w1_ref[...],
                preferred_element_type=jnp.float32) + b1_ref[...]
    h = _leaky_relu(h)
    h = _bn_lrelu_block(h, w2_ref, b2_ref, g2_ref, be2_ref, mask)
    h = _bn_lrelu_block(h, w3_ref, b3_ref, g3_ref, be3_ref, mask)
    h = _bn_lrelu_block(h, w4_ref, b4_ref, g4_ref, be4_ref, mask)
    h_ref[...] = h.astype(jnp.bfloat16)


def pixels_kernel(h_ref, w5_ref, b5_ref, o_ref):
    """Layer 5 on one batch tile: (tb,1024)@(1024,OUT_PAD) + bias, tanh, bf16."""
    out = jnp.dot(h_ref[...], w5_ref[...],
                  preferred_element_type=jnp.float32) + b5_ref[...]
    o_ref[...] = jnp.tanh(out).astype(o_ref.dtype)


def _const_spec(shape):
    # Whole array as one block, same block every grid step (fetched once).
    return pl.BlockSpec(shape, lambda *_: (0,) * len(shape))


def generator_forward(noise, labels, params):
    """noise: (N, 100) f32, labels: (N,) int32 -> (N, C, H, W) f32."""
    n = noise.shape[0]
    n_pad = max(BATCH_PACK, pl.cdiv(n, BATCH_PACK) * BATCH_PACK)
    if n_pad <= MAX_TILE_B:
        tile_b = n_pad
    else:
        tile_b = MAX_TILE_B
        n_pad = pl.cdiv(n_pad, tile_b) * tile_b

    # --- JAX glue: embedding gather, concat, padding, casts -----------------
    emb = params["embedding"][labels]                  # (N, 10) gather
    x = jnp.concatenate([noise, emb], axis=-1)         # (N, 110)
    x = jnp.pad(x, ((0, n_pad - n), (0, IN_PAD - IN_DIM))).astype(jnp.bfloat16)

    # Normalized mask: 1/n for real rows, 0 for batch padding.
    mask = ((jnp.arange(n_pad) < n).astype(jnp.float32) / n)[:, None]

    # bf16 matmul operands (halves dominant weight HBM traffic); zero padding
    # so padded rows/columns never change real results. Biases / BN affine
    # params stay f32.
    w1 = jnp.pad(params["w1"], ((0, IN_PAD - IN_DIM), (0, 0))).astype(jnp.bfloat16)
    w2 = params["w2"].astype(jnp.bfloat16)
    w3 = params["w3"].astype(jnp.bfloat16)
    w4 = params["w4"].astype(jnp.bfloat16)
    w5 = jnp.pad(params["w5"], ((0, 0), (0, OUT_PAD - OUT_DIM))).astype(jnp.bfloat16)
    b5 = jnp.pad(params["b5"], ((0, 0), (0, OUT_PAD - OUT_DIM)))

    # --- Kernel 1: layers 1-4, whole batch, single invocation ---------------
    feat_args = [
        mask, x,
        w1, params["b1"],
        w2, params["b2"], params["g2"], params["be2"],
        w3, params["b3"], params["g3"], params["be3"],
        w4, params["b4"], params["g4"], params["be4"],
    ]
    h = pl.pallas_call(
        features_kernel,
        out_shape=jax.ShapeDtypeStruct((n_pad, HID), jnp.bfloat16),
        grid=(1,),
        in_specs=[_const_spec(a.shape) for a in feat_args],
        out_specs=pl.BlockSpec((n_pad, HID), lambda i: (0, 0)),
        compiler_params=pltpu.CompilerParams(
            dimension_semantics=("arbitrary",),
            vmem_limit_bytes=VMEM_LIMIT),
    )(*feat_args)

    # --- Kernel 2: layer 5, batch-tiled, megacore-parallel ------------------
    out_flat = pl.pallas_call(
        pixels_kernel,
        out_shape=jax.ShapeDtypeStruct((n_pad, OUT_PAD), jnp.bfloat16),
        grid=(n_pad // tile_b,),
        in_specs=[
            pl.BlockSpec((tile_b, HID), lambda b: (b, 0)),   # h batch tile
            pl.BlockSpec((HID, OUT_PAD), lambda b: (0, 0)),  # w5 (constant block)
            pl.BlockSpec((1, OUT_PAD), lambda b: (0, 0)),    # b5 (constant block)
        ],
        out_specs=pl.BlockSpec((tile_b, OUT_PAD), lambda b: (b, 0)),
        compiler_params=pltpu.CompilerParams(
            dimension_semantics=("parallel",),
            vmem_limit_bytes=VMEM_LIMIT),
    )(h, w5, b5)

    out = out_flat[:n, :OUT_DIM].astype(jnp.float32)
    return out.reshape(n, CHANNELS, IMAGE_SIZE, IMAGE_SIZE)


def init_params(key):
    """Deterministic synthetic init mirroring the PyTorch module's shapes.

    Linear: kaiming_normal_ (std = sqrt(2/fan_in)) scaled by 0.1, zero bias.
    BatchNorm1d: PyTorch default (gamma=1, beta=0) — the module's
    _initialize_weights only touches BatchNorm2d.
    Embedding: N(0, 1).
    Weights stored as (in, out) so the kernel computes x @ W (== PyTorch W.T).
    """
    dims = [IN_DIM, 128, 256, 512, 1024, OUT_DIM]
    keys = jax.random.split(key, 8)
    params = {}

    params["embedding"] = jax.random.normal(
        keys[0], (NUM_CLASSES, NUM_CLASSES), dtype=jnp.float32)

    for i in range(5):
        fan_in, fan_out = dims[i], dims[i + 1]
        std = (2.0 / fan_in) ** 0.5
        w = jax.random.normal(keys[i + 1], (fan_in, fan_out), jnp.float32) * std * 0.1
        params[f"w{i + 1}"] = w
        params[f"b{i + 1}"] = jnp.zeros((1, fan_out), jnp.float32)

    for i, d in zip((2, 3, 4), (256, 512, 1024)):
        params[f"g{i}"] = jnp.ones((1, d), jnp.float32)    # BatchNorm1d gamma
        params[f"be{i}"] = jnp.zeros((1, d), jnp.float32)  # BatchNorm1d beta

    return params


if __name__ == "__main__":
    key = jax.random.PRNGKey(0)
    k_param, k_noise, k_label = jax.random.split(key, 3)

    params = init_params(k_param)

    batch = 2
    noise = jax.random.normal(k_noise, (batch, LATENT), dtype=jnp.float32)
    labels = jax.random.randint(k_label, (batch,), 0, NUM_CLASSES, dtype=jnp.int32)

    out = generator_forward(noise, labels, params)
    out = jax.block_until_ready(out)

    assert out.shape == (batch, CHANNELS, IMAGE_SIZE, IMAGE_SIZE), out.shape
    assert out.dtype == jnp.float32
    assert bool(jnp.all(jnp.isfinite(out)))
    # Tanh output range check
    assert bool(jnp.all(jnp.abs(out) <= 1.0 + 1e-6))

    print("KERNEL_OK")
</pallas_src>

<mosaic_0001>
module attributes {stable_mosaic.version = 11 : i64} {
  func.func @features_kernel(%arg0: i32, %arg1: memref<16x1xf32, #tpu.memory_space<vmem>>, %arg2: memref<16x128xbf16, #tpu.memory_space<vmem>>, %arg3: memref<128x128xbf16, #tpu.memory_space<vmem>>, %arg4: memref<1x128xf32, #tpu.memory_space<vmem>>, %arg5: memref<128x256xbf16, #tpu.memory_space<vmem>>, %arg6: memref<1x256xf32, #tpu.memory_space<vmem>>, %arg7: memref<1x256xf32, #tpu.memory_space<vmem>>, %arg8: memref<1x256xf32, #tpu.memory_space<vmem>>, %arg9: memref<256x512xbf16, #tpu.memory_space<vmem>>, %arg10: memref<1x512xf32, #tpu.memory_space<vmem>>, %arg11: memref<1x512xf32, #tpu.memory_space<vmem>>, %arg12: memref<1x512xf32, #tpu.memory_space<vmem>>, %arg13: memref<512x1024xbf16, #tpu.memory_space<vmem>>, %arg14: memref<1x1024xf32, #tpu.memory_space<vmem>>, %arg15: memref<1x1024xf32, #tpu.memory_space<vmem>>, %arg16: memref<1x1024xf32, #tpu.memory_space<vmem>>, %arg17: memref<16x1024xbf16, #tpu.memory_space<vmem>>) attributes {dimension_semantics = [#tpu.dimension_semantics<arbitrary>], iteration_bounds = array<i64: 1>, scalar_prefetch = 0 : i64, scratch_operands = 0 : i64, tpu.core_type = #tpu.core_type<tc>, window_params = [{pipeline_mode = #tpu.pipeline_mode<synchronous>, transform_indices = @transform_0, window_bounds = array<i64: 16, 1>}, {pipeline_mode = #tpu.pipeline_mode<synchronous>, transform_indices = @transform_1, window_bounds = array<i64: 16, 128>}, {pipeline_mode = #tpu.pipeline_mode<synchronous>, transform_indices = @transform_2, window_bounds = array<i64: 128, 128>}, {pipeline_mode = #tpu.pipeline_mode<synchronous>, transform_indices = @transform_3, window_bounds = array<i64: 1, 128>}, {pipeline_mode = #tpu.pipeline_mode<synchronous>, transform_indices = @transform_4, window_bounds = array<i64: 128, 256>}, {pipeline_mode = #tpu.pipeline_mode<synchronous>, transform_indices = @transform_5, window_bounds = array<i64: 1, 256>}, {pipeline_mode = #tpu.pipeline_mode<synchronous>, transform_indices = @transform_6, window_bounds = array<i64: 1, 256>}, {pipeline_mode = #tpu.pipeline_mode<synchronous>, transform_indices = @transform_7, window_bounds = array<i64: 1, 256>}, {pipeline_mode = #tpu.pipeline_mode<synchronous>, transform_indices = @transform_8, window_bounds = array<i64: 256, 512>}, {pipeline_mode = #tpu.pipeline_mode<synchronous>, transform_indices = @transform_9, window_bounds = array<i64: 1, 512>}, {pipeline_mode = #tpu.pipeline_mode<synchronous>, transform_indices = @transform_10, window_bounds = array<i64: 1, 512>}, {pipeline_mode = #tpu.pipeline_mode<synchronous>, transform_indices = @transform_11, window_bounds = array<i64: 1, 512>}, {pipeline_mode = #tpu.pipeline_mode<synchronous>, transform_indices = @transform_12, window_bounds = array<i64: 512, 1024>}, {pipeline_mode = #tpu.pipeline_mode<synchronous>, transform_indices = @transform_13, window_bounds = array<i64: 1, 1024>}, {pipeline_mode = #tpu.pipeline_mode<synchronous>, transform_indices = @transform_14, window_bounds = array<i64: 1, 1024>}, {pipeline_mode = #tpu.pipeline_mode<synchronous>, transform_indices = @transform_15, window_bounds = array<i64: 1, 1024>}, {pipeline_mode = #tpu.pipeline_mode<synchronous>, transform_indices = @transform_16, window_bounds = array<i64: 16, 1024>}]} {
    %c0 = arith.constant 0 : index
    %c0_0 = arith.constant 0 : index
    %0 = vector.load %arg1[%c0, %c0_0] : memref<16x1xf32, #tpu.memory_space<vmem>>, vector<16x1xf32>
    %c0_1 = arith.constant 0 : index
    %c0_2 = arith.constant 0 : index
    %1 = vector.load %arg2[%c0_1, %c0_2] : memref<16x128xbf16, #tpu.memory_space<vmem>>, vector<16x128xbf16>
    %c0_3 = arith.constant 0 : index
    %c0_4 = arith.constant 0 : index
    %2 = vector.load %arg3[%c0_3, %c0_4] : memref<128x128xbf16, #tpu.memory_space<vmem>>, vector<128x128xbf16>
    %cst = arith.constant dense<0.000000e+00> : vector<16x128xf32>
    %3 = tpu.matmul %1, %2, %cst {dimension_numbers = #tpu.dot_dimension_numbers<[1], [0], [0], [1], [0, 0, 1, 1], [], []>} : vector<16x128xbf16>, vector<128x128xbf16>, vector<16x128xf32> -> vector<16x128xf32>
    %c0_5 = arith.constant 0 : index
    %c0_6 = arith.constant 0 : index
    %4 = vector.load %arg4[%c0_5, %c0_6] : memref<1x128xf32, #tpu.memory_space<vmem>>, vector<1x128xf32>
    %5 = vector.broadcast %4 : vector<1x128xf32> to vector<16x128xf32>
    %6 = arith.addf %3, %5 : vector<16x128xf32>
    %cst_7 = arith.constant 0.000000e+00 : f32
    %7 = vector.broadcast %cst_7 : f32 to vector<16x128xf32>
    %8 = arith.cmpf ogt, %6, %7 : vector<16x128xf32>
    %cst_8 = arith.constant 2.000000e-01 : f32
    %9 = vector.broadcast %cst_8 : f32 to vector<16x128xf32>
    %10 = arith.mulf %9, %6 : vector<16x128xf32>
    %11 = arith.select %8, %6, %10 : vector<16x128xi1>, vector<16x128xf32>
    %12 = arith.truncf %11 : vector<16x128xf32> to vector<16x128xbf16>
    %c0_9 = arith.constant 0 : index
    %c0_10 = arith.constant 0 : index
    %13 = vector.load %arg5[%c0_9, %c0_10] : memref<128x256xbf16, #tpu.memory_space<vmem>>, vector<128x256xbf16>
    %cst_11 = arith.constant dense<0.000000e+00> : vector<16x256xf32>
    %14 = tpu.matmul %12, %13, %cst_11 {dimension_numbers = #tpu.dot_dimension_numbers<[1], [0], [0], [1], [0, 0, 1, 1], [], []>} : vector<16x128xbf16>, vector<128x256xbf16>, vector<16x256xf32> -> vector<16x256xf32>
    %c0_12 = arith.constant 0 : index
    %c0_13 = arith.constant 0 : index
    %15 = vector.load %arg6[%c0_12, %c0_13] : memref<1x256xf32, #tpu.memory_space<vmem>>, vector<1x256xf32>
    %16 = vector.broadcast %15 : vector<1x256xf32> to vector<16x256xf32>
    %17 = arith.addf %14, %16 : vector<16x256xf32>
    %18 = vector.broadcast %0 : vector<16x1xf32> to vector<16x256xf32>
    %19 = arith.mulf %17, %18 : vector<16x256xf32>
    %cst_14 = arith.constant dense<0.000000e+00> : vector<256xf32>
    %20 = vector.multi_reduction <add>, %19, %cst_14 [0] : vector<16x256xf32> to vector<256xf32>
    %21 = vector.shape_cast %20 : vector<256xf32> to vector<1x256xf32>
    %22 = arith.mulf %19, %17 : vector<16x256xf32>
    %cst_15 = arith.constant dense<0.000000e+00> : vector<256xf32>
    %23 = vector.multi_reduction <add>, %22, %cst_15 [0] : vector<16x256xf32> to vector<256xf32>
    %24 = vector.shape_cast %23 : vector<256xf32> to vector<1x256xf32>
    %25 = arith.mulf %21, %21 : vector<1x256xf32>
    %26 = arith.subf %24, %25 : vector<1x256xf32>
    %c0_16 = arith.constant 0 : index
    %c0_17 = arith.constant 0 : index
    %27 = vector.load %arg7[%c0_16, %c0_17] : memref<1x256xf32, #tpu.memory_space<vmem>>, vector<1x256xf32>
    %cst_18 = arith.constant 9.99999974E-6 : f32
    %28 = vector.broadcast %cst_18 : f32 to vector<1x256xf32>
    %29 = arith.addf %26, %28 : vector<1x256xf32>
    %30 = math.rsqrt %29 : vector<1x256xf32>
    %31 = arith.mulf %27, %30 : vector<1x256xf32>
    %c0_19 = arith.constant 0 : index
    %c0_20 = arith.constant 0 : index
    %32 = vector.load %arg8[%c0_19, %c0_20] : memref<1x256xf32, #tpu.memory_space<vmem>>, vector<1x256xf32>
    %33 = arith.mulf %21, %31 : vector<1x256xf32>
    %34 = arith.subf %32, %33 : vector<1x256xf32>
    %35 = vector.broadcast %31 : vector<1x256xf32> to vector<16x256xf32>
    %36 = arith.mulf %17, %35 : vector<16x256xf32>
    %37 = vector.broadcast %34 : vector<1x256xf32> to vector<16x256xf32>
    %38 = arith.addf %36, %37 : vector<16x256xf32>
    %cst_21 = arith.constant 0.000000e+00 : f32
    %39 = vector.broadcast %cst_21 : f32 to vector<16x256xf32>
    %40 = arith.cmpf ogt, %38, %39 : vector<16x256xf32>
    %cst_22 = arith.constant 2.000000e-01 : f32
    %41 = vector.broadcast %cst_22 : f32 to vector<16x256xf32>
    %42 = arith.mulf %41, %38 : vector<16x256xf32>
    %43 = arith.select %40, %38, %42 : vector<16x256xi1>, vector<16x256xf32>
    %44 = arith.truncf %43 : vector<16x256xf32> to vector<16x256xbf16>
    %c0_23 = arith.constant 0 : index
    %c0_24 = arith.constant 0 : index
    %45 = vector.load %arg9[%c0_23, %c0_24] : memref<256x512xbf16, #tpu.memory_space<vmem>>, vector<256x512xbf16>
    %cst_25 = arith.constant dense<0.000000e+00> : vector<16x512xf32>
    %46 = tpu.matmul %44, %45, %cst_25 {dimension_numbers = #tpu.dot_dimension_numbers<[1], [0], [0], [1], [0, 0, 1, 1], [], []>} : vector<16x256xbf16>, vector<256x512xbf16>, vector<16x512xf32> -> vector<16x512xf32>
    %c0_26 = arith.constant 0 : index
    %c0_27 = arith.constant 0 : index
    %47 = vector.load %arg10[%c0_26, %c0_27] : memref<1x512xf32, #tpu.memory_space<vmem>>, vector<1x512xf32>
    %48 = vector.broadcast %47 : vector<1x512xf32> to vector<16x512xf32>
    %49 = arith.addf %46, %48 : vector<16x512xf32>
    %50 = vector.broadcast %0 : vector<16x1xf32> to vector<16x512xf32>
    %51 = arith.mulf %49, %50 : vector<16x512xf32>
    %cst_28 = arith.constant dense<0.000000e+00> : vector<512xf32>
    %52 = vector.multi_reduction <add>, %51, %cst_28 [0] : vector<16x512xf32> to vector<512xf32>
    %53 = vector.shape_cast %52 : vector<512xf32> to vector<1x512xf32>
    %54 = arith.mulf %51, %49 : vector<16x512xf32>
    %cst_29 = arith.constant dense<0.000000e+00> : vector<512xf32>
    %55 = vector.multi_reduction <add>, %54, %cst_29 [0] : vector<16x512xf32> to vector<512xf32>
    %56 = vector.shape_cast %55 : vector<512xf32> to vector<1x512xf32>
    %57 = arith.mulf %53, %53 : vector<1x512xf32>
    %58 = arith.subf %56, %57 : vector<1x512xf32>
    %c0_30 = arith.constant 0 : index
    %c0_31 = arith.constant 0 : index
    %59 = vector.load %arg11[%c0_30, %c0_31] : memref<1x512xf32, #tpu.memory_space<vmem>>, vector<1x512xf32>
    %cst_32 = arith.constant 9.99999974E-6 : f32
    %60 = vector.broadcast %cst_32 : f32 to vector<1x512xf32>
    %61 = arith.addf %58, %60 : vector<1x512xf32>
    %62 = math.rsqrt %61 : vector<1x512xf32>
    %63 = arith.mulf %59, %62 : vector<1x512xf32>
    %c0_33 = arith.constant 0 : index
    %c0_34 = arith.constant 0 : index
    %64 = vector.load %arg12[%c0_33, %c0_34] : memref<1x512xf32, #tpu.memory_space<vmem>>, vector<1x512xf32>
    %65 = arith.mulf %53, %63 : vector<1x512xf32>
    %66 = arith.subf %64, %65 : vector<1x512xf32>
    %67 = vector.broadcast %63 : vector<1x512xf32> to vector<16x512xf32>
    %68 = arith.mulf %49, %67 : vector<16x512xf32>
    %69 = vector.broadcast %66 : vector<1x512xf32> to vector<16x512xf32>
    %70 = arith.addf %68, %69 : vector<16x512xf32>
    %cst_35 = arith.constant 0.000000e+00 : f32
    %71 = vector.broadcast %cst_35 : f32 to vector<16x512xf32>
    %72 = arith.cmpf ogt, %70, %71 : vector<16x512xf32>
    %cst_36 = arith.constant 2.000000e-01 : f32
    %73 = vector.broadcast %cst_36 : f32 to vector<16x512xf32>
    %74 = arith.mulf %73, %70 : vector<16x512xf32>
    %75 = arith.select %72, %70, %74 : vector<16x512xi1>, vector<16x512xf32>
    %76 = arith.truncf %75 : vector<16x512xf32> to vector<16x512xbf16>
    %c0_37 = arith.constant 0 : index
    %c0_38 = arith.constant 0 : index
    %77 = vector.load %arg13[%c0_37, %c0_38] : memref<512x1024xbf16, #tpu.memory_space<vmem>>, vector<512x1024xbf16>
    %cst_39 = arith.constant dense<0.000000e+00> : vector<16x1024xf32>
    %78 = tpu.matmul %76, %77, %cst_39 {dimension_numbers = #tpu.dot_dimension_numbers<[1], [0], [0], [1], [0, 0, 1, 1], [], []>} : vector<16x512xbf16>, vector<512x1024xbf16>, vector<16x1024xf32> -> vector<16x1024xf32>
    %c0_40 = arith.constant 0 : index
    %c0_41 = arith.constant 0 : index
    %79 = vector.load %arg14[%c0_40, %c0_41] : memref<1x1024xf32, #tpu.memory_space<vmem>>, vector<1x1024xf32>
    %80 = vector.broadcast %79 : vector<1x1024xf32> to vector<16x1024xf32>
    %81 = arith.addf %78, %80 : vector<16x1024xf32>
    %82 = vector.broadcast %0 : vector<16x1xf32> to vector<16x1024xf32>
    %83 = arith.mulf %81, %82 : vector<16x1024xf32>
    %cst_42 = arith.constant dense<0.000000e+00> : vector<1024xf32>
    %84 = vector.multi_reduction <add>, %83, %cst_42 [0] : vector<16x1024xf32> to vector<1024xf32>
    %85 = vector.shape_cast %84 : vector<1024xf32> to vector<1x1024xf32>
    %86 = arith.mulf %83, %81 : vector<16x1024xf32>
    %cst_43 = arith.constant dense<0.000000e+00> : vector<1024xf32>
    %87 = vector.multi_reduction <add>, %86, %cst_43 [0] : vector<16x1024xf32> to vector<1024xf32>
    %88 = vector.shape_cast %87 : vector<1024xf32> to vector<1x1024xf32>
    %89 = arith.mulf %85, %85 : vector<1x1024xf32>
    %90 = arith.subf %88, %89 : vector<1x1024xf32>
    %c0_44 = arith.constant 0 : index
    %c0_45 = arith.constant 0 : index
    %91 = vector.load %arg15[%c0_44, %c0_45] : memref<1x1024xf32, #tpu.memory_space<vmem>>, vector<1x1024xf32>
    %cst_46 = arith.constant 9.99999974E-6 : f32
    %92 = vector.broadcast %cst_46 : f32 to vector<1x1024xf32>
    %93 = arith.addf %90, %92 : vector<1x1024xf32>
    %94 = math.rsqrt %93 : vector<1x1024xf32>
    %95 = arith.mulf %91, %94 : vector<1x1024xf32>
    %c0_47 = arith.constant 0 : index
    %c0_48 = arith.constant 0 : index
    %96 = vector.load %arg16[%c0_47, %c0_48] : memref<1x1024xf32, #tpu.memory_space<vmem>>, vector<1x1024xf32>
    %97 = arith.mulf %85, %95 : vector<1x1024xf32>
    %98 = arith.subf %96, %97 : vector<1x1024xf32>
    %99 = vector.broadcast %95 : vector<1x1024xf32> to vector<16x1024xf32>
    %100 = arith.mulf %81, %99 : vector<16x1024xf32>
    %101 = vector.broadcast %98 : vector<1x1024xf32> to vector<16x1024xf32>
    %102 = arith.addf %100, %101 : vector<16x1024xf32>
    %cst_49 = arith.constant 0.000000e+00 : f32
    %103 = vector.broadcast %cst_49 : f32 to vector<16x1024xf32>
    %104 = arith.cmpf ogt, %102, %103 : vector<16x1024xf32>
    %cst_50 = arith.constant 2.000000e-01 : f32
    %105 = vector.broadcast %cst_50 : f32 to vector<16x1024xf32>
    %106 = arith.mulf %105, %102 : vector<16x1024xf32>
    %107 = arith.select %104, %102, %106 : vector<16x1024xi1>, vector<16x1024xf32>
    %108 = arith.truncf %107 : vector<16x1024xf32> to vector<16x1024xbf16>
    %c0_51 = arith.constant 0 : index
    %c0_52 = arith.constant 0 : index
    %109 = vector.load %arg17[%c0_51, %c0_52] : memref<16x1024xbf16, #tpu.memory_space<vmem>>, vector<16x1024xbf16>
    tpu.vector_store %arg17[%c0_51, %c0_52], %108 {strides = array<i32>} : memref<16x1024xbf16, #tpu.memory_space<vmem>>, vector<16x1024xbf16>,
    return
  }
  func.func @transform_0(%arg0: i32) -> (i32, i32) {
    %c0_i32 = arith.constant 0 : i32
    %c0_i32_0 = arith.constant 0 : i32
    %c0_i32_1 = arith.constant 0 : i32
    return %c0_i32, %c0_i32_0 : i32, i32
  }
  func.func @transform_1(%arg0: i32) -> (i32, i32) {
    %c0_i32 = arith.constant 0 : i32
    %c0_i32_0 = arith.constant 0 : i32
    %c0_i32_1 = arith.constant 0 : i32
    return %c0_i32, %c0_i32_0 : i32, i32
  }
  func.func @transform_2(%arg0: i32) -> (i32, i32) {
    %c0_i32 = arith.constant 0 : i32
    %c0_i32_0 = arith.constant 0 : i32
    %c0_i32_1 = arith.constant 0 : i32
    return %c0_i32, %c0_i32_0 : i32, i32
  }
  func.func @transform_3(%arg0: i32) -> (i32, i32) {
    %c0_i32 = arith.constant 0 : i32
    %c0_i32_0 = arith.constant 0 : i32
    %c0_i32_1 = arith.constant 0 : i32
    return %c0_i32, %c0_i32_0 : i32, i32
  }
  func.func @transform_4(%arg0: i32) -> (i32, i32) {
    %c0_i32 = arith.constant 0 : i32
    %c0_i32_0 = arith.constant 0 : i32
    %c0_i32_1 = arith.constant 0 : i32
    return %c0_i32, %c0_i32_0 : i32, i32
  }
  func.func @transform_5(%arg0: i32) -> (i32, i32) {
    %c0_i32 = arith.constant 0 : i32
    %c0_i32_0 = arith.constant 0 : i32
    %c0_i32_1 = arith.constant 0 : i32
    return %c0_i32, %c0_i32_0 : i32, i32
  }
  func.func @transform_6(%arg0: i32) -> (i32, i32) {
    %c0_i32 = arith.constant 0 : i32
    %c0_i32_0 = arith.constant 0 : i32
    %c0_i32_1 = arith.constant 0 : i32
    return %c0_i32, %c0_i32_0 : i32, i32
  }
  func.func @transform_7(%arg0: i32) -> (i32, i32) {
    %c0_i32 = arith.constant 0 : i32
    %c0_i32_0 = arith.constant 0 : i32
    %c0_i32_1 = arith.constant 0 : i32
    return %c0_i32, %c0_i32_0 : i32, i32
  }
  func.func @transform_8(%arg0: i32) -> (i32, i32) {
    %c0_i32 = arith.constant 0 : i32
    %c0_i32_0 = arith.constant 0 : i32
    %c0_i32_1 = arith.constant 0 : i32
    return %c0_i32, %c0_i32_0 : i32, i32
  }
  func.func @transform_9(%arg0: i32) -> (i32, i32) {
    %c0_i32 = arith.constant 0 : i32
    %c0_i32_0 = arith.constant 0 : i32
    %c0_i32_1 = arith.constant 0 : i32
    return %c0_i32, %c0_i32_0 : i32, i32
  }
  func.func @transform_10(%arg0: i32) -> (i32, i32) {
    %c0_i32 = arith.constant 0 : i32
    %c0_i32_0 = arith.constant 0 : i32
    %c0_i32_1 = arith.constant 0 : i32
    return %c0_i32, %c0_i32_0 : i32, i32
  }
  func.func @transform_11(%arg0: i32) -> (i32, i32) {
    %c0_i32 = arith.constant 0 : i32
    %c0_i32_0 = arith.constant 0 : i32
    %c0_i32_1 = arith.constant 0 : i32
    return %c0_i32, %c0_i32_0 : i32, i32
  }
  func.func @transform_12(%arg0: i32) -> (i32, i32) {
    %c0_i32 = arith.constant 0 : i32
    %c0_i32_0 = arith.constant 0 : i32
    %c0_i32_1 = arith.constant 0 : i32
    return %c0_i32, %c0_i32_0 : i32, i32
  }
  func.func @transform_13(%arg0: i32) -> (i32, i32) {
    %c0_i32 = arith.constant 0 : i32
    %c0_i32_0 = arith.constant 0 : i32
    %c0_i32_1 = arith.constant 0 : i32
    return %c0_i32, %c0_i32_0 : i32, i32
  }
  func.func @transform_14(%arg0: i32) -> (i32, i32) {
    %c0_i32 = arith.constant 0 : i32
    %c0_i32_0 = arith.constant 0 : i32
    %c0_i32_1 = arith.constant 0 : i32
    return %c0_i32, %c0_i32_0 : i32, i32
  }
  func.func @transform_15(%arg0: i32) -> (i32, i32) {
    %c0_i32 = arith.constant 0 : i32
    %c0_i32_0 = arith.constant 0 : i32
    %c0_i32_1 = arith.constant 0 : i32
    return %c0_i32, %c0_i32_0 : i32, i32
  }
  func.func @transform_16(%arg0: i32) -> (i32, i32) {
    %c0_i32 = arith.constant 0 : i32
    %c0_i32_0 = arith.constant 0 : i32
    %c0_i32_1 = arith.constant 0 : i32
    return %c0_i32, %c0_i32_0 : i32, i32
  }
}

</mosaic_0001>

<llo_original>
// kernel: tpu_custom_call.1
$region0: #{tpu_custom_call.1}
  #allocation0 [shape = 'u32[]', space=smem, size = 0x4, offset = 0x4, fixed_abs, tag = 'smem constant byte address 0x4 - core index']
  #allocation1 [shape = 'u32[144,128]{1,0:T(1,128)}', space=vmem, size = 0x12000, scoped, tag = 'internal scratch']
  %s0 = inlined_call_operand.vmem [shape: f32[16,1], index: 0, kind: input, shape index: {}]
  %s1 = inlined_call_operand.vmem [shape: bf16[16,128], index: 1, kind: input, shape index: {}]
  %s2 = inlined_call_operand.hbm [shape: bf16[128,128], index: 2, kind: input, shape index: {}]
  %s3 = inlined_call_operand.hbm [shape: f32[1,128], index: 3, kind: input, shape index: {}]
  %s4 = inlined_call_operand.hbm [shape: bf16[128,256], index: 4, kind: input, shape index: {}]
  %s5 = inlined_call_operand.hbm [shape: f32[1,256], index: 5, kind: input, shape index: {}]
  %s6 = inlined_call_operand.hbm [shape: f32[1,256], index: 6, kind: input, shape index: {}]
  %s7 = inlined_call_operand.hbm [shape: f32[1,256], index: 7, kind: input, shape index: {}]
  %s8 = inlined_call_operand.hbm [shape: bf16[256,512], index: 8, kind: input, shape index: {}]
  %s9 = inlined_call_operand.hbm [shape: f32[1,512], index: 9, kind: input, shape index: {}]
  %s10 = inlined_call_operand.hbm [shape: f32[1,512], index: 10, kind: input, shape index: {}]
  %s11 = inlined_call_operand.vmem [shape: f32[1,512], index: 11, kind: input, shape index: {}]
  %s12 = inlined_call_operand.hbm [shape: bf16[512,1024], index: 12, kind: input, shape index: {}]
  %s13 = inlined_call_operand.vmem [shape: f32[1,1024], index: 13, kind: input, shape index: {}]
  %s14 = inlined_call_operand.vmem [shape: f32[1,1024], index: 14, kind: input, shape index: {}]
  %s15 = inlined_call_operand.vmem [shape: f32[1,1024], index: 15, kind: input, shape index: {}]
  %s16 = inlined_call_operand.hbm [shape: bf16[16,1024], index: 16, kind: output, shape index: {}]
  %s17 = sld [smem:[#allocation0]]
  $region114: #{tpu_custom_call.1} parent=0
    _
  %s19 = ssub.s32 1, %s17
  %s20 = scalar_select 0, %s19, %s17
  $region1: #{tpu_custom_call.1} parent=0
    #allocation2 [shape = 'u8[32768]{0}', space=vmem, size = 0x8000, scoped, tag = 'input window, operand 2, single buffered']
    #allocation3 [shape = 's32[1]{0}', space=sflag, size = 0x4, scoped, tag = 'scoped memory for tpu_custom_call.1']
    #allocation4 [shape = 's32[1]{0}', space=sflag, size = 0x4, scoped, tag = 'scoped memory for tpu_custom_call.1']
    #allocation5 [shape = 'u8[512]{0}', space=vmem, size = 0x400, scoped, tag = 'input window, operand 3, single buffered']
    #allocation6 [shape = 's32[1]{0}', space=sflag, size = 0x4, scoped, tag = 'scoped memory for tpu_custom_call.1']
    #allocation7 [shape = 'u8[65536]{0}', space=vmem, size = 0x10000, scoped, tag = 'input window, operand 4, single buffered']
    #allocation8 [shape = 'u8[1024]{0}', space=vmem, size = 0x400, scoped, tag = 'input window, operand 5, single buffered']
    #allocation9 [shape = 's32[1]{0}', space=sflag, size = 0x4, scoped, tag = 'scoped memory for tpu_custom_call.1']
    #allocation10 [shape = 'u8[1024]{0}', space=vmem, size = 0x400, scoped, tag = 'input window, operand 6, single buffered']
    #allocation11 [shape = 'u8[1024]{0}', space=vmem, size = 0x400, scoped, tag = 'input window, operand 7, single buffered']
    #allocation12 [shape = 's32[1]{0}', space=sflag, size = 0x4, scoped, tag = 'scoped memory for tpu_custom_call.1']
    #allocation13 [shape = 'u8[262144]{0}', space=vmem, size = 0x40000, scoped, tag = 'input window, operand 8, single buffered']
    #allocation14 [shape = 'u8[2048]{0}', space=vmem, size = 0x800, scoped, tag = 'input window, operand 9, single buffered']
    #allocation15 [shape = 's32[1]{0}', space=sflag, size = 0x4, scoped, tag = 'scoped memory for tpu_custom_call.1']
    #allocation16 [shape = 'u8[2048]{0}', space=vmem, size = 0x800, scoped, tag = 'input window, operand 10, single buffered']
    #allocation17 [shape = 'u8[1048576]{0}', space=vmem, size = 0x100000, scoped, tag = 'input window, operand 12, single buffered']
    #allocation18 [shape = 's32[1]{0}', space=sflag, size = 0x4, scoped, tag = 'scoped memory for tpu_custom_call.1']
    #allocation19 [shape = 'u8[32768]{0}', space=vmem, size = 0x8000, scoped, tag = 'output window, operand 0, single buffered']
    %21 = vsyncpa [#allocation3], 0
    %22 = vsyncpa [#allocation6], 0
    %23 = vsyncpa [#allocation9], 0
    %24 = vsyncpa [#allocation12], 0
    %25 = vsyncpa [#allocation15], 0
    %26 = vsyncpa [#allocation18], 0
    %27 = vsyncpa [#allocation4], 0
    // Predicated region
    $region2: #{tpu_custom_call.1} parent=1 // pred_check
      _
    $region3: #{tpu_custom_call.1} parent=1 // pred_check_branch
      %29 = sbr.rel (0) target = $region5
    $region4: #{tpu_custom_call.1} parent=1 // pred_region
      _
    $region5: #{tpu_custom_call.1} parent=1 // pred_fallthru
      _
    // Predicated region
    $region6: #{tpu_custom_call.1} parent=1 // pred_check
      _
    $region7: #{tpu_custom_call.1} parent=1 // pred_check_branch
      %31 = sbr.rel (0) target = $region9
    $region8: #{tpu_custom_call.1} parent=1 // pred_region
      _
    $region9: #{tpu_custom_call.1} parent=1 // pred_fallthru
      _
    // Predicated region
    $region10: #{tpu_custom_call.1} parent=1 // pred_check
      _
    $region11: #{tpu_custom_call.1} parent=1 // pred_check_branch
      %33 = sbr.rel (0) target = $region13
    $region12: #{tpu_custom_call.1} parent=1 // pred_region
      %s35 = ssub.s32 1024, 1024
      %36 = vsyncadd [#allocation3], %s35
      %s37 = sshll.u32 [#allocation2], 4
      %s38 = int_to_ptr.vmem [resolvable:$true] %s37
      %43 = dma.hbm_to_vmem [thread:$0]  %s2, 1024, %s38, [#allocation3], 64, 64, 4
    $region13: #{tpu_custom_call.1} parent=1 // pred_fallthru
      _
    // Predicated region
    $region14: #{tpu_custom_call.1} parent=1 // pred_check
      _
    $region15: #{tpu_custom_call.1} parent=1 // pred_check_branch
      %45 = sbr.rel (0) target = $region17
    $region16: #{tpu_custom_call.1} parent=1 // pred_region
      %s47 = ssub.s32 16, 16
      %48 = vsyncadd [#allocation6], %s47
      %s50 = sshll.u32 [#allocation5], 4
      %s51 = int_to_ptr.vmem [resolvable:$true] %s50
      %53 = dma.hbm_to_vmem [thread:$0]  %s3, 16, %s51, [#allocation6]
    $region17: #{tpu_custom_call.1} parent=1 // pred_fallthru
      _
    // Predicated region
    $region18: #{tpu_custom_call.1} parent=1 // pred_check
      _
    $region19: #{tpu_custom_call.1} parent=1 // pred_check_branch
      %55 = sbr.rel (0) target = $region21
    $region20: #{tpu_custom_call.1} parent=1 // pred_region
      %s57 = ssub.s32 2048, 2048
      %58 = vsyncadd [#allocation6], %s57
      %s59 = sshll.u32 [#allocation7], 4
      %s60 = int_to_ptr.vmem [resolvable:$true] %s59
      %65 = dma.hbm_to_vmem [thread:$0]  %s4, 2048, %s60, [#allocation6], 128, 128, 8
    $region21: #{tpu_custom_call.1} parent=1 // pred_fallthru
      _
    // Predicated region
    $region22: #{tpu_custom_call.1} parent=1 // pred_check
      _
    $region23: #{tpu_custom_call.1} parent=1 // pred_check_branch
      %67 = sbr.rel (0) target = $region25
    $region24: #{tpu_custom_call.1} parent=1 // pred_region
      %s69 = ssub.s32 32, 32
      %70 = vsyncadd [#allocation9], %s69
      %s72 = sshll.u32 [#allocation8], 4
      %s73 = int_to_ptr.vmem [resolvable:$true] %s72
      %75 = dma.hbm_to_vmem [thread:$0]  %s5, 32, %s73, [#allocation9]
    $region25: #{tpu_custom_call.1} parent=1 // pred_fallthru
      _
    // Predicated region
    $region26: #{tpu_custom_call.1} parent=1 // pred_check
      _
    $region27: #{tpu_custom_call.1} parent=1 // pred_check_branch
      %77 = sbr.rel (0) target = $region29
    $region28: #{tpu_custom_call.1} parent=1 // pred_region
      %s79 = ssub.s32 32, 32
      %80 = vsyncadd [#allocation9], %s79
      %s82 = sshll.u32 [#allocation10], 4
      %s83 = int_to_ptr.vmem [resolvable:$true] %s82
      %85 = dma.hbm_to_vmem [thread:$0]  %s6, 32, %s83, [#allocation9]
    $region29: #{tpu_custom_call.1} parent=1 // pred_fallthru
      _
    // Predicated region
    $region30: #{tpu_custom_call.1} parent=1 // pred_check
      _
    $region31: #{tpu_custom_call.1} parent=1 // pred_check_branch
      %87 = sbr.rel (0) target = $region33
    $region32: #{tpu_custom_call.1} parent=1 // pred_region
      %s89 = ssub.s32 32, 32
      %90 = vsyncadd [#allocation12], %s89
      %s92 = sshll.u32 [#allocation11], 4
      %s93 = int_to_ptr.vmem [resolvable:$true] %s92
      %95 = dma.hbm_to_vmem [thread:$0]  %s7, 32, %s93, [#allocation12]
    $region33: #{tpu_custom_call.1} parent=1 // pred_fallthru
      _
    // Predicated region
    $region34: #{tpu_custom_call.1} parent=1 // pred_check
      _
    $region35: #{tpu_custom_call.1} parent=1 // pred_check_branch
      %97 = sbr.rel (0) target = $region37
    $region36: #{tpu_custom_call.1} parent=1 // pred_region
      %s99 = ssub.s32 8192, 8192
      %100 = vsyncadd [#allocation12], %s99
      %s101 = sshll.u32 [#allocation13], 4
      %s102 = int_to_ptr.vmem [resolvable:$true] %s101
      %107 = dma.hbm_to_vmem [thread:$0]  %s8, 8192, %s102, [#allocation12], 256, 256, 16
    $region37: #{tpu_custom_call.1} parent=1 // pred_fallthru
      _
    // Predicated region
    $region38: #{tpu_custom_call.1} parent=1 // pred_check
      _
    $region39: #{tpu_custom_call.1} parent=1 // pred_check_branch
      %109 = sbr.rel (0) target = $region41
    $region40: #{tpu_custom_call.1} parent=1 // pred_region
      %s111 = ssub.s32 64, 64
      %112 = vsyncadd [#allocation15], %s111
      %s114 = sshll.u32 [#allocation14], 4
      %s115 = int_to_ptr.vmem [resolvable:$true] %s114
      %117 = dma.hbm_to_vmem [thread:$0]  %s9, 64, %s115, [#allocation15]
    $region41: #{tpu_custom_call.1} parent=1 // pred_fallthru
      _
    // Predicated region
    $region42: #{tpu_custom_call.1} parent=1 // pred_check
      _
    $region43: #{tpu_custom_call.1} parent=1 // pred_check_branch
      %119 = sbr.rel (0) target = $region45
    $region44: #{tpu_custom_call.1} parent=1 // pred_region
      %s121 = ssub.s32 64, 64
      %122 = vsyncadd [#allocation15], %s121
      %s124 = sshll.u32 [#allocation16], 4
      %s125 = int_to_ptr.vmem [resolvable:$true] %s124
      %127 = dma.hbm_to_vmem [thread:$0]  %s10, 64, %s125, [#allocation15]
    $region45: #{tpu_custom_call.1} parent=1 // pred_fallthru
      _
    // Predicated region
    $region46: #{tpu_custom_call.1} parent=1 // pred_check
      _
    $region47: #{tpu_custom_call.1} parent=1 // pred_check_branch
      %129 = sbr.rel (0) target = $region49
    $region48: #{tpu_custom_call.1} parent=1 // pred_region
      _
    $region49: #{tpu_custom_call.1} parent=1 // pred_fallthru
      _
    // Predicated region
    $region50: #{tpu_custom_call.1} parent=1 // pred_check
      _
    $region51: #{tpu_custom_call.1} parent=1 // pred_check_branch
      %131 = sbr.rel (0) target = $region53
    $region52: #{tpu_custom_call.1} parent=1 // pred_region
      %s133 = ssub.s32 32768, 32768
      %134 = vsyncadd [#allocation18], %s133
      %s135 = sshll.u32 [#allocation17], 4
      %s136 = int_to_ptr.vmem [resolvable:$true] %s135
      %141 = dma.hbm_to_vmem [thread:$0]  %s12, 32768, %s136, [#allocation18], 512, 512, 32
    $region53: #{tpu_custom_call.1} parent=1 // pred_fallthru
      _
    // Predicated region
    $region54: #{tpu_custom_call.1} parent=1 // pred_check
      _
    $region55: #{tpu_custom_call.1} parent=1 // pred_check_branch
      %143 = sbr.rel (0) target = $region57
    $region56: #{tpu_custom_call.1} parent=1 // pred_region
      _
    $region57: #{tpu_custom_call.1} parent=1 // pred_fallthru
      _
    // Predicated region
    $region58: #{tpu_custom_call.1} parent=1 // pred_check
      _
    $region59: #{tpu_custom_call.1} parent=1 // pred_check_branch
      %145 = sbr.rel (0) target = $region61
    $region60: #{tpu_custom_call.1} parent=1 // pred_region
      _
    $region61: #{tpu_custom_call.1} parent=1 // pred_fallthru
      _
    // Predicated region
    $region62: #{tpu_custom_call.1} parent=1 // pred_check
      _
    $region63: #{tpu_custom_call.1} parent=1 // pred_check_branch
      %147 = sbr.rel (0) target = $region65
    $region64: #{tpu_custom_call.1} parent=1 // pred_region
      _
    $region65: #{tpu_custom_call.1} parent=1 // pred_fallthru
      _
    // Predicated region
    $region66: #{tpu_custom_call.1} parent=1 // pred_check
      _
    $region67: #{tpu_custom_call.1} parent=1 // pred_check_branch
      %149 = sbr.rel (0) target = $region69
    $region68: #{tpu_custom_call.1} parent=1 // pred_region
      %150 = dma.done [#allocation3], 1024
    $region69: #{tpu_custom_call.1} parent=1 // pred_fallthru
      _
    // Predicated region
    $region70: #{tpu_custom_call.1} parent=1 // pred_check
      _
    $region71: #{tpu_custom_call.1} parent=1 // pred_check_branch
      %152 = sbr.rel (0) target = $region73
    $region72: #{tpu_custom_call.1} parent=1 // pred_region
      %153 = dma.done [#allocation6], 16
    $region73: #{tpu_custom_call.1} parent=1 // pred_fallthru
      _
    // Predicated region
    $region74: #{tpu_custom_call.1} parent=1 // pred_check
      _
    $region75: #{tpu_custom_call.1} parent=1 // pred_check_branch
      %155 = sbr.rel (0) target = $region77
    $region76: #{tpu_custom_call.1} parent=1 // pred_region
      %156 = dma.done [#allocation6], 2048
    $region77: #{tpu_custom_call.1} parent=1 // pred_fallthru
      _
    // Predicated region
    $region78: #{tpu_custom_call.1} parent=1 // pred_check
      _
    $region79: #{tpu_custom_call.1} parent=1 // pred_check_branch
      %158 = sbr.rel (0) target = $region81
    $region80: #{tpu_custom_call.1} parent=1 // pred_region
      %159 = dma.done [#allocation9], 32
    $region81: #{tpu_custom_call.1} parent=1 // pred_fallthru
      _
    // Predicated region
    $region82: #{tpu_custom_call.1} parent=1 // pred_check
      _
    $region83: #{tpu_custom_call.1} parent=1 // pred_check_branch
      %161 = sbr.rel (0) target = $region85
    $region84: #{tpu_custom_call.1} parent=1 // pred_region
      %162 = dma.done [#allocation9], 32
    $region85: #{tpu_custom_call.1} parent=1 // pred_fallthru
      _
    // Predicated region
    $region86: #{tpu_custom_call.1} parent=1 // pred_check
      _
    $region87: #{tpu_custom_call.1} parent=1 // pred_check_branch
      %164 = sbr.rel (0) target = $region89
    $region88: #{tpu_custom_call.1} parent=1 // pred_region
      %165 = dma.done [#allocation12], 32
    $region89: #{tpu_custom_call.1} parent=1 // pred_fallthru
      _
    // Predicated region
    $region90: #{tpu_custom_call.1} parent=1 // pred_check
      _
    $region91: #{tpu_custom_call.1} parent=1 // pred_check_branch
      %167 = sbr.rel (0) target = $region93
    $region92: #{tpu_custom_call.1} parent=1 // pred_region
      %168 = dma.done [#allocation12], 8192
    $region93: #{tpu_custom_call.1} parent=1 // pred_fallthru
      _
    // Predicated region
    $region94: #{tpu_custom_call.1} parent=1 // pred_check
      _
    $region95: #{tpu_custom_call.1} parent=1 // pred_check_branch
      %170 = sbr.rel (0) target = $region97
    $region96: #{tpu_custom_call.1} parent=1 // pred_region
      %171 = dma.done [#allocation15], 64
    $region97: #{tpu_custom_call.1} parent=1 // pred_fallthru
      _
    // Predicated region
    $region98: #{tpu_custom_call.1} parent=1 // pred_check
      _
    $region99: #{tpu_custom_call.1} parent=1 // pred_check_branch
      %173 = sbr.rel (0) target = $region101
    $region100: #{tpu_custom_call.1} parent=1 // pred_region
      %174 = dma.done [#allocation15], 64
    $region101: #{tpu_custom_call.1} parent=1 // pred_fallthru
      _
    // Predicated region
    $region102: #{tpu_custom_call.1} parent=1 // pred_check
      _
    $region103: #{tpu_custom_call.1} parent=1 // pred_check_branch
      %176 = sbr.rel (0) target = $region105
    $region104: #{tpu_custom_call.1} parent=1 // pred_region
      %177 = dma.done [#allocation18], 32768
    $region105: #{tpu_custom_call.1} parent=1 // pred_fallthru
      _
    %v179 = vld [vmem:[%s0] sm:$0xff]
    %v180 = vld [vmem:[%s0 + $0x8] sm:$0xff]
    %v181 = vld [vmem:[%s1] sm:$0xf]
    %v182 = vld [vmem:[%s1 + $0x4] sm:$0xf]
    %v183 = vld [vmem:[#allocation2] sm:$0xf]
    %v184 = vld [vmem:[#allocation2 + $0x4] sm:$0xf]
    %v185 = vld [vmem:[#allocation2 + $0x8] sm:$0xf]
    %v186 = vld [vmem:[#allocation2 + $0xc] sm:$0xf]
    %v187 = vld [vmem:[#allocation2 + $0x10] sm:$0xf]
    %v188 = vld [vmem:[#allocation2 + $0x14] sm:$0xf]
    %v189 = vld [vmem:[#allocation2 + $0x18] sm:$0xf]
    %v190 = vld [vmem:[#allocation2 + $0x1c] sm:$0xf]
    %v191 = vld [vmem:[#allocation2 + $0x20] sm:$0xf]
    %v192 = vld [vmem:[#allocation2 + $0x24] sm:$0xf]
    %v193 = vld [vmem:[#allocation2 + $0x28] sm:$0xf]
    %v194 = vld [vmem:[#allocation2 + $0x2c] sm:$0xf]
    %v195 = vld [vmem:[#allocation2 + $0x30] sm:$0xf]
    %v196 = vld [vmem:[#allocation2 + $0x34] sm:$0xf]
    %v197 = vld [vmem:[#allocation2 + $0x38] sm:$0xf]
    %v198 = vld [vmem:[#allocation2 + $0x3c] sm:$0xf]
    %v199 = vld [vmem:[#allocation5] sm:$0x1]
    %v201 = vlaneseq
    %v202 = vshrl.u32 %v201, 7
    %v203 = vsub.s32 0, %v202
    %v204 = vrot.slane %v199, %v203
    %v208 = vunpack.c.l.b16 %v181
    %v209 = vunpack.c.l.b16 %v182
    %v210 = vpack.c.b16 %v209, %v208
    %v228 = vunpack.c.l.b16 %v183
    %v229 = vunpack.c.l.b16 %v184
    %v230 = vunpack.c.l.b16 %v185
    %v231 = vunpack.c.l.b16 %v186
    %v232 = vunpack.c.l.b16 %v187
    %v233 = vunpack.c.l.b16 %v188
    %v234 = vunpack.c.l.b16 %v189
    %v235 = vunpack.c.l.b16 %v190
    %v236 = vunpack.c.l.b16 %v191
    %v237 = vunpack.c.l.b16 %v192
    %v238 = vunpack.c.l.b16 %v193
    %v239 = vunpack.c.l.b16 %v194
    %v240 = vunpack.c.l.b16 %v195
    %v241 = vunpack.c.l.b16 %v196
    %v242 = vunpack.c.l.b16 %v197
    %v243 = vunpack.c.l.b16 %v198
    %v244 = vpack.c.b16 %v229, %v228
    %v245 = vpack.c.b16 %v231, %v230
    %v246 = vpack.c.b16 %v233, %v232
    %v247 = vpack.c.b16 %v235, %v234
    %v248 = vpack.c.b16 %v237, %v236
    %v249 = vpack.c.b16 %v239, %v238
    %v250 = vpack.c.b16 %v241, %v240
    %v251 = vpack.c.b16 %v243, %v242
    %260 = vmatprep.subr.bf16.mxu0 0
    %261 = vmatpush1.bf16.msra.mxu0 %v251
    %262 = vmatprep.subr.bf16.mxu0 0
    %263 = vmatpush1.bf16.msra.mxu0 %v250
    %264 = vmatprep.subr.bf16.mxu0 0
    %265 = vmatpush1.bf16.msra.mxu0 %v249
    %266 = vmatprep.subr.bf16.mxu0 0
    %267 = vmatpush1.bf16.msra.mxu0 %v248
    %268 = vmatprep.subr.bf16.mxu0 0
    %269 = vmatpush1.bf16.msra.mxu0 %v247
    %270 = vmatprep.subr.bf16.mxu0 0
    %271 = vmatpush1.bf16.msra.mxu0 %v246
    %272 = vmatprep.subr.bf16.mxu0 0
    %273 = vmatpush1.bf16.msra.mxu0 %v245
    %274 = vmatprep.subr.bf16.mxu0 0
    %275 = vmatpush1.bf16.msra.mxu0 %v244
    %276 = vmatprep.subr.bf16.mxu0 0
    %277 = vmatpush2.bf16.msra.mxu0 0
    %278 = vmatprep.subr.bf16.mxu0 0
    %279 = vmatpush2.bf16.msra.mxu0 0
    %280 = vmatprep.subr.bf16.mxu0 0
    %281 = vmatpush2.bf16.msra.mxu0 0
    %282 = vmatprep.subr.bf16.mxu0 0
    %283 = vmatpush2.bf16.msra.mxu0 0
    %284 = vmatprep.subr.bf16.mxu0 0
    %285 = vmatpush2.bf16.msra.mxu0 0
    %286 = vmatprep.subr.bf16.mxu0 0
    %287 = vmatpush2.bf16.msra.mxu0 0
    %288 = vmatprep.subr.bf16.mxu0 0
    %289 = vmatpush2.bf16.msra.mxu0 0
    %290 = vmatprep.subr.bf16.mxu0 0
    %291 = vmatpush2.bf16.msra.mxu0 0
    %292 = vmatprep.mubr.bf16.mxu0 0
    %293 = vmatmul.mubr.bf16.gmra.mxu0 %v210
    %v294 = vpop.f32.mrf.mxu0
    %v295 = vadd.f32 %v204, %v294
    %v296 = vpop.f32.mrf.mxu0
    %v297 = vpop.f32.mrf.mxu0
    %v298 = vadd.f32 %v204, %v297
    %v299 = vpop.f32.mrf.mxu0
    %300 = vdwg.mxu0
    %vm301 = vcmp.gt.f32.partialorder %v295, 0.0
    %vm302 = vcmp.gt.f32.partialorder %v298, 0.0
    %v303 = vmul.f32 %v295, 0.2
    %v304 = vmul.f32 %v298, 0.2
    %v305 = vsel %vm301, %v295, %v303
    %v306 = vsel %vm302, %v298, %v304
    %v307 = vpack.c.bf16 %v306, %v305
    %v308 = vld [vmem:[#allocation7] sm:$0xff]
    %v309 = vld [vmem:[#allocation7 + $0x8] sm:$0xff]
    %v310 = vld [vmem:[#allocation7 + $0x10] sm:$0xff]
    %v311 = vld [vmem:[#allocation7 + $0x18] sm:$0xff]
    %v312 = vld [vmem:[#allocation7 + $0x20] sm:$0xff]
    %v313 = vld [vmem:[#allocation7 + $0x28] sm:$0xff]
    %v314 = vld [vmem:[#allocation7 + $0x30] sm:$0xff]
    %v315 = vld [vmem:[#allocation7 + $0x38] sm:$0xff]
    %v316 = vld [vmem:[#allocation7 + $0x40] sm:$0xff]
    %v317 = vld [vmem:[#allocation7 + $0x48] sm:$0xff]
    %v318 = vld [vmem:[#allocation7 + $0x50] sm:$0xff]
    %v319 = vld [vmem:[#allocation7 + $0x58] sm:$0xff]
    %v320 = vld [vmem:[#allocation7 + $0x60] sm:$0xff]
    %v321 = vld [vmem:[#allocation7 + $0x68] sm:$0xff]
    %v322 = vld [vmem:[#allocation7 + $0x70] sm:$0xff]
    %v323 = vld [vmem:[#allocation7 + $0x78] sm:$0xff]
    %v324 = vld [vmem:[#allocation8] sm:$0x3]
    %v326 = vlaneseq
    %v327 = vshrl.u32 %v326, 7
    %v328 = vsub.s32 0, %v327
    %v329 = vrot.slane %v324, %v328
    %v330 = vlaneseq
    %v331 = vshrl.u32 %v330, 7
    %v332 = vsub.s32 1, %v331
    %v333 = vrot.slane %v324, %v332
    %v352 = vunpack.c.l.b16 %v308
    %v353 = vunpack.c.h.b16 %v308
    %v354 = vunpack.c.l.b16 %v309
    %v355 = vunpack.c.h.b16 %v309
    %v356 = vunpack.c.l.b16 %v310
    %v357 = vunpack.c.h.b16 %v310
    %v358 = vunpack.c.l.b16 %v311
    %v359 = vunpack.c.h.b16 %v311
    %v360 = vunpack.c.l.b16 %v312
    %v361 = vunpack.c.h.b16 %v312
    %v362 = vunpack.c.l.b16 %v313
    %v363 = vunpack.c.h.b16 %v313
    %v364 = vunpack.c.l.b16 %v314
    %v365 = vunpack.c.h.b16 %v314
    %v366 = vunpack.c.l.b16 %v315
    %v367 = vunpack.c.h.b16 %v315
    %v368 = vunpack.c.l.b16 %v316
    %v369 = vunpack.c.h.b16 %v316
    %v370 = vunpack.c.l.b16 %v317
    %v371 = vunpack.c.h.b16 %v317
    %v372 = vunpack.c.l.b16 %v318
    %v373 = vunpack.c.h.b16 %v318
    %v374 = vunpack.c.l.b16 %v319
    %v375 = vunpack.c.h.b16 %v319
    %v376 = vunpack.c.l.b16 %v320
    %v377 = vunpack.c.h.b16 %v320
    %v378 = vunpack.c.l.b16 %v321
    %v379 = vunpack.c.h.b16 %v321
    %v380 = vunpack.c.l.b16 %v322
    %v381 = vunpack.c.h.b16 %v322
    %v382 = vunpack.c.l.b16 %v323
    %v383 = vunpack.c.h.b16 %v323
    %v384 = vpack.c.b16 %v354, %v352
    %v385 = vpack.c.b16 %v355, %v353
    %v386 = vpack.c.b16 %v358, %v356
    %v387 = vpack.c.b16 %v359, %v357
    %v388 = vpack.c.b16 %v362, %v360
    %v389 = vpack.c.b16 %v363, %v361
    %v390 = vpack.c.b16 %v366, %v364
    %v391 = vpack.c.b16 %v367, %v365
    %v392 = vpack.c.b16 %v370, %v368
    %v393 = vpack.c.b16 %v371, %v369
    %v394 = vpack.c.b16 %v374, %v372
    %v395 = vpack.c.b16 %v375, %v373
    %v396 = vpack.c.b16 %v378, %v376
    %v397 = vpack.c.b16 %v379, %v377
    %v398 = vpack.c.b16 %v382, %v380
    %v399 = vpack.c.b16 %v383, %v381
    %416 = vmatprep.subr.bf16.mxu0 %v399
    %417 = vmatpush1.bf16.msra.mxu0 %v398
    %418 = vmatprep.subr.bf16.mxu0 %v397
    %419 = vmatpush1.bf16.msra.mxu0 %v396
    %420 = vmatprep.subr.bf16.mxu0 %v395
    %421 = vmatpush1.bf16.msra.mxu0 %v394
    %422 = vmatprep.subr.bf16.mxu0 %v393
    %423 = vmatpush1.bf16.msra.mxu0 %v392
    %424 = vmatprep.subr.bf16.mxu0 %v391
    %425 = vmatpush1.bf16.msra.mxu0 %v390
    %426 = vmatprep.subr.bf16.mxu0 %v389
    %427 = vmatpush1.bf16.msra.mxu0 %v388
    %428 = vmatprep.subr.bf16.mxu0 %v387
    %429 = vmatpush1.bf16.msra.mxu0 %v386
    %430 = vmatprep.subr.bf16.mxu0 %v385
    %431 = vmatpush1.bf16.msra.mxu0 %v384
    %432 = vmatprep.subr.bf16.mxu0 0
    %433 = vmatpush2.bf16.msra.mxu0 0
    %434 = vmatprep.subr.bf16.mxu0 0
    %435 = vmatpush2.bf16.msra.mxu0 0
    %436 = vmatprep.subr.bf16.mxu0 0
    %437 = vmatpush2.bf16.msra.mxu0 0
    %438 = vmatprep.subr.bf16.mxu0 0
    %439 = vmatpush2.bf16.msra.mxu0 0
    %440 = vmatprep.subr.bf16.mxu0 0
    %441 = vmatpush2.bf16.msra.mxu0 0
    %442 = vmatprep.subr.bf16.mxu0 0
    %443 = vmatpush2.bf16.msra.mxu0 0
    %444 = vmatprep.subr.bf16.mxu0 0
    %445 = vmatpush2.bf16.msra.mxu0 0
    %446 = vmatprep.subr.bf16.mxu0 0
    %447 = vmatpush2.bf16.msra.mxu0 0
    %448 = vmatprep.mubr.bf16.mxu0 0
    %449 = vmatmul.mubr.bf16.gmra.mxu0 %v307
    %v450 = vpop.f32.mrf.mxu0
    %v451 = vadd.f32 %v329, %v450
    %v452 = vpop.f32.mrf.mxu0
    %v453 = vadd.f32 %v333, %v452
    %v454 = vpop.f32.mrf.mxu0
    %v455 = vadd.f32 %v329, %v454
    %v456 = vpop.f32.mrf.mxu0
    %v457 = vadd.f32 %v333, %v456
    %458 = vdwg.mxu0
    %460 = vset.pattern.permute.xlu0 0
    %461 = vperm.xlu0 %460, %v179
    %v462 = vpop.permute.xlu0 %461
    %465 = vset.pattern.permute.xlu0 0
    %466 = vperm.xlu0 %465, %v180
    %v467 = vpop.permute.xlu0 %466
    %v469 = vmul.f32 %v451, %v462
    %v470 = vmul.f32 %v453, %v462
    %v471 = vmul.f32 %v455, %v467
    %v472 = vmul.f32 %v457, %v467
    %v473 = vadd.f32 %v469, %v471
    %v474 = vrot.slane %v473, 4
    %v475 = vadd.f32 %v473, %v474
    %v476 = vrot.slane %v475, 2
    %v477 = vadd.f32 %v475, %v476
    %v478 = vrot.slane %v477, 1
    %v479 = vadd.f32 %v477, %v478
    %v480 = vadd.f32 %v470, %v472
    %v481 = vrot.slane %v480, 4
    %v482 = vadd.f32 %v480, %v481
    %v483 = vrot.slane %v482, 2
    %v484 = vadd.f32 %v482, %v483
    %v485 = vrot.slane %v484, 1
    %v486 = vadd.f32 %v484, %v485
    %v487 = vmul.f32 %v469, %v451
    %v488 = vmul.f32 %v470, %v453
    %v489 = vmul.f32 %v471, %v455
    %v490 = vmul.f32 %v472, %v457
    %v491 = vadd.f32 %v487, %v489
    %v492 = vrot.slane %v491, 4
    %v493 = vadd.f32 %v491, %v492
    %v494 = vrot.slane %v493, 2
    %v495 = vadd.f32 %v493, %v494
    %v496 = vrot.slane %v495, 1
    %v497 = vadd.f32 %v495, %v496
    %v498 = vadd.f32 %v488, %v490
    %v499 = vrot.slane %v498, 4
    %v500 = vadd.f32 %v498, %v499
    %v501 = vrot.slane %v500, 2
    %v502 = vadd.f32 %v500, %v501
    %v503 = vrot.slane %v502, 1
    %v504 = vadd.f32 %v502, %v503
    %v505 = vmul.f32 %v479, %v479
    %v506 = vmul.f32 %v486, %v486
    %v507 = vsub.f32 %v497, %v505
    %v508 = vsub.f32 %v504, %v506
    %v509 = vld [vmem:[#allocation10] sm:$0x3]
    %v510 = vadd.f32 %v507, 1e-05
    %v511 = vadd.f32 %v508, 1e-05
    %v512 = vrsqrt.pop %v510
    %v513 = vrsqrt.pop %v511
    %v516 = vcombine.low %v512, %v513
    %v518 = vunpack.c.l.s4 1966171168
    %v519 = vunpack.c.0.s8 %v518
    %v520 = vlaneseq
    %v521 = vshrl.u32 %v520, 7
    %v522 = vsub.s32 %v519, %v521
    %v523 = vrot.slane %v516, %v522
    %v525 = vunpack.c.l.s4 1966171168
    %v526 = vunpack.c.0.s8 %v525
    %v527 = vlaneseq
    %v528 = vshrl.u32 %v527, 7
    %v529 = vsub.s32 %v526, %v528
    %v530 = vrot.slane %v523, %v529
    %v532 = vmul.f32 %v509, %v530
    %v533 = vld [vmem:[#allocation11] sm:$0x3]
    %v535 = vlaneseq
    %v536 = vshrl.u32 %v535, 7
    %v537 = vsub.s32 0, %v536
    %v538 = vrot.slane %v532, %v537
    %v539 = vlaneseq
    %v540 = vshrl.u32 %v539, 7
    %v541 = vsub.s32 1, %v540
    %v542 = vrot.slane %v532, %v541
    %v545 = vmul.f32 %v479, %v538
    %v546 = vmul.f32 %v486, %v542
    %v549 = vcombine.low %v545, %v546
    %v551 = vunpack.c.l.s4 1966171168
    %v552 = vunpack.c.0.s8 %v551
    %v553 = vlaneseq
    %v554 = vshrl.u32 %v553, 7
    %v555 = vsub.s32 %v552, %v554
    %v556 = vrot.slane %v549, %v555
    %v558 = vunpack.c.l.s4 1966171168
    %v559 = vunpack.c.0.s8 %v558
    %v560 = vlaneseq
    %v561 = vshrl.u32 %v560, 7
    %v562 = vsub.s32 %v559, %v561
    %v563 = vrot.slane %v556, %v562
    %v565 = vsub.f32 %v533, %v563
    %v566 = vmul.f32 %v451, %v538
    %v567 = vmul.f32 %v453, %v542
    %v568 = vmul.f32 %v455, %v538
    %v569 = vmul.f32 %v457, %v542
    %v571 = vlaneseq
    %v572 = vshrl.u32 %v571, 7
    %v573 = vsub.s32 0, %v572
    %v574 = vrot.slane %v565, %v573
    %v575 = vlaneseq
    %v576 = vshrl.u32 %v575, 7
    %v577 = vsub.s32 1, %v576
    %v578 = vrot.slane %v565, %v577
    %v581 = vadd.f32 %v566, %v574
    %v582 = vadd.f32 %v567, %v578
    %v583 = vadd.f32 %v568, %v574
    %v584 = vadd.f32 %v569, %v578
    %vm585 = vcmp.gt.f32.partialorder %v581, 0.0
    %vm586 = vcmp.gt.f32.partialorder %v582, 0.0
    %vm587 = vcmp.gt.f32.partialorder %v583, 0.0
    %vm588 = vcmp.gt.f32.partialorder %v584, 0.0
    %v589 = vmul.f32 %v581, 0.2
    %v590 = vmul.f32 %v582, 0.2
    %v591 = vmul.f32 %v583, 0.2
    %v592 = vmul.f32 %v584, 0.2
    %v593 = vsel %vm585, %v581, %v589
    %v594 = vsel %vm586, %v582, %v590
    %v595 = vsel %vm587, %v583, %v591
    %v596 = vsel %vm588, %v584, %v592
    %v597 = vpack.c.bf16 %v595, %v593
    %v598 = vpack.c.bf16 %v596, %v594
    %v599 = vld [vmem:[#allocation13] sm:$0xff]
    %v600 = vld [vmem:[#allocation13 + $0x8] sm:$0xff]
    %v601 = vld [vmem:[#allocation13 + $0x10] sm:$0xff]
    %v602 = vld [vmem:[#allocation13 + $0x18] sm:$0xff]
    %v603 = vld [vmem:[#allocation13 + $0x20] sm:$0xff]
    %v604 = vld [vmem:[#allocation13 + $0x28] sm:$0xff]
    %v605 = vld [vmem:[#allocation13 + $0x30] sm:$0xff]
    %v606 = vld [vmem:[#allocation13 + $0x38] sm:$0xff]
    %v607 = vld [vmem:[#allocation13 + $0x40] sm:$0xff]
    %v608 = vld [vmem:[#allocation13 + $0x48] sm:$0xff]
    %v609 = vld [vmem:[#allocation13 + $0x50] sm:$0xff]
    %v610 = vld [vmem:[#allocation13 + $0x58] sm:$0xff]
    %v611 = vld [vmem:[#allocation13 + $0x60] sm:$0xff]
    %v612 = vld [vmem:[#allocation13 + $0x68] sm:$0xff]
    %v613 = vld [vmem:[#allocation13 + $0x70] sm:$0xff]
    %v614 = vld [vmem:[#allocation13 + $0x78] sm:$0xff]
    %v615 = vld [vmem:[#allocation13 + $0x80] sm:$0xff]
    %v616 = vld [vmem:[#allocation13 + $0x88] sm:$0xff]
    %v617 = vld [vmem:[#allocation13 + $0x90] sm:$0xff]
    %v618 = vld [vmem:[#allocation13 + $0x98] sm:$0xff]
    %v619 = vld [vmem:[#allocation13 + $0xa0] sm:$0xff]
    %v620 = vld [vmem:[#allocation13 + $0xa8] sm:$0xff]
    %v621 = vld [vmem:[#allocation13 + $0xb0] sm:$0xff]
    %v622 = vld [vmem:[#allocation13 + $0xb8] sm:$0xff]
    %v623 = vld [vmem:[#allocation13 + $0xc0] sm:$0xff]
    %v624 = vld [vmem:[#allocation13 + $0xc8] sm:$0xff]
    %v625 = vld [vmem:[#allocation13 + $0xd0] sm:$0xff]
    %v626 = vld [vmem:[#allocation13 + $0xd8] sm:$0xff]
    %v627 = vld [vmem:[#allocation13 + $0xe0] sm:$0xff]
    %v628 = vld [vmem:[#allocation13 + $0xe8] sm:$0xff]
    %v629 = vld [vmem:[#allocation13 + $0xf0] sm:$0xff]
    %v630 = vld [vmem:[#allocation13 + $0xf8] sm:$0xff]
    %v631 = vld [vmem:[#allocation13 + $0x100] sm:$0xff]
    %v632 = vld [vmem:[#allocation13 + $0x108] sm:$0xff]
    %v633 = vld [vmem:[#allocation13 + $0x110] sm:$0xff]
    %v634 = vld [vmem:[#allocation13 + $0x118] sm:$0xff]
    %v635 = vld [vmem:[#allocation13 + $0x120] sm:$0xff]
    %v636 = vld [vmem:[#allocation13 + $0x128] sm:$0xff]
    %v637 = vld [vmem:[#allocation13 + $0x130] sm:$0xff]
    %v638 = vld [vmem:[#allocation13 + $0x138] sm:$0xff]
    %v639 = vld [vmem:[#allocation13 + $0x140] sm:$0xff]
    %v640 = vld [vmem:[#allocation13 + $0x148] sm:$0xff]
    %v641 = vld [vmem:[#allocation13 + $0x150] sm:$0xff]
    %v642 = vld [vmem:[#allocation13 + $0x158] sm:$0xff]
    %v643 = vld [vmem:[#allocation13 + $0x160] sm:$0xff]
    %v644 = vld [vmem:[#allocation13 + $0x168] sm:$0xff]
    %v645 = vld [vmem:[#allocation13 + $0x170] sm:$0xff]
    %v646 = vld [vmem:[#allocation13 + $0x178] sm:$0xff]
    %v647 = vld [vmem:[#allocation13 + $0x180] sm:$0xff]
    %v648 = vld [vmem:[#allocation13 + $0x188] sm:$0xff]
    %v649 = vld [vmem:[#allocation13 + $0x190] sm:$0xff]
    %v650 = vld [vmem:[#allocation13 + $0x198] sm:$0xff]
    %v651 = vld [vmem:[#allocation13 + $0x1a0] sm:$0xff]
    %v652 = vld [vmem:[#allocation13 + $0x1a8] sm:$0xff]
    %v653 = vld [vmem:[#allocation13 + $0x1b0] sm:$0xff]
    %v654 = vld [vmem:[#allocation13 + $0x1b8] sm:$0xff]
    %v655 = vld [vmem:[#allocation13 + $0x1c0] sm:$0xff]
    %v656 = vld [vmem:[#allocation13 + $0x1c8] sm:$0xff]
    %v657 = vld [vmem:[#allocation13 + $0x1d0] sm:$0xff]
    %v658 = vld [vmem:[#allocation13 + $0x1d8] sm:$0xff]
    %v659 = vld [vmem:[#allocation13 + $0x1e0] sm:$0xff]
    %v660 = vld [vmem:[#allocation13 + $0x1e8] sm:$0xff]
    %v661 = vld [vmem:[#allocation13 + $0x1f0] sm:$0xff]
    %v662 = vld [vmem:[#allocation13 + $0x1f8] sm:$0xff]
    %v663 = vld [vmem:[#allocation14] sm:$0xf]
    %v665 = vlaneseq
    %v666 = vshrl.u32 %v665, 7
    %v667 = vsub.s32 0, %v666
    %v668 = vrot.slane %v663, %v667
    %v669 = vlaneseq
    %v670 = vshrl.u32 %v669, 7
    %v671 = vsub.s32 1, %v670
    %v672 = vrot.slane %v663, %v671
    %v673 = vlaneseq
    %v674 = vshrl.u32 %v673, 7
    %v675 = vsub.s32 2, %v674
    %v676 = vrot.slane %v663, %v675
    %v677 = vlaneseq
    %v678 = vshrl.u32 %v677, 7
    %v679 = vsub.s32 3, %v678
    %v680 = vrot.slane %v663, %v679
    %v749 = vunpack.c.l.b16 %v599
    %v750 = vunpack.c.h.b16 %v599
    %v751 = vunpack.c.l.b16 %v600
    %v752 = vunpack.c.h.b16 %v600
    %v753 = vunpack.c.l.b16 %v601
    %v754 = vunpack.c.h.b16 %v601
    %v755 = vunpack.c.l.b16 %v602
    %v756 = vunpack.c.h.b16 %v602
    %v757 = vunpack.c.l.b16 %v603
    %v758 = vunpack.c.h.b16 %v603
    %v759 = vunpack.c.l.b16 %v604
    %v760 = vunpack.c.h.b16 %v604
    %v761 = vunpack.c.l.b16 %v605
    %v762 = vunpack.c.h.b16 %v605
    %v763 = vunpack.c.l.b16 %v606
    %v764 = vunpack.c.h.b16 %v606
    %v765 = vunpack.c.l.b16 %v607
    %v766 = vunpack.c.h.b16 %v607
    %v767 = vunpack.c.l.b16 %v608
    %v768 = vunpack.c.h.b16 %v608
    %v769 = vunpack.c.l.b16 %v609
    %v770 = vunpack.c.h.b16 %v609
    %v771 = vunpack.c.l.b16 %v610
    %v772 = vunpack.c.h.b16 %v610
    %v773 = vunpack.c.l.b16 %v611
    %v774 = vunpack.c.h.b16 %v611
    %v775 = vunpack.c.l.b16 %v612
    %v776 = vunpack.c.h.b16 %v612
    %v777 = vunpack.c.l.b16 %v613
    %v778 = vunpack.c.h.b16 %v613
    %v779 = vunpack.c.l.b16 %v614
    %v780 = vunpack.c.h.b16 %v614
    %v781 = vunpack.c.l.b16 %v615
    %v782 = vunpack.c.h.b16 %v615
    %v783 = vunpack.c.l.b16 %v616
    %v784 = vunpack.c.h.b16 %v616
    %v785 = vunpack.c.l.b16 %v617
    %v786 = vunpack.c.h.b16 %v617
    %v787 = vunpack.c.l.b16 %v618
    %v788 = vunpack.c.h.b16 %v618
    %v789 = vunpack.c.l.b16 %v619
    %v790 = vunpack.c.h.b16 %v619
    %v791 = vunpack.c.l.b16 %v620
    %v792 = vunpack.c.h.b16 %v620
    %v793 = vunpack.c.l.b16 %v621
    %v794 = vunpack.c.h.b16 %v621
    %v795 = vunpack.c.l.b16 %v622
    %v796 = vunpack.c.h.b16 %v622
    %v797 = vunpack.c.l.b16 %v623
    %v798 = vunpack.c.h.b16 %v623
    %v799 = vunpack.c.l.b16 %v624
    %v800 = vunpack.c.h.b16 %v624
    %v801 = vunpack.c.l.b16 %v625
    %v802 = vunpack.c.h.b16 %v625
    %v803 = vunpack.c.l.b16 %v626
    %v804 = vunpack.c.h.b16 %v626
    %v805 = vunpack.c.l.b16 %v627
    %v806 = vunpack.c.h.b16 %v627
    %v807 = vunpack.c.l.b16 %v628
    %v808 = vunpack.c.h.b16 %v628
    %v809 = vunpack.c.l.b16 %v629
    %v810 = vunpack.c.h.b16 %v629
    %v811 = vunpack.c.l.b16 %v630
    %v812 = vunpack.c.h.b16 %v630
    %v813 = vunpack.c.l.b16 %v631
    %v814 = vunpack.c.h.b16 %v631
    %v815 = vunpack.c.l.b16 %v632
    %v816 = vunpack.c.h.b16 %v632
    %v817 = vunpack.c.l.b16 %v633
    %v818 = vunpack.c.h.b16 %v633
    %v819 = vunpack.c.l.b16 %v634
    %v820 = vunpack.c.h.b16 %v634
    %v821 = vunpack.c.l.b16 %v635
    %v822 = vunpack.c.h.b16 %v635
    %v823 = vunpack.c.l.b16 %v636
    %v824 = vunpack.c.h.b16 %v636
    %v825 = vunpack.c.l.b16 %v637
    %v826 = vunpack.c.h.b16 %v637
    %v827 = vunpack.c.l.b16 %v638
    %v828 = vunpack.c.h.b16 %v638
    %v829 = vunpack.c.l.b16 %v639
    %v830 = vunpack.c.h.b16 %v639
    %v831 = vunpack.c.l.b16 %v640
    %v832 = vunpack.c.h.b16 %v640
    %v833 = vunpack.c.l.b16 %v641
    %v834 = vunpack.c.h.b16 %v641
    %v835 = vunpack.c.l.b16 %v642
    %v836 = vunpack.c.h.b16 %v642
    %v837 = vunpack.c.l.b16 %v643
    %v838 = vunpack.c.h.b16 %v643
    %v839 = vunpack.c.l.b16 %v644
    %v840 = vunpack.c.h.b16 %v644
    %v841 = vunpack.c.l.b16 %v645
    %v842 = vunpack.c.h.b16 %v645
    %v843 = vunpack.c.l.b16 %v646
    %v844 = vunpack.c.h.b16 %v646
    %v845 = vunpack.c.l.b16 %v647
    %v846 = vunpack.c.h.b16 %v647
    %v847 = vunpack.c.l.b16 %v648
    %v848 = vunpack.c.h.b16 %v648
    %v849 = vunpack.c.l.b16 %v649
    %v850 = vunpack.c.h.b16 %v649
    %v851 = vunpack.c.l.b16 %v650
    %v852 = vunpack.c.h.b16 %v650
    %v853 = vunpack.c.l.b16 %v651
    %v854 = vunpack.c.h.b16 %v651
    %v855 = vunpack.c.l.b16 %v652
    %v856 = vunpack.c.h.b16 %v652
    %v857 = vunpack.c.l.b16 %v653
    %v858 = vunpack.c.h.b16 %v653
    %v859 = vunpack.c.l.b16 %v654
    %v860 = vunpack.c.h.b16 %v654
    %v861 = vunpack.c.l.b16 %v655
    %v862 = vunpack.c.h.b16 %v655
    %v863 = vunpack.c.l.b16 %v656
    %v864 = vunpack.c.h.b16 %v656
    %v865 = vunpack.c.l.b16 %v657
    %v866 = vunpack.c.h.b16 %v657
    %v867 = vunpack.c.l.b16 %v658
    %v868 = vunpack.c.h.b16 %v658
    %v869 = vunpack.c.l.b16 %v659
    %v870 = vunpack.c.h.b16 %v659
    %v871 = vunpack.c.l.b16 %v660
    %v872 = vunpack.c.h.b16 %v660
    %v873 = vunpack.c.l.b16 %v661
    %v874 = vunpack.c.h.b16 %v661
    %v875 = vunpack.c.l.b16 %v662
    %v876 = vunpack.c.h.b16 %v662
    %v877 = vpack.c.b16 %v753, %v749
    %v878 = vpack.c.b16 %v754, %v750
    %v879 = vpack.c.b16 %v755, %v751
    %v880 = vpack.c.b16 %v756, %v752
    %v881 = vpack.c.b16 %v761, %v757
    %v882 = vpack.c.b16 %v762, %v758
    %v883 = vpack.c.b16 %v763, %v759
    %v884 = vpack.c.b16 %v764, %v760
    %v885 = vpack.c.b16 %v769, %v765
    %v886 = vpack.c.b16 %v770, %v766
    %v887 = vpack.c.b16 %v771, %v767
    %v888 = vpack.c.b16 %v772, %v768
    %v889 = vpack.c.b16 %v777, %v773
    %v890 = vpack.c.b16 %v778, %v774
    %v891 = vpack.c.b16 %v779, %v775
    %v892 = vpack.c.b16 %v780, %v776
    %v893 = vpack.c.b16 %v785, %v781
    %v894 = vpack.c.b16 %v786, %v782
    %v895 = vpack.c.b16 %v787, %v783
    %v896 = vpack.c.b16 %v788, %v784
    %v897 = vpack.c.b16 %v793, %v789
    %v898 = vpack.c.b16 %v794, %v790
    %v899 = vpack.c.b16 %v795, %v791
    %v900 = vpack.c.b16 %v796, %v792
    %v901 = vpack.c.b16 %v801, %v797
    %v902 = vpack.c.b16 %v802, %v798
    %v903 = vpack.c.b16 %v803, %v799
    %v904 = vpack.c.b16 %v804, %v800
    %v905 = vpack.c.b16 %v809, %v805
    %v906 = vpack.c.b16 %v810, %v806
    %v907 = vpack.c.b16 %v811, %v807
    %v908 = vpack.c.b16 %v812, %v808
    %v909 = vpack.c.b16 %v817, %v813
    %v910 = vpack.c.b16 %v818, %v814
    %v911 = vpack.c.b16 %v819, %v815
    %v912 = vpack.c.b16 %v820, %v816
    %v913 = vpack.c.b16 %v825, %v821
    %v914 = vpack.c.b16 %v826, %v822
    %v915 = vpack.c.b16 %v827, %v823
    %v916 = vpack.c.b16 %v828, %v824
    %v917 = vpack.c.b16 %v833, %v829
    %v918 = vpack.c.b16 %v834, %v830
    %v919 = vpack.c.b16 %v835, %v831
    %v920 = vpack.c.b16 %v836, %v832
    %v921 = vpack.c.b16 %v841, %v837
    %v922 = vpack.c.b16 %v842, %v838
    %v923 = vpack.c.b16 %v843, %v839
    %v924 = vpack.c.b16 %v844, %v840
    %v925 = vpack.c.b16 %v849, %v845
    %v926 = vpack.c.b16 %v850, %v846
    %v927 = vpack.c.b16 %v851, %v847
    %v928 = vpack.c.b16 %v852, %v848
    %v929 = vpack.c.b16 %v857, %v853
    %v930 = vpack.c.b16 %v858, %v854
    %v931 = vpack.c.b16 %v859, %v855
    %v932 = vpack.c.b16 %v860, %v856
    %v933 = vpack.c.b16 %v865, %v861
    %v934 = vpack.c.b16 %v866, %v862
    %v935 = vpack.c.b16 %v867, %v863
    %v936 = vpack.c.b16 %v868, %v864
    %v937 = vpack.c.b16 %v873, %v869
    %v938 = vpack.c.b16 %v874, %v870
    %v939 = vpack.c.b16 %v875, %v871
    %v940 = vpack.c.b16 %v876, %v872
    %1005 = vmatprep.subr.bf16.mxu0 %v906
    %1006 = vmatpush1.bf16.msra.mxu0 %v905
    %1007 = vmatprep.subr.bf16.mxu0 %v902
    %1008 = vmatpush1.bf16.msra.mxu0 %v901
    %1009 = vmatprep.subr.bf16.mxu0 %v898
    %1010 = vmatpush1.bf16.msra.mxu0 %v897
    %1011 = vmatprep.subr.bf16.mxu0 %v894
    %1012 = vmatpush1.bf16.msra.mxu0 %v893
    %1013 = vmatprep.subr.bf16.mxu0 %v890
    %1014 = vmatpush1.bf16.msra.mxu0 %v889
    %1015 = vmatprep.subr.bf16.mxu0 %v886
    %1016 = vmatpush1.bf16.msra.mxu0 %v885
    %1017 = vmatprep.subr.bf16.mxu0 %v882
    %1018 = vmatpush1.bf16.msra.mxu0 %v881
    %1019 = vmatprep.subr.bf16.mxu0 %v878
    %1020 = vmatpush1.bf16.msra.mxu0 %v877
    %1021 = vmatprep.subr.bf16.mxu0 %v938
    %1022 = vmatpush2.bf16.msra.mxu0 %v937
    %1023 = vmatprep.subr.bf16.mxu0 %v934
    %1024 = vmatpush2.bf16.msra.mxu0 %v933
    %1025 = vmatprep.subr.bf16.mxu0 %v930
    %1026 = vmatpush2.bf16.msra.mxu0 %v929
    %1027 = vmatprep.subr.bf16.mxu0 %v926
    %1028 = vmatpush2.bf16.msra.mxu0 %v925
    %1029 = vmatprep.subr.bf16.mxu0 %v922
    %1030 = vmatpush2.bf16.msra.mxu0 %v921
    %1031 = vmatprep.subr.bf16.mxu0 %v918
    %1032 = vmatpush2.bf16.msra.mxu0 %v917
    %1033 = vmatprep.subr.bf16.mxu0 %v914
    %1034 = vmatpush2.bf16.msra.mxu0 %v913
    %1035 = vmatprep.subr.bf16.mxu0 %v910
    %1036 = vmatpush2.bf16.msra.mxu0 %v909
    %1037 = vmatprep.mubr.bf16.mxu0 %v598
    %1038 = vmatmul.mubr.bf16.gmra.mxu0 %v597
    %v1039 = vpop.f32.mrf.mxu0
    %v1040 = vadd.f32 %v668, %v1039
    %v1041 = vpop.f32.mrf.mxu0
    %v1042 = vadd.f32 %v672, %v1041
    %v1043 = vpop.f32.mrf.mxu0
    %v1044 = vadd.f32 %v668, %v1043
    %v1045 = vpop.f32.mrf.mxu0
    %v1046 = vadd.f32 %v672, %v1045
    %1047 = vdwg.mxu0
    %1048 = vmatprep.subr.bf16.mxu0 %v908
    %1049 = vmatpush1.bf16.msra.mxu0 %v907
    %1050 = vmatprep.subr.bf16.mxu0 %v904
    %1051 = vmatpush1.bf16.msra.mxu0 %v903
    %1052 = vmatprep.subr.bf16.mxu0 %v900
    %1053 = vmatpush1.bf16.msra.mxu0 %v899
    %1054 = vmatprep.subr.bf16.mxu0 %v896
    %1055 = vmatpush1.bf16.msra.mxu0 %v895
    %1056 = vmatprep.subr.bf16.mxu0 %v892
    %1057 = vmatpush1.bf16.msra.mxu0 %v891
    %1058 = vmatprep.subr.bf16.mxu0 %v888
    %1059 = vmatpush1.bf16.msra.mxu0 %v887
    %1060 = vmatprep.subr.bf16.mxu0 %v884
    %1061 = vmatpush1.bf16.msra.mxu0 %v883
    %1062 = vmatprep.subr.bf16.mxu0 %v880
    %1063 = vmatpush1.bf16.msra.mxu0 %v879
    %1064 = vmatprep.subr.bf16.mxu0 %v940
    %1065 = vmatpush2.bf16.msra.mxu0 %v939
    %1066 = vmatprep.subr.bf16.mxu0 %v936
    %1067 = vmatpush2.bf16.msra.mxu0 %v935
    %1068 = vmatprep.subr.bf16.mxu0 %v932
    %1069 = vmatpush2.bf16.msra.mxu0 %v931
    %1070 = vmatprep.subr.bf16.mxu0 %v928
    %1071 = vmatpush2.bf16.msra.mxu0 %v927
    %1072 = vmatprep.subr.bf16.mxu0 %v924
    %1073 = vmatpush2.bf16.msra.mxu0 %v923
    %1074 = vmatprep.subr.bf16.mxu0 %v920
    %1075 = vmatpush2.bf16.msra.mxu0 %v919
    %1076 = vmatprep.subr.bf16.mxu0 %v916
    %1077 = vmatpush2.bf16.msra.mxu0 %v915
    %1078 = vmatprep.subr.bf16.mxu0 %v912
    %1079 = vmatpush2.bf16.msra.mxu0 %v911
    %1080 = vmatprep.mubr.bf16.mxu0 %v598
    %1081 = vmatmul.mubr.bf16.gmra.mxu0 %v597
    %v1082 = vpop.f32.mrf.mxu0
    %v1083 = vadd.f32 %v676, %v1082
    %v1084 = vpop.f32.mrf.mxu0
    %v1085 = vadd.f32 %v680, %v1084
    %v1086 = vpop.f32.mrf.mxu0
    %v1087 = vadd.f32 %v676, %v1086
    %v1088 = vpop.f32.mrf.mxu0
    %v1089 = vadd.f32 %v680, %v1088
    %1090 = vdwg.mxu0
    %v1091 = vmul.f32 %v1040, %v462
    %v1092 = vmul.f32 %v1042, %v462
    %v1093 = vmul.f32 %v1083, %v462
    %v1094 = vmul.f32 %v1085, %v462
    %v1095 = vmul.f32 %v1044, %v467
    %v1096 = vmul.f32 %v1046, %v467
    %v1097 = vmul.f32 %v1087, %v467
    %v1098 = vmul.f32 %v1089, %v467
    %v1099 = vadd.f32 %v1091, %v1095
    %v1100 = vrot.slane %v1099, 4
    %v1101 = vadd.f32 %v1099, %v1100
    %v1102 = vrot.slane %v1101, 2
    %v1103 = vadd.f32 %v1101, %v1102
    %v1104 = vrot.slane %v1103, 1
    %v1105 = vadd.f32 %v1103, %v1104
    %v1106 = vadd.f32 %v1092, %v1096
    %v1107 = vrot.slane %v1106, 4
    %v1108 = vadd.f32 %v1106, %v1107
    %v1109 = vrot.slane %v1108, 2
    %v1110 = vadd.f32 %v1108, %v1109
    %v1111 = vrot.slane %v1110, 1
    %v1112 = vadd.f32 %v1110, %v1111
    %v1113 = vadd.f32 %v1093, %v1097
    %v1114 = vrot.slane %v1113, 4
    %v1115 = vadd.f32 %v1113, %v1114
    %v1116 = vrot.slane %v1115, 2
    %v1117 = vadd.f32 %v1115, %v1116
    %v1118 = vrot.slane %v1117, 1
    %v1119 = vadd.f32 %v1117, %v1118
    %v1120 = vadd.f32 %v1094, %v1098
    %v1121 = vrot.slane %v1120, 4
    %v1122 = vadd.f32 %v1120, %v1121
    %v1123 = vrot.slane %v1122, 2
    %v1124 = vadd.f32 %v1122, %v1123
    %v1125 = vrot.slane %v1124, 1
    %v1126 = vadd.f32 %v1124, %v1125
    %v1127 = vmul.f32 %v1091, %v1040
    %v1128 = vmul.f32 %v1092, %v1042
    %v1129 = vmul.f32 %v1093, %v1083
    %v1130 = vmul.f32 %v1094, %v1085
    %v1131 = vmul.f32 %v1095, %v1044
    %v1132 = vmul.f32 %v1096, %v1046
    %v1133 = vmul.f32 %v1097, %v1087
    %v1134 = vmul.f32 %v1098, %v1089
    %v1135 = vadd.f32 %v1127, %v1131
    %v1136 = vrot.slane %v1135, 4
    %v1137 = vadd.f32 %v1135, %v1136
    %v1138 = vrot.slane %v1137, 2
    %v1139 = vadd.f32 %v1137, %v1138
    %v1140 = vrot.slane %v1139, 1
    %v1141 = vadd.f32 %v1139, %v1140
    %v1142 = vadd.f32 %v1128, %v1132
    %v1143 = vrot.slane %v1142, 4
    %v1144 = vadd.f32 %v1142, %v1143
    %v1145 = vrot.slane %v1144, 2
    %v1146 = vadd.f32 %v1144, %v1145
    %v1147 = vrot.slane %v1146, 1
    %v1148 = vadd.f32 %v1146, %v1147
    %v1149 = vadd.f32 %v1129, %v1133
    %v1150 = vrot.slane %v1149, 4
    %v1151 = vadd.f32 %v1149, %v1150
    %v1152 = vrot.slane %v1151, 2
    %v1153 = vadd.f32 %v1151, %v1152
    %v1154 = vrot.slane %v1153, 1
    %v1155 = vadd.f32 %v1153, %v1154
    %v1156 = vadd.f32 %v1130, %v1134
    %v1157 = vrot.slane %v1156, 4
    %v1158 = vadd.f32 %v1156, %v1157
    %v1159 = vrot.slane %v1158, 2
    %v1160 = vadd.f32 %v1158, %v1159
    %v1161 = vrot.slane %v1160, 1
    %v1162 = vadd.f32 %v1160, %v1161
    %v1163 = vmul.f32 %v1105, %v1105
    %v1164 = vmul.f32 %v1112, %v1112
    %v1165 = vmul.f32 %v1119, %v1119
    %v1166 = vmul.f32 %v1126, %v1126
    %v1167 = vsub.f32 %v1141, %v1163
    %v1168 = vsub.f32 %v1148, %v1164
    %v1169 = vsub.f32 %v1155, %v1165
    %v1170 = vsub.f32 %v1162, %v1166
    %v1171 = vld [vmem:[#allocation16] sm:$0xf]
    %v1172 = vadd.f32 %v1167, 1e-05
    %v1173 = vadd.f32 %v1168, 1e-05
    %v1174 = vadd.f32 %v1169, 1e-05
    %v1175 = vadd.f32 %v1170, 1e-05
    %v1176 = vrsqrt.pop %v1172
    %v1177 = vrsqrt.pop %v1173
    %v1178 = vrsqrt.pop %v1174
    %v1179 = vrsqrt.pop %v1175
    %v1184 = vcombine.low %v1176, %v1177
    %v1185 = vcombine.low %v1178, %v1179
    %v1187 = vunpack.c.l.s4 1966171168
    %v1188 = vunpack.c.0.s8 %v1187
    %v1189 = vlaneseq
    %v1190 = vshrl.u32 %v1189, 7
    %v1191 = vsub.s32 %v1188, %v1190
    %v1192 = vrot.slane %v1184, %v1191
    %v1194 = vunpack.c.l.s4 1966171168
    %v1195 = vunpack.c.0.s8 %v1194
    %v1196 = vlaneseq
    %v1197 = vshrl.u32 %v1196, 7
    %v1198 = vsub.s32 %v1195, %v1197
    %v1199 = vrot.slane %v1185, %v1198
    %v1200 = vcombine.low %v1192, %v1199
    %v1202 = vunpack.c.l.s4 1966171168
    %v1203 = vunpack.c.0.s8 %v1202
    %v1204 = vlaneseq
    %v1205 = vshrl.u32 %v1204, 7
    %v1206 = vsub.s32 %v1203, %v1205
    %v1207 = vrot.slane %v1200, %v1206
    %v1209 = vmul.f32 %v1171, %v1207
    %v1210 = vld [vmem:[%s11] sm:$0xf]
    %v1212 = vlaneseq
    %v1213 = vshrl.u32 %v1212, 7
    %v1214 = vsub.s32 0, %v1213
    %v1215 = vrot.slane %v1209, %v1214
    %v1216 = vlaneseq
    %v1217 = vshrl.u32 %v1216, 7
    %v1218 = vsub.s32 1, %v1217
    %v1219 = vrot.slane %v1209, %v1218
    %v1220 = vlaneseq
    %v1221 = vshrl.u32 %v1220, 7
    %v1222 = vsub.s32 2, %v1221
    %v1223 = vrot.slane %v1209, %v1222
    %v1224 = vlaneseq
    %v1225 = vshrl.u32 %v1224, 7
    %v1226 = vsub.s32 3, %v1225
    %v1227 = vrot.slane %v1209, %v1226
    %v1232 = vmul.f32 %v1105, %v1215
    %v1233 = vmul.f32 %v1112, %v1219
    %v1234 = vmul.f32 %v1119, %v1223
    %v1235 = vmul.f32 %v1126, %v1227
    %v1240 = vcombine.low %v1232, %v1233
    %v1241 = vcombine.low %v1234, %v1235
    %v1243 = vunpack.c.l.s4 1966171168
    %v1244 = vunpack.c.0.s8 %v1243
    %v1245 = vlaneseq
    %v1246 = vshrl.u32 %v1245, 7
    %v1247 = vsub.s32 %v1244, %v1246
    %v1248 = vrot.slane %v1240, %v1247
    %v1250 = vunpack.c.l.s4 1966171168
    %v1251 = vunpack.c.0.s8 %v1250
    %v1252 = vlaneseq
    %v1253 = vshrl.u32 %v1252, 7
    %v1254 = vsub.s32 %v1251, %v1253
    %v1255 = vrot.slane %v1241, %v1254
    %v1256 = vcombine.low %v1248, %v1255
    %v1258 = vunpack.c.l.s4 1966171168
    %v1259 = vunpack.c.0.s8 %v1258
    %v1260 = vlaneseq
    %v1261 = vshrl.u32 %v1260, 7
    %v1262 = vsub.s32 %v1259, %v1261
    %v1263 = vrot.slane %v1256, %v1262
    %v1265 = vsub.f32 %v1210, %v1263
    %v1266 = vmul.f32 %v1040, %v1215
    %v1267 = vmul.f32 %v1042, %v1219
    %v1268 = vmul.f32 %v1083, %v1223
    %v1269 = vmul.f32 %v1085, %v1227
    %v1270 = vmul.f32 %v1044, %v1215
    %v1271 = vmul.f32 %v1046, %v1219
    %v1272 = vmul.f32 %v1087, %v1223
    %v1273 = vmul.f32 %v1089, %v1227
    %v1275 = vlaneseq
    %v1276 = vshrl.u32 %v1275, 7
    %v1277 = vsub.s32 0, %v1276
    %v1278 = vrot.slane %v1265, %v1277
    %v1279 = vlaneseq
    %v1280 = vshrl.u32 %v1279, 7
    %v1281 = vsub.s32 1, %v1280
    %v1282 = vrot.slane %v1265, %v1281
    %v1283 = vlaneseq
    %v1284 = vshrl.u32 %v1283, 7
    %v1285 = vsub.s32 2, %v1284
    %v1286 = vrot.slane %v1265, %v1285
    %v1287 = vlaneseq
    %v1288 = vshrl.u32 %v1287, 7
    %v1289 = vsub.s32 3, %v1288
    %v1290 = vrot.slane %v1265, %v1289
    %v1295 = vadd.f32 %v1266, %v1278
    %v1296 = vadd.f32 %v1267, %v1282
    %v1297 = vadd.f32 %v1268, %v1286
    %v1298 = vadd.f32 %v1269, %v1290
    %v1299 = vadd.f32 %v1270, %v1278
    %v1300 = vadd.f32 %v1271, %v1282
    %v1301 = vadd.f32 %v1272, %v1286
    %v1302 = vadd.f32 %v1273, %v1290
    %vm1303 = vcmp.gt.f32.partialorder %v1295, 0.0
    %vm1304 = vcmp.gt.f32.partialorder %v1296, 0.0
    %vm1305 = vcmp.gt.f32.partialorder %v1297, 0.0
    %vm1306 = vcmp.gt.f32.partialorder %v1298, 0.0
    %vm1307 = vcmp.gt.f32.partialorder %v1299, 0.0
    %vm1308 = vcmp.gt.f32.partialorder %v1300, 0.0
    %vm1309 = vcmp.gt.f32.partialorder %v1301, 0.0
    %vm1310 = vcmp.gt.f32.partialorder %v1302, 0.0
    %v1311 = vmul.f32 %v1295, 0.2
    %v1312 = vmul.f32 %v1296, 0.2
    %v1313 = vmul.f32 %v1297, 0.2
    %v1314 = vmul.f32 %v1298, 0.2
    %v1315 = vmul.f32 %v1299, 0.2
    %v1316 = vmul.f32 %v1300, 0.2
    %v1317 = vmul.f32 %v1301, 0.2
    %v1318 = vmul.f32 %v1302, 0.2
    %v1319 = vsel %vm1303, %v1295, %v1311
    %v1320 = vsel %vm1304, %v1296, %v1312
    %v1321 = vsel %vm1305, %v1297, %v1313
    %v1322 = vsel %vm1306, %v1298, %v1314
    %v1323 = vsel %vm1307, %v1299, %v1315
    %v1324 = vsel %vm1308, %v1300, %v1316
    %v1325 = vsel %vm1309, %v1301, %v1317
    %v1326 = vsel %vm1310, %v1302, %v1318
    %v1327 = vpack.c.bf16 %v1323, %v1319
    %v1328 = vpack.c.bf16 %v1324, %v1320
    %v1329 = vpack.c.bf16 %v1325, %v1321
    %v1330 = vpack.c.bf16 %v1326, %v1322
    %v1331 = vld [vmem:[#allocation17] sm:$0xff]
    %v1332 = vld [vmem:[#allocation17 + $0x8] sm:$0xff]
    %v1333 = vld [vmem:[#allocation17 + $0x10] sm:$0xff]
    %v1334 = vld [vmem:[#allocation17 + $0x18] sm:$0xff]
    %v1335 = vld [vmem:[#allocation17 + $0x20] sm:$0xff]
    %v1336 = vld [vmem:[#allocation17 + $0x28] sm:$0xff]
    %v1337 = vld [vmem:[#allocation17 + $0x30] sm:$0xff]
    %v1338 = vld [vmem:[#allocation17 + $0x38] sm:$0xff]
    %v1339 = vld [vmem:[#allocation17 + $0x40] sm:$0xff]
    %v1340 = vld [vmem:[#allocation17 + $0x48] sm:$0xff]
    %v1341 = vld [vmem:[#allocation17 + $0x50] sm:$0xff]
    %v1342 = vld [vmem:[#allocation17 + $0x58] sm:$0xff]
    %v1343 = vld [vmem:[#allocation17 + $0x60] sm:$0xff]
    %v1344 = vld [vmem:[#allocation17 + $0x68] sm:$0xff]
    %v1345 = vld [vmem:[#allocation17 + $0x70] sm:$0xff]
    %v1346 = vld [vmem:[#allocation17 + $0x78] sm:$0xff]
    %v1347 = vld [vmem:[#allocation17 + $0x80] sm:$0xff]
    %v1348 = vld [vmem:[#allocation17 + $0x88] sm:$0xff]
    %v1349 = vld [vmem:[#allocation17 + $0x90] sm:$0xff]
    %v1350 = vld [vmem:[#allocation17 + $0x98] sm:$0xff]
    %v1351 = vld [vmem:[#allocation17 + $0xa0] sm:$0xff]
    %v1352 = vld [vmem:[#allocation17 + $0xa8] sm:$0xff]
    %v1353 = vld [vmem:[#allocation17 + $0xb0] sm:$0xff]
    %v1354 = vld [vmem:[#allocation17 + $0xb8] sm:$0xff]
    %v1355 = vld [vmem:[#allocation17 + $0xc0] sm:$0xff]
    %v1356 = vld [vmem:[#allocation17 + $0xc8] sm:$0xff]
    %v1357 = vld [vmem:[#allocation17 + $0xd0] sm:$0xff]
    %v1358 = vld [vmem:[#allocation17 + $0xd8] sm:$0xff]
    %v1359 = vld [vmem:[#allocation17 + $0xe0] sm:$0xff]
    %v1360 = vld [vmem:[#allocation17 + $0xe8] sm:$0xff]
    %v1361 = vld [vmem:[#allocation17 + $0xf0] sm:$0xff]
    %v1362 = vld [vmem:[#allocation17 + $0xf8] sm:$0xff]
    %v1363 = vld [vmem:[#allocation17 + $0x100] sm:$0xff]
    %v1364 = vld [vmem:[#allocation17 + $0x108] sm:$0xff]
    %v1365 = vld [vmem:[#allocation17 + $0x110] sm:$0xff]
    %v1366 = vld [vmem:[#allocation17 + $0x118] sm:$0xff]
    %v1367 = vld [vmem:[#allocation17 + $0x120] sm:$0xff]
    %v1368 = vld [vmem:[#allocation17 + $0x128] sm:$0xff]
    %v1369 = vld [vmem:[#allocation17 + $0x130] sm:$0xff]
    %v1370 = vld [vmem:[#allocation17 + $0x138] sm:$0xff]
    %v1371 = vld [vmem:[#allocation17 + $0x140] sm:$0xff]
    %v1372 = vld [vmem:[#allocation17 + $0x148] sm:$0xff]
    %v1373 = vld [vmem:[#allocation17 + $0x150] sm:$0xff]
    %v1374 = vld [vmem:[#allocation17 + $0x158] sm:$0xff]
    %v1375 = vld [vmem:[#allocation17 + $0x160] sm:$0xff]
    %v1376 = vld [vmem:[#allocation17 + $0x168] sm:$0xff]
    %v1377 = vld [vmem:[#allocation17 + $0x170] sm:$0xff]
    %v1378 = vld [vmem:[#allocation17 + $0x178] sm:$0xff]
    %v1379 = vld [vmem:[#allocation17 + $0x180] sm:$0xff]
    %v1380 = vld [vmem:[#allocation17 + $0x188] sm:$0xff]
    %v1381 = vld [vmem:[#allocation17 + $0x190] sm:$0xff]
    %v1382 = vld [vmem:[#allocation17 + $0x198] sm:$0xff]
    %v1383 = vld [vmem:[#allocation17 + $0x1a0] sm:$0xff]
    %v1384 = vld [vmem:[#allocation17 + $0x1a8] sm:$0xff]
    %v1385 = vld [vmem:[#allocation17 + $0x1b0] sm:$0xff]
    %v1386 = vld [vmem:[#allocation17 + $0x1b8] sm:$0xff]
    %v1387 = vld [vmem:[#allocation17 + $0x1c0] sm:$0xff]
    %v1388 = vld [vmem:[#allocation17 + $0x1c8] sm:$0xff]
    %v1389 = vld [vmem:[#allocation17 + $0x1d0] sm:$0xff]
    %v1390 = vld [vmem:[#allocation17 + $0x1d8] sm:$0xff]
    %v1391 = vld [vmem:[#allocation17 + $0x1e0] sm:$0xff]
    %v1392 = vld [vmem:[#allocation17 + $0x1e8] sm:$0xff]
    %v1393 = vld [vmem:[#allocation17 + $0x1f0] sm:$0xff]
    %v1394 = vld [vmem:[#allocation17 + $0x1f8] sm:$0xff]
    %v1395 = vld [vmem:[#allocation17 + $0x200] sm:$0xff]
    %v1396 = vld [vmem:[#allocation17 + $0x208] sm:$0xff]
    %v1397 = vld [vmem:[#allocation17 + $0x210] sm:$0xff]
    %v1398 = vld [vmem:[#allocation17 + $0x218] sm:$0xff]
    %v1399 = vld [vmem:[#allocation17 + $0x220] sm:$0xff]
    %v1400 = vld [vmem:[#allocation17 + $0x228] sm:$0xff]
    %v1401 = vld [vmem:[#allocation17 + $0x230] sm:$0xff]
    %v1402 = vld [vmem:[#allocation17 + $0x238] sm:$0xff]
    %v1403 = vld [vmem:[#allocation17 + $0x240] sm:$0xff]
    %v1404 = vld [vmem:[#allocation17 + $0x248] sm:$0xff]
    %v1405 = vld [vmem:[#allocation17 + $0x250] sm:$0xff]
    %v1406 = vld [vmem:[#allocation17 + $0x258] sm:$0xff]
    %v1407 = vld [vmem:[#allocation17 + $0x260] sm:$0xff]
    %v1408 = vld [vmem:[#allocation17 + $0x268] sm:$0xff]
    %v1409 = vld [vmem:[#allocation17 + $0x270] sm:$0xff]
    %v1410 = vld [vmem:[#allocation17 + $0x278] sm:$0xff]
    %v1411 = vld [vmem:[#allocation17 + $0x280] sm:$0xff]
    %v1412 = vld [vmem:[#allocation17 + $0x288] sm:$0xff]
    %v1413 = vld [vmem:[#allocation17 + $0x290] sm:$0xff]
    %v1414 = vld [vmem:[#allocation17 + $0x298] sm:$0xff]
    %v1415 = vld [vmem:[#allocation17 + $0x2a0] sm:$0xff]
    %v1416 = vld [vmem:[#allocation17 + $0x2a8] sm:$0xff]
    %v1417 = vld [vmem:[#allocation17 + $0x2b0] sm:$0xff]
    %v1418 = vld [vmem:[#allocation17 + $0x2b8] sm:$0xff]
    %v1419 = vld [vmem:[#allocation17 + $0x2c0] sm:$0xff]
    %v1420 = vld [vmem:[#allocation17 + $0x2c8] sm:$0xff]
    %v1421 = vld [vmem:[#allocation17 + $0x2d0] sm:$0xff]
    %v1422 = vld [vmem:[#allocation17 + $0x2d8] sm:$0xff]
    %v1423 = vld [vmem:[#allocation17 + $0x2e0] sm:$0xff]
    %v1424 = vld [vmem:[#allocation17 + $0x2e8] sm:$0xff]
    %v1425 = vld [vmem:[#allocation17 + $0x2f0] sm:$0xff]
    %v1426 = vld [vmem:[#allocation17 + $0x2f8] sm:$0xff]
    %v1427 = vld [vmem:[#allocation17 + $0x300] sm:$0xff]
    %v1428 = vld [vmem:[#allocation17 + $0x308] sm:$0xff]
    %v1429 = vld [vmem:[#allocation17 + $0x310] sm:$0xff]
    %v1430 = vld [vmem:[#allocation17 + $0x318] sm:$0xff]
    %v1431 = vld [vmem:[#allocation17 + $0x320] sm:$0xff]
    %v1432 = vld [vmem:[#allocation17 + $0x328] sm:$0xff]
    %v1433 = vld [vmem:[#allocation17 + $0x330] sm:$0xff]
    %v1434 = vld [vmem:[#allocation17 + $0x338] sm:$0xff]
    %v1435 = vld [vmem:[#allocation17 + $0x340] sm:$0xff]
    %v1436 = vld [vmem:[#allocation17 + $0x348] sm:$0xff]
    %v1437 = vld [vmem:[#allocation17 + $0x350] sm:$0xff]
    %v1438 = vld [vmem:[#allocation17 + $0x358] sm:$0xff]
    %v1439 = vld [vmem:[#allocation17 + $0x360] sm:$0xff]
    %v1440 = vld [vmem:[#allocation17 + $0x368] sm:$0xff]
    %v1441 = vld [vmem:[#allocation17 + $0x370] sm:$0xff]
    %v1442 = vld [vmem:[#allocation17 + $0x378] sm:$0xff]
    %v1443 = vld [vmem:[#allocation17 + $0x380] sm:$0xff]
    %v1444 = vld [vmem:[#allocation17 + $0x388] sm:$0xff]
    %v1445 = vld [vmem:[#allocation17 + $0x390] sm:$0xff]
    %v1446 = vld [vmem:[#allocation17 + $0x398] sm:$0xff]
    %v1447 = vld [vmem:[#allocation17 + $0x3a0] sm:$0xff]
    %v1448 = vld [vmem:[#allocation17 + $0x3a8] sm:$0xff]
    %v1449 = vld [vmem:[#allocation17 + $0x3b0] sm:$0xff]
    %v1450 = vld [vmem:[#allocation17 + $0x3b8] sm:$0xff]
    %v1451 = vld [vmem:[#allocation17 + $0x3c0] sm:$0xff]
    %v1452 = vld [vmem:[#allocation17 + $0x3c8] sm:$0xff]
    %v1453 = vld [vmem:[#allocation17 + $0x3d0] sm:$0xff]
    %v1454 = vld [vmem:[#allocation17 + $0x3d8] sm:$0xff]
    %v1455 = vld [vmem:[#allocation17 + $0x3e0] sm:$0xff]
    %v1456 = vld [vmem:[#allocation17 + $0x3e8] sm:$0xff]
    %v1457 = vld [vmem:[#allocation17 + $0x3f0] sm:$0xff]
    %v1458 = vld [vmem:[#allocation17 + $0x3f8] sm:$0xff]
    %v1459 = vld [vmem:[#allocation17 + $0x400] sm:$0xff]
    %v1460 = vld [vmem:[#allocation17 + $0x408] sm:$0xff]
    %v1461 = vld [vmem:[#allocation17 + $0x410] sm:$0xff]
    %v1462 = vld [vmem:[#allocation17 + $0x418] sm:$0xff]
    %v1463 = vld [vmem:[#allocation17 + $0x420] sm:$0xff]
    %v1464 = vld [vmem:[#allocation17 + $0x428] sm:$0xff]
    %v1465 = vld [vmem:[#allocation17 + $0x430] sm:$0xff]
    %v1466 = vld [vmem:[#allocation17 + $0x438] sm:$0xff]
    %v1467 = vld [vmem:[#allocation17 + $0x440] sm:$0xff]
    %v1468 = vld [vmem:[#allocation17 + $0x448] sm:$0xff]
    %v1469 = vld [vmem:[#allocation17 + $0x450] sm:$0xff]
    %v1470 = vld [vmem:[#allocation17 + $0x458] sm:$0xff]
    %v1471 = vld [vmem:[#allocation17 + $0x460] sm:$0xff]
    %v1472 = vld [vmem:[#allocation17 + $0x468] sm:$0xff]
    %v1473 = vld [vmem:[#allocation17 + $0x470] sm:$0xff]
    %v1474 = vld [vmem:[#allocation17 + $0x478] sm:$0xff]
    %v1475 = vld [vmem:[#allocation17 + $0x480] sm:$0xff]
    %v1476 = vld [vmem:[#allocation17 + $0x488] sm:$0xff]
    %v1477 = vld [vmem:[#allocation17 + $0x490] sm:$0xff]
    %v1478 = vld [vmem:[#allocation17 + $0x498] sm:$0xff]
    %v1479 = vld [vmem:[#allocation17 + $0x4a0] sm:$0xff]
    %v1480 = vld [vmem:[#allocation17 + $0x4a8] sm:$0xff]
    %v1481 = vld [vmem:[#allocation17 + $0x4b0] sm:$0xff]
    %v1482 = vld [vmem:[#allocation17 + $0x4b8] sm:$0xff]
    %v1483 = vld [vmem:[#allocation17 + $0x4c0] sm:$0xff]
    %v1484 = vld [vmem:[#allocation17 + $0x4c8] sm:$0xff]
    %v1485 = vld [vmem:[#allocation17 + $0x4d0] sm:$0xff]
    %v1486 = vld [vmem:[#allocation17 + $0x4d8] sm:$0xff]
    %v1487 = vld [vmem:[#allocation17 + $0x4e0] sm:$0xff]
    %v1488 = vld [vmem:[#allocation17 + $0x4e8] sm:$0xff]
    %v1489 = vld [vmem:[#allocation17 + $0x4f0] sm:$0xff]
    %v1490 = vld [vmem:[#allocation17 + $0x4f8] sm:$0xff]
    %v1491 = vld [vmem:[#allocation17 + $0x500] sm:$0xff]
    %v1492 = vld [vmem:[#allocation17 + $0x508] sm:$0xff]
    %v1493 = vld [vmem:[#allocation17 + $0x510] sm:$0xff]
    %v1494 = vld [vmem:[#allocation17 + $0x518] sm:$0xff]
    %v1495 = vld [vmem:[#allocation17 + $0x520] sm:$0xff]
    %v1496 = vld [vmem:[#allocation17 + $0x528] sm:$0xff]
    %v1497 = vld [vmem:[#allocation17 + $0x530] sm:$0xff]
    %v1498 = vld [vmem:[#allocation17 + $0x538] sm:$0xff]
    %v1499 = vld [vmem:[#allocation17 + $0x540] sm:$0xff]
    %v1500 = vld [vmem:[#allocation17 + $0x548] sm:$0xff]
    %v1501 = vld [vmem:[#allocation17 + $0x550] sm:$0xff]
    %v1502 = vld [vmem:[#allocation17 + $0x558] sm:$0xff]
    %v1503 = vld [vmem:[#allocation17 + $0x560] sm:$0xff]
    %v1504 = vld [vmem:[#allocation17 + $0x568] sm:$0xff]
    %v1505 = vld [vmem:[#allocation17 + $0x570] sm:$0xff]
    %v1506 = vld [vmem:[#allocation17 + $0x578] sm:$0xff]
    %v1507 = vld [vmem:[#allocation17 + $0x580] sm:$0xff]
    %v1508 = vld [vmem:[#allocation17 + $0x588] sm:$0xff]
    %v1509 = vld [vmem:[#allocation17 + $0x590] sm:$0xff]
    %v1510 = vld [vmem:[#allocation17 + $0x598] sm:$0xff]
    %v1511 = vld [vmem:[#allocation17 + $0x5a0] sm:$0xff]
    %v1512 = vld [vmem:[#allocation17 + $0x5a8] sm:$0xff]
    %v1513 = vld [vmem:[#allocation17 + $0x5b0] sm:$0xff]
    %v1514 = vld [vmem:[#allocation17 + $0x5b8] sm:$0xff]
    %v1515 = vld [vmem:[#allocation17 + $0x5c0] sm:$0xff]
    %v1516 = vld [vmem:[#allocation17 + $0x5c8] sm:$0xff]
    %v1517 = vld [vmem:[#allocation17 + $0x5d0] sm:$0xff]
    %v1518 = vld [vmem:[#allocation17 + $0x5d8] sm:$0xff]
    %v1519 = vld [vmem:[#allocation17 + $0x5e0] sm:$0xff]
    %v1520 = vld [vmem:[#allocation17 + $0x5e8] sm:$0xff]
    %v1521 = vld [vmem:[#allocation17 + $0x5f0] sm:$0xff]
    %v1522 = vld [vmem:[#allocation17 + $0x5f8] sm:$0xff]
    %v1523 = vld [vmem:[#allocation17 + $0x600] sm:$0xff]
    %v1524 = vld [vmem:[#allocation17 + $0x608] sm:$0xff]
    %v1525 = vld [vmem:[#allocation17 + $0x610] sm:$0xff]
    %v1526 = vld [vmem:[#allocation17 + $0x618] sm:$0xff]
    %v1527 = vld [vmem:[#allocation17 + $0x620] sm:$0xff]
    %v1528 = vld [vmem:[#allocation17 + $0x628] sm:$0xff]
    %v1529 = vld [vmem:[#allocation17 + $0x630] sm:$0xff]
    %v1530 = vld [vmem:[#allocation17 + $0x638] sm:$0xff]
    %v1531 = vld [vmem:[#allocation17 + $0x640] sm:$0xff]
    %v1532 = vld [vmem:[#allocation17 + $0x648] sm:$0xff]
    %v1533 = vld [vmem:[#allocation17 + $0x650] sm:$0xff]
    %v1534 = vld [vmem:[#allocation17 + $0x658] sm:$0xff]
    %v1535 = vld [vmem:[#allocation17 + $0x660] sm:$0xff]
    %v1536 = vld [vmem:[#allocation17 + $0x668] sm:$0xff]
    %v1537 = vld [vmem:[#allocation17 + $0x670] sm:$0xff]
    %v1538 = vld [vmem:[#allocation17 + $0x678] sm:$0xff]
    %v1539 = vld [vmem:[#allocation17 + $0x680] sm:$0xff]
    %v1540 = vld [vmem:[#allocation17 + $0x688] sm:$0xff]
    %v1541 = vld [vmem:[#allocation17 + $0x690] sm:$0xff]
    %v1542 = vld [vmem:[#allocation17 + $0x698] sm:$0xff]
    %v1543 = vld [vmem:[#allocation17 + $0x6a0] sm:$0xff]
    %v1544 = vld [vmem:[#allocation17 + $0x6a8] sm:$0xff]
    %v1545 = vld [vmem:[#allocation17 + $0x6b0] sm:$0xff]
    %v1546 = vld [vmem:[#allocation17 + $0x6b8] sm:$0xff]
    %v1547 = vld [vmem:[#allocation17 + $0x6c0] sm:$0xff]
    %v1548 = vld [vmem:[#allocation17 + $0x6c8] sm:$0xff]
    %v1549 = vld [vmem:[#allocation17 + $0x6d0] sm:$0xff]
    %v1550 = vld [vmem:[#allocation17 + $0x6d8] sm:$0xff]
    %v1551 = vld [vmem:[#allocation17 + $0x6e0] sm:$0xff]
    %v1552 = vld [vmem:[#allocation17 + $0x6e8] sm:$0xff]
    %v1553 = vld [vmem:[#allocation17 + $0x6f0] sm:$0xff]
    %v1554 = vld [vmem:[#allocation17 + $0x6f8] sm:$0xff]
    %v1555 = vld [vmem:[#allocation17 + $0x700] sm:$0xff]
    %v1556 = vld [vmem:[#allocation17 + $0x708] sm:$0xff]
    %v1557 = vld [vmem:[#allocation17 + $0x710] sm:$0xff]
    %v1558 = vld [vmem:[#allocation17 + $0x718] sm:$0xff]
    %v1559 = vld [vmem:[#allocation17 + $0x720] sm:$0xff]
    %v1560 = vld [vmem:[#allocation17 + $0x728] sm:$0xff]
    %v1561 = vld [vmem:[#allocation17 + $0x730] sm:$0xff]
    %v1562 = vld [vmem:[#allocation17 + $0x738] sm:$0xff]
    %v1563 = vld [vmem:[#allocation17 + $0x740] sm:$0xff]
    %v1564 = vld [vmem:[#allocation17 + $0x748] sm:$0xff]
    %v1565 = vld [vmem:[#allocation17 + $0x750] sm:$0xff]
    %v1566 = vld [vmem:[#allocation17 + $0x758] sm:$0xff]
    %v1567 = vld [vmem:[#allocation17 + $0x760] sm:$0xff]
    %v1568 = vld [vmem:[#allocation17 + $0x768] sm:$0xff]
    %v1569 = vld [vmem:[#allocation17 + $0x770] sm:$0xff]
    %v1570 = vld [vmem:[#allocation17 + $0x778] sm:$0xff]
    %v1571 = vld [vmem:[#allocation17 + $0x780] sm:$0xff]
    %v1572 = vld [vmem:[#allocation17 + $0x788] sm:$0xff]
    %v1573 = vld [vmem:[#allocation17 + $0x790] sm:$0xff]
    %v1574 = vld [vmem:[#allocation17 + $0x798] sm:$0xff]
    %v1575 = vld [vmem:[#allocation17 + $0x7a0] sm:$0xff]
    %v1576 = vld [vmem:[#allocation17 + $0x7a8] sm:$0xff]
    %v1577 = vld [vmem:[#allocation17 + $0x7b0] sm:$0xff]
    %v1578 = vld [vmem:[#allocation17 + $0x7b8] sm:$0xff]
    %v1579 = vld [vmem:[#allocation17 + $0x7c0] sm:$0xff]
    %v1580 = vld [vmem:[#allocation17 + $0x7c8] sm:$0xff]
    %v1581 = vld [vmem:[#allocation17 + $0x7d0] sm:$0xff]
    %v1582 = vld [vmem:[#allocation17 + $0x7d8] sm:$0xff]
    %v1583 = vld [vmem:[#allocation17 + $0x7e0] sm:$0xff]
    %v1584 = vld [vmem:[#allocation17 + $0x7e8] sm:$0xff]
    %v1585 = vld [vmem:[#allocation17 + $0x7f0] sm:$0xff]
    %v1586 = vld [vmem:[#allocation17 + $0x7f8] sm:$0xff]
    %v1587 = vld [vmem:[%s13] sm:$0xff]
    %v1589 = vlaneseq
    %v1590 = vshrl.u32 %v1589, 7
    %v1591 = vsub.s32 0, %v1590
    %v1592 = vrot.slane %v1587, %v1591
    %v1593 = vlaneseq
    %v1594 = vshrl.u32 %v1593, 7
    %v1595 = vsub.s32 1, %v1594
    %v1596 = vrot.slane %v1587, %v1595
    %v1597 = vlaneseq
    %v1598 = vshrl.u32 %v1597, 7
    %v1599 = vsub.s32 2, %v1598
    %v1600 = vrot.slane %v1587, %v1599
    %v1601 = vlaneseq
    %v1602 = vshrl.u32 %v1601, 7
    %v1603 = vsub.s32 3, %v1602
    %v1604 = vrot.slane %v1587, %v1603
    %v1605 = vlaneseq
    %v1606 = vshrl.u32 %v1605, 7
    %v1607 = vsub.s32 4, %v1606
    %v1608 = vrot.slane %v1587, %v1607
    %v1609 = vlaneseq
    %v1610 = vshrl.u32 %v1609, 7
    %v1611 = vsub.s32 5, %v1610
    %v1612 = vrot.slane %v1587, %v1611
    %v1613 = vlaneseq
    %v1614 = vshrl.u32 %v1613, 7
    %v1615 = vsub.s32 6, %v1614
    %v1616 = vrot.slane %v1587, %v1615
    %v1617 = vlaneseq
    %v1618 = vshrl.u32 %v1617, 7
    %v1619 = vsub.s32 7, %v1618
    %v1620 = vrot.slane %v1587, %v1619
    %v1885 = vunpack.c.l.b16 %v1331
    %v1886 = vunpack.c.h.b16 %v1331
    %v1887 = vunpack.c.l.b16 %v1332
    %v1888 = vunpack.c.h.b16 %v1332
    %v1889 = vunpack.c.l.b16 %v1333
    %v1890 = vunpack.c.h.b16 %v1333
    %v1891 = vunpack.c.l.b16 %v1334
    %v1892 = vunpack.c.h.b16 %v1334
    %v1893 = vunpack.c.l.b16 %v1335
    %v1894 = vunpack.c.h.b16 %v1335
    %v1895 = vunpack.c.l.b16 %v1336
    %v1896 = vunpack.c.h.b16 %v1336
    %v1897 = vunpack.c.l.b16 %v1337
    %v1898 = vunpack.c.h.b16 %v1337
    %v1899 = vunpack.c.l.b16 %v1338
    %v1900 = vunpack.c.h.b16 %v1338
    %v1901 = vunpack.c.l.b16 %v1339
    %v1902 = vunpack.c.h.b16 %v1339
    %v1903 = vunpack.c.l.b16 %v1340
    %v1904 = vunpack.c.h.b16 %v1340
    %v1905 = vunpack.c.l.b16 %v1341
    %v1906 = vunpack.c.h.b16 %v1341
    %v1907 = vunpack.c.l.b16 %v1342
    %v1908 = vunpack.c.h.b16 %v1342
    %v1909 = vunpack.c.l.b16 %v1343
    %v1910 = vunpack.c.h.b16 %v1343
    %v1911 = vunpack.c.l.b16 %v1344
    %v1912 = vunpack.c.h.b16 %v1344
    %v1913 = vunpack.c.l.b16 %v1345
    %v1914 = vunpack.c.h.b16 %v1345
    %v1915 = vunpack.c.l.b16 %v1346
    %v1916 = vunpack.c.h.b16 %v1346
    %v1917 = vunpack.c.l.b16 %v1347
    %v1918 = vunpack.c.h.b16 %v1347
    %v1919 = vunpack.c.l.b16 %v1348
    %v1920 = vunpack.c.h.b16 %v1348
    %v1921 = vunpack.c.l.b16 %v1349
    %v1922 = vunpack.c.h.b16 %v1349
    %v1923 = vunpack.c.l.b16 %v1350
    %v1924 = vunpack.c.h.b16 %v1350
    %v1925 = vunpack.c.l.b16 %v1351
    %v1926 = vunpack.c.h.b16 %v1351
    %v1927 = vunpack.c.l.b16 %v1352
    %v1928 = vunpack.c.h.b16 %v1352
    %v1929 = vunpack.c.l.b16 %v1353
    %v1930 = vunpack.c.h.b16 %v1353
    %v1931 = vunpack.c.l.b16 %v1354
    %v1932 = vunpack.c.h.b16 %v1354
    %v1933 = vunpack.c.l.b16 %v1355
    %v1934 = vunpack.c.h.b16 %v1355
    %v1935 = vunpack.c.l.b16 %v1356
    %v1936 = vunpack.c.h.b16 %v1356
    %v1937 = vunpack.c.l.b16 %v1357
    %v1938 = vunpack.c.h.b16 %v1357
    %v1939 = vunpack.c.l.b16 %v1358
    %v1940 = vunpack.c.h.b16 %v1358
    %v1941 = vunpack.c.l.b16 %v1359
    %v1942 = vunpack.c.h.b16 %v1359
    %v1943 = vunpack.c.l.b16 %v1360
    %v1944 = vunpack.c.h.b16 %v1360
    %v1945 = vunpack.c.l.b16 %v1361
    %v1946 = vunpack.c.h.b16 %v1361
    %v1947 = vunpack.c.l.b16 %v1362
    %v1948 = vunpack.c.h.b16 %v1362
    %v1949 = vunpack.c.l.b16 %v1363
    %v1950 = vunpack.c.h.b16 %v1363
    %v1951 = vunpack.c.l.b16 %v1364
    %v1952 = vunpack.c.h.b16 %v1364
    %v1953 = vunpack.c.l.b16 %v1365
    %v1954 = vunpack.c.h.b16 %v1365
    %v1955 = vunpack.c.l.b16 %v1366
    %v1956 = vunpack.c.h.b16 %v1366
    %v1957 = vunpack.c.l.b16 %v1367
    %v1958 = vunpack.c.h.b16 %v1367
    %v1959 = vunpack.c.l.b16 %v1368
    %v1960 = vunpack.c.h.b16 %v1368
    %v1961 = vunpack.c.l.b16 %v1369
    %v1962 = vunpack.c.h.b16 %v1369
    %v1963 = vunpack.c.l.b16 %v1370
    %v1964 = vunpack.c.h.b16 %v1370
    %v1965 = vunpack.c.l.b16 %v1371
    %v1966 = vunpack.c.h.b16 %v1371
    %v1967 = vunpack.c.l.b16 %v1372
    %v1968 = vunpack.c.h.b16 %v1372
    %v1969 = vunpack.c.l.b16 %v1373
    %v1970 = vunpack.c.h.b16 %v1373
    %v1971 = vunpack.c.l.b16 %v1374
    %v1972 = vunpack.c.h.b16 %v1374
    %v1973 = vunpack.c.l.b16 %v1375
    %v1974 = vunpack.c.h.b16 %v1375
    %v1975 = vunpack.c.l.b16 %v1376
    %v1976 = vunpack.c.h.b16 %v1376
    %v1977 = vunpack.c.l.b16 %v1377
    %v1978 = vunpack.c.h.b16 %v1377
    %v1979 = vunpack.c.l.b16 %v1378
    %v1980 = vunpack.c.h.b16 %v1378
    %v1981 = vunpack.c.l.b16 %v1379
    %v1982 = vunpack.c.h.b16 %v1379
    %v1983 = vunpack.c.l.b16 %v1380
    %v1984 = vunpack.c.h.b16 %v1380
    %v1985 = vunpack.c.l.b16 %v1381
    %v1986 = vunpack.c.h.b16 %v1381
    %v1987 = vunpack.c.l.b16 %v1382
    %v1988 = vunpack.c.h.b16 %v1382
    %v1989 = vunpack.c.l.b16 %v1383
    %v1990 = vunpack.c.h.b16 %v1383
    %v1991 = vunpack.c.l.b16 %v1384
    %v1992 = vunpack.c.h.b16 %v1384
    %v1993 = vunpack.c.l.b16 %v1385
    %v1994 = vunpack.c.h.b16 %v1385
    %v1995 = vunpack.c.l.b16 %v1386
    %v1996 = vunpack.c.h.b16 %v1386
    %v1997 = vunpack.c.l.b16 %v1387
    %v1998 = vunpack.c.h.b16 %v1387
    %v1999 = vunpack.c.l.b16 %v1388
    %v2000 = vunpack.c.h.b16 %v1388
    %v2001 = vunpack.c.l.b16 %v1389
    %v2002 = vunpack.c.h.b16 %v1389
    %v2003 = vunpack.c.l.b16 %v1390
    %v2004 = vunpack.c.h.b16 %v1390
    %v2005 = vunpack.c.l.b16 %v1391
    %v2006 = vunpack.c.h.b16 %v1391
    %v2007 = vunpack.c.l.b16 %v1392
    %v2008 = vunpack.c.h.b16 %v1392
    %v2009 = vunpack.c.l.b16 %v1393
    %v2010 = vunpack.c.h.b16 %v1393
    %v2011 = vunpack.c.l.b16 %v1394
    %v2012 = vunpack.c.h.b16 %v1394
    %v2013 = vunpack.c.l.b16 %v1395
    %v2014 = vunpack.c.h.b16 %v1395
    %v2015 = vunpack.c.l.b16 %v1396
    %v2016 = vunpack.c.h.b16 %v1396
    %v2017 = vunpack.c.l.b16 %v1397
    %v2018 = vunpack.c.h.b16 %v1397
    %v2019 = vunpack.c.l.b16 %v1398
    %v2020 = vunpack.c.h.b16 %v1398
    %v2021 = vunpack.c.l.b16 %v1399
    %v2022 = vunpack.c.h.b16 %v1399
    %v2023 = vunpack.c.l.b16 %v1400
    %v2024 = vunpack.c.h.b16 %v1400
    %v2025 = vunpack.c.l.b16 %v1401
    %v2026 = vunpack.c.h.b16 %v1401
    %v2027 = vunpack.c.l.b16 %v1402
    %v2028 = vunpack.c.h.b16 %v1402
    %v2029 = vunpack.c.l.b16 %v1403
    %v2030 = vunpack.c.h.b16 %v1403
    %v2031 = vunpack.c.l.b16 %v1404
    %v2032 = vunpack.c.h.b16 %v1404
    %v2033 = vunpack.c.l.b16 %v1405
    %v2034 = vunpack.c.h.b16 %v1405
    %v2035 = vunpack.c.l.b16 %v1406
    %v2036 = vunpack.c.h.b16 %v1406
    %v2037 = vunpack.c.l.b16 %v1407
    %v2038 = vunpack.c.h.b16 %v1407
    %v2039 = vunpack.c.l.b16 %v1408
    %v2040 = vunpack.c.h.b16 %v1408
    %v2041 = vunpack.c.l.b16 %v1409
    %v2042 = vunpack.c.h.b16 %v1409
    %v2043 = vunpack.c.l.b16 %v1410
    %v2044 = vunpack.c.h.b16 %v1410
    %v2045 = vunpack.c.l.b16 %v1411
    %v2046 = vunpack.c.h.b16 %v1411
    %v2047 = vunpack.c.l.b16 %v1412
    %v2048 = vunpack.c.h.b16 %v1412
    %v2049 = vunpack.c.l.b16 %v1413
    %v2050 = vunpack.c.h.b16 %v1413
    %v2051 = vunpack.c.l.b16 %v1414
    %v2052 = vunpack.c.h.b16 %v1414
    %v2053 = vunpack.c.l.b16 %v1415
    %v2054 = vunpack.c.h.b16 %v1415
    %v2055 = vunpack.c.l.b16 %v1416
    %v2056 = vunpack.c.h.b16 %v1416
    %v2057 = vunpack.c.l.b16 %v1417
    %v2058 = vunpack.c.h.b16 %v1417
    %v2059 = vunpack.c.l.b16 %v1418
    %v2060 = vunpack.c.h.b16 %v1418
    %v2061 = vunpack.c.l.b16 %v1419
    %v2062 = vunpack.c.h.b16 %v1419
    %v2063 = vunpack.c.l.b16 %v1420
    %v2064 = vunpack.c.h.b16 %v1420
    %v2065 = vunpack.c.l.b16 %v1421
    %v2066 = vunpack.c.h.b16 %v1421
    %v2067 = vunpack.c.l.b16 %v1422
    %v2068 = vunpack.c.h.b16 %v1422
    %v2069 = vunpack.c.l.b16 %v1423
    %v2070 = vunpack.c.h.b16 %v1423
    %v2071 = vunpack.c.l.b16 %v1424
    %v2072 = vunpack.c.h.b16 %v1424
    %v2073 = vunpack.c.l.b16 %v1425
    %v2074 = vunpack.c.h.b16 %v1425
    %v2075 = vunpack.c.l.b16 %v1426
    %v2076 = vunpack.c.h.b16 %v1426
    %v2077 = vunpack.c.l.b16 %v1427
    %v2078 = vunpack.c.h.b16 %v1427
    %v2079 = vunpack.c.l.b16 %v1428
    %v2080 = vunpack.c.h.b16 %v1428
    %v2081 = vunpack.c.l.b16 %v1429
    %v2082 = vunpack.c.h.b16 %v1429
    %v2083 = vunpack.c.l.b16 %v1430
    %v2084 = vunpack.c.h.b16 %v1430
    %v2085 = vunpack.c.l.b16 %v1431
    %v2086 = vunpack.c.h.b16 %v1431
    %v2087 = vunpack.c.l.b16 %v1432
    %v2088 = vunpack.c.h.b16 %v1432
    %v2089 = vunpack.c.l.b16 %v1433
    %v2090 = vunpack.c.h.b16 %v1433
    %v2091 = vunpack.c.l.b16 %v1434
    %v2092 = vunpack.c.h.b16 %v1434
    %v2093 = vunpack.c.l.b16 %v1435
    %v2094 = vunpack.c.h.b16 %v1435
    %v2095 = vunpack.c.l.b16 %v1436
    %v2096 = vunpack.c.h.b16 %v1436
    %v2097 = vunpack.c.l.b16 %v1437
    %v2098 = vunpack.c.h.b16 %v1437
    %v2099 = vunpack.c.l.b16 %v1438
    %v2100 = vunpack.c.h.b16 %v1438
    %v2101 = vunpack.c.l.b16 %v1439
    %v2102 = vunpack.c.h.b16 %v1439
    %v2103 = vunpack.c.l.b16 %v1440
    %v2104 = vunpack.c.h.b16 %v1440
    %v2105 = vunpack.c.l.b16 %v1441
    %v2106 = vunpack.c.h.b16 %v1441
    %v2107 = vunpack.c.l.b16 %v1442
    %v2108 = vunpack.c.h.b16 %v1442
    %v2109 = vunpack.c.l.b16 %v1443
    %v2110 = vunpack.c.h.b16 %v1443
    %v2111 = vunpack.c.l.b16 %v1444
    %v2112 = vunpack.c.h.b16 %v1444
    %v2113 = vunpack.c.l.b16 %v1445
    %v2114 = vunpack.c.h.b16 %v1445
    %v2115 = vunpack.c.l.b16 %v1446
    %v2116 = vunpack.c.h.b16 %v1446
    %v2117 = vunpack.c.l.b16 %v1447
    %v2118 = vunpack.c.h.b16 %v1447
    %v2119 = vunpack.c.l.b16 %v1448
    %v2120 = vunpack.c.h.b16 %v1448
    %v2121 = vunpack.c.l.b16 %v1449
    %v2122 = vunpack.c.h.b16 %v1449
    %v2123 = vunpack.c.l.b16 %v1450
    %v2124 = vunpack.c.h.b16 %v1450
    %v2125 = vunpack.c.l.b16 %v1451
    %v2126 = vunpack.c.h.b16 %v1451
    %v2127 = vunpack.c.l.b16 %v1452
    %v2128 = vunpack.c.h.b16 %v1452
    %v2129 = vunpack.c.l.b16 %v1453
    %v2130 = vunpack.c.h.b16 %v1453
    %v2131 = vunpack.c.l.b16 %v1454
    %v2132 = vunpack.c.h.b16 %v1454
    %v2133 = vunpack.c.l.b16 %v1455
    %v2134 = vunpack.c.h.b16 %v1455
    %v2135 = vunpack.c.l.b16 %v1456
    %v2136 = vunpack.c.h.b16 %v1456
    %v2137 = vunpack.c.l.b16 %v1457
    %v2138 = vunpack.c.h.b16 %v1457
    %v2139 = vunpack.c.l.b16 %v1458
    %v2140 = vunpack.c.h.b16 %v1458
    %v2141 = vunpack.c.l.b16 %v1459
    %v2142 = vunpack.c.h.b16 %v1459
    %v2143 = vunpack.c.l.b16 %v1460
    %v2144 = vunpack.c.h.b16 %v1460
    %v2145 = vunpack.c.l.b16 %v1461
    %v2146 = vunpack.c.h.b16 %v1461
    %v2147 = vunpack.c.l.b16 %v1462
    %v2148 = vunpack.c.h.b16 %v1462
    %v2149 = vunpack.c.l.b16 %v1463
    %v2150 = vunpack.c.h.b16 %v1463
    %v2151 = vunpack.c.l.b16 %v1464
    %v2152 = vunpack.c.h.b16 %v1464
    %v2153 = vunpack.c.l.b16 %v1465
    %v2154 = vunpack.c.h.b16 %v1465
    %v2155 = vunpack.c.l.b16 %v1466
    %v2156 = vunpack.c.h.b16 %v1466
    %v2157 = vunpack.c.l.b16 %v1467
    %v2158 = vunpack.c.h.b16 %v1467
    %v2159 = vunpack.c.l.b16 %v1468
    %v2160 = vunpack.c.h.b16 %v1468
    %v2161 = vunpack.c.l.b16 %v1469
    %v2162 = vunpack.c.h.b16 %v1469
    %v2163 = vunpack.c.l.b16 %v1470
    %v2164 = vunpack.c.h.b16 %v1470
    %v2165 = vunpack.c.l.b16 %v1471
    %v2166 = vunpack.c.h.b16 %v1471
    %v2167 = vunpack.c.l.b16 %v1472
    %v2168 = vunpack.c.h.b16 %v1472
    %v2169 = vunpack.c.l.b16 %v1473
    %v2170 = vunpack.c.h.b16 %v1473
    %v2171 = vunpack.c.l.b16 %v1474
    %v2172 = vunpack.c.h.b16 %v1474
    %v2173 = vunpack.c.l.b16 %v1475
    %v2174 = vunpack.c.h.b16 %v1475
    %v2175 = vunpack.c.l.b16 %v1476
    %v2176 = vunpack.c.h.b16 %v1476
    %v2177 = vunpack.c.l.b16 %v1477
    %v2178 = vunpack.c.h.b16 %v1477
    %v2179 = vunpack.c.l.b16 %v1478
    %v2180 = vunpack.c.h.b16 %v1478
    %v2181 = vunpack.c.l.b16 %v1479
    %v2182 = vunpack.c.h.b16 %v1479
    %v2183 = vunpack.c.l.b16 %v1480
    %v2184 = vunpack.c.h.b16 %v1480
    %v2185 = vunpack.c.l.b16 %v1481
    %v2186 = vunpack.c.h.b16 %v1481
    %v2187 = vunpack.c.l.b16 %v1482
    %v2188 = vunpack.c.h.b16 %v1482
    %v2189 = vunpack.c.l.b16 %v1483
    %v2190 = vunpack.c.h.b16 %v1483
    %v2191 = vunpack.c.l.b16 %v1484
    %v2192 = vunpack.c.h.b16 %v1484
    %v2193 = vunpack.c.l.b16 %v1485
    %v2194 = vunpack.c.h.b16 %v1485
    %v2195 = vunpack.c.l.b16 %v1486
    %v2196 = vunpack.c.h.b16 %v1486
    %v2197 = vunpack.c.l.b16 %v1487
    %v2198 = vunpack.c.h.b16 %v1487
    %v2199 = vunpack.c.l.b16 %v1488
    %v2200 = vunpack.c.h.b16 %v1488
    %v2201 = vunpack.c.l.b16 %v1489
    %v2202 = vunpack.c.h.b16 %v1489
    %v2203 = vunpack.c.l.b16 %v1490
    %v2204 = vunpack.c.h.b16 %v1490
    %v2205 = vunpack.c.l.b16 %v1491
    %v2206 = vunpack.c.h.b16 %v1491
    %v2207 = vunpack.c.l.b16 %v1492
    %v2208 = vunpack.c.h.b16 %v1492
    %v2209 = vunpack.c.l.b16 %v1493
    %v2210 = vunpack.c.h.b16 %v1493
    %v2211 = vunpack.c.l.b16 %v1494
    %v2212 = vunpack.c.h.b16 %v1494
    %v2213 = vunpack.c.l.b16 %v1495
    %v2214 = vunpack.c.h.b16 %v1495
    %v2215 = vunpack.c.l.b16 %v1496
    %v2216 = vunpack.c.h.b16 %v1496
    %v2217 = vunpack.c.l.b16 %v1497
    %v2218 = vunpack.c.h.b16 %v1497
    %v2219 = vunpack.c.l.b16 %v1498
    %v2220 = vunpack.c.h.b16 %v1498
    %v2221 = vunpack.c.l.b16 %v1499
    %v2222 = vunpack.c.h.b16 %v1499
    %v2223 = vunpack.c.l.b16 %v1500
    %v2224 = vunpack.c.h.b16 %v1500
    %v2225 = vunpack.c.l.b16 %v1501
    %v2226 = vunpack.c.h.b16 %v1501
    %v2227 = vunpack.c.l.b16 %v1502
    %v2228 = vunpack.c.h.b16 %v1502
    %v2229 = vunpack.c.l.b16 %v1503
    %v2230 = vunpack.c.h.b16 %v1503
    %v2231 = vunpack.c.l.b16 %v1504
    %v2232 = vunpack.c.h.b16 %v1504
    %v2233 = vunpack.c.l.b16 %v1505
    %v2234 = vunpack.c.h.b16 %v1505
    %v2235 = vunpack.c.l.b16 %v1506
    %v2236 = vunpack.c.h.b16 %v1506
    %v2237 = vunpack.c.l.b16 %v1507
    %v2238 = vunpack.c.h.b16 %v1507
    %v2239 = vunpack.c.l.b16 %v1508
    %v2240 = vunpack.c.h.b16 %v1508
    %v2241 = vunpack.c.l.b16 %v1509
    %v2242 = vunpack.c.h.b16 %v1509
    %v2243 = vunpack.c.l.b16 %v1510
    %v2244 = vunpack.c.h.b16 %v1510
    %v2245 = vunpack.c.l.b16 %v1511
    %v2246 = vunpack.c.h.b16 %v1511
    %v2247 = vunpack.c.l.b16 %v1512
    %v2248 = vunpack.c.h.b16 %v1512
    %v2249 = vunpack.c.l.b16 %v1513
    %v2250 = vunpack.c.h.b16 %v1513
    %v2251 = vunpack.c.l.b16 %v1514
    %v2252 = vunpack.c.h.b16 %v1514
    %v2253 = vunpack.c.l.b16 %v1515
    %v2254 = vunpack.c.h.b16 %v1515
    %v2255 = vunpack.c.l.b16 %v1516
    %v2256 = vunpack.c.h.b16 %v1516
    %v2257 = vunpack.c.l.b16 %v1517
    %v2258 = vunpack.c.h.b16 %v1517
    %v2259 = vunpack.c.l.b16 %v1518
    %v2260 = vunpack.c.h.b16 %v1518
    %v2261 = vunpack.c.l.b16 %v1519
    %v2262 = vunpack.c.h.b16 %v1519
    %v2263 = vunpack.c.l.b16 %v1520
    %v2264 = vunpack.c.h.b16 %v1520
    %v2265 = vunpack.c.l.b16 %v1521
    %v2266 = vunpack.c.h.b16 %v1521
    %v2267 = vunpack.c.l.b16 %v1522
    %v2268 = vunpack.c.h.b16 %v1522
    %v2269 = vunpack.c.l.b16 %v1523
    %v2270 = vunpack.c.h.b16 %v1523
    %v2271 = vunpack.c.l.b16 %v1524
    %v2272 = vunpack.c.h.b16 %v1524
    %v2273 = vunpack.c.l.b16 %v1525
    %v2274 = vunpack.c.h.b16 %v1525
    %v2275 = vunpack.c.l.b16 %v1526
    %v2276 = vunpack.c.h.b16 %v1526
    %v2277 = vunpack.c.l.b16 %v1527
    %v2278 = vunpack.c.h.b16 %v1527
    %v2279 = vunpack.c.l.b16 %v1528
    %v2280 = vunpack.c.h.b16 %v1528
    %v2281 = vunpack.c.l.b16 %v1529
    %v2282 = vunpack.c.h.b16 %v1529
    %v2283 = vunpack.c.l.b16 %v1530
    %v2284 = vunpack.c.h.b16 %v1530
    %v2285 = vunpack.c.l.b16 %v1531
    %v2286 = vunpack.c.h.b16 %v1531
    %v2287 = vunpack.c.l.b16 %v1532
    %v2288 = vunpack.c.h.b16 %v1532
    %v2289 = vunpack.c.l.b16 %v1533
    %v2290 = vunpack.c.h.b16 %v1533
    %v2291 = vunpack.c.l.b16 %v1534
    %v2292 = vunpack.c.h.b16 %v1534
    %v2293 = vunpack.c.l.b16 %v1535
    %v2294 = vunpack.c.h.b16 %v1535
    %v2295 = vunpack.c.l.b16 %v1536
    %v2296 = vunpack.c.h.b16 %v1536
    %v2297 = vunpack.c.l.b16 %v1537
    %v2298 = vunpack.c.h.b16 %v1537
    %v2299 = vunpack.c.l.b16 %v1538
    %v2300 = vunpack.c.h.b16 %v1538
    %v2301 = vunpack.c.l.b16 %v1539
    %v2302 = vunpack.c.h.b16 %v1539
    %v2303 = vunpack.c.l.b16 %v1540
    %v2304 = vunpack.c.h.b16 %v1540
    %v2305 = vunpack.c.l.b16 %v1541
    %v2306 = vunpack.c.h.b16 %v1541
    %v2307 = vunpack.c.l.b16 %v1542
    %v2308 = vunpack.c.h.b16 %v1542
    %v2309 = vunpack.c.l.b16 %v1543
    %v2310 = vunpack.c.h.b16 %v1543
    %v2311 = vunpack.c.l.b16 %v1544
    %v2312 = vunpack.c.h.b16 %v1544
    %v2313 = vunpack.c.l.b16 %v1545
    %v2314 = vunpack.c.h.b16 %v1545
    %v2315 = vunpack.c.l.b16 %v1546
    %v2316 = vunpack.c.h.b16 %v1546
    %v2317 = vunpack.c.l.b16 %v1547
    %v2318 = vunpack.c.h.b16 %v1547
    %v2319 = vunpack.c.l.b16 %v1548
    %v2320 = vunpack.c.h.b16 %v1548
    %v2321 = vunpack.c.l.b16 %v1549
    %v2322 = vunpack.c.h.b16 %v1549
    %v2323 = vunpack.c.l.b16 %v1550
    %v2324 = vunpack.c.h.b16 %v1550
    %v2325 = vunpack.c.l.b16 %v1551
    %v2326 = vunpack.c.h.b16 %v1551
    %v2327 = vunpack.c.l.b16 %v1552
    %v2328 = vunpack.c.h.b16 %v1552
    %v2329 = vunpack.c.l.b16 %v1553
    %v2330 = vunpack.c.h.b16 %v1553
    %v2331 = vunpack.c.l.b16 %v1554
    %v2332 = vunpack.c.h.b16 %v1554
    %v2333 = vunpack.c.l.b16 %v1555
    %v2334 = vunpack.c.h.b16 %v1555
    %v2335 = vunpack.c.l.b16 %v1556
    %v2336 = vunpack.c.h.b16 %v1556
    %v2337 = vunpack.c.l.b16 %v1557
    %v2338 = vunpack.c.h.b16 %v1557
    %v2339 = vunpack.c.l.b16 %v1558
    %v2340 = vunpack.c.h.b16 %v1558
    %v2341 = vunpack.c.l.b16 %v1559
    %v2342 = vunpack.c.h.b16 %v1559
    %v2343 = vunpack.c.l.b16 %v1560
    %v2344 = vunpack.c.h.b16 %v1560
    %v2345 = vunpack.c.l.b16 %v1561
    %v2346 = vunpack.c.h.b16 %v1561
    %v2347 = vunpack.c.l.b16 %v1562
    %v2348 = vunpack.c.h.b16 %v1562
    %v2349 = vunpack.c.l.b16 %v1563
    %v2350 = vunpack.c.h.b16 %v1563
    %v2351 = vunpack.c.l.b16 %v1564
    %v2352 = vunpack.c.h.b16 %v1564
    %v2353 = vunpack.c.l.b16 %v1565
    %v2354 = vunpack.c.h.b16 %v1565
    %v2355 = vunpack.c.l.b16 %v1566
    %v2356 = vunpack.c.h.b16 %v1566
    %v2357 = vunpack.c.l.b16 %v1567
    %v2358 = vunpack.c.h.b16 %v1567
    %v2359 = vunpack.c.l.b16 %v1568
    %v2360 = vunpack.c.h.b16 %v1568
    %v2361 = vunpack.c.l.b16 %v1569
    %v2362 = vunpack.c.h.b16 %v1569
    %v2363 = vunpack.c.l.b16 %v1570
    %v2364 = vunpack.c.h.b16 %v1570
    %v2365 = vunpack.c.l.b16 %v1571
    %v2366 = vunpack.c.h.b16 %v1571
    %v2367 = vunpack.c.l.b16 %v1572
    %v2368 = vunpack.c.h.b16 %v1572
    %v2369 = vunpack.c.l.b16 %v1573
    %v2370 = vunpack.c.h.b16 %v1573
    %v2371 = vunpack.c.l.b16 %v1574
    %v2372 = vunpack.c.h.b16 %v1574
    %v2373 = vunpack.c.l.b16 %v1575
    %v2374 = vunpack.c.h.b16 %v1575
    %v2375 = vunpack.c.l.b16 %v1576
    %v2376 = vunpack.c.h.b16 %v1576
    %v2377 = vunpack.c.l.b16 %v1577
    %v2378 = vunpack.c.h.b16 %v1577
    %v2379 = vunpack.c.l.b16 %v1578
    %v2380 = vunpack.c.h.b16 %v1578
    %v2381 = vunpack.c.l.b16 %v1579
    %v2382 = vunpack.c.h.b16 %v1579
    %v2383 = vunpack.c.l.b16 %v1580
    %v2384 = vunpack.c.h.b16 %v1580
    %v2385 = vunpack.c.l.b16 %v1581
    %v2386 = vunpack.c.h.b16 %v1581
    %v2387 = vunpack.c.l.b16 %v1582
    %v2388 = vunpack.c.h.b16 %v1582
    %v2389 = vunpack.c.l.b16 %v1583
    %v2390 = vunpack.c.h.b16 %v1583
    %v2391 = vunpack.c.l.b16 %v1584
    %v2392 = vunpack.c.h.b16 %v1584
    %v2393 = vunpack.c.l.b16 %v1585
    %v2394 = vunpack.c.h.b16 %v1585
    %v2395 = vunpack.c.l.b16 %v1586
    %v2396 = vunpack.c.h.b16 %v1586
    %v2397 = vpack.c.b16 %v1893, %v1885
    %v2398 = vpack.c.b16 %v1894, %v1886
    %v2399 = vpack.c.b16 %v1895, %v1887
    %v2400 = vpack.c.b16 %v1896, %v1888
    %v2401 = vpack.c.b16 %v1897, %v1889
    %v2402 = vpack.c.b16 %v1898, %v1890
    %v2403 = vpack.c.b16 %v1899, %v1891
    %v2404 = vpack.c.b16 %v1900, %v1892
    %v2405 = vpack.c.b16 %v1909, %v1901
    %v2406 = vpack.c.b16 %v1910, %v1902
    %v2407 = vpack.c.b16 %v1911, %v1903
    %v2408 = vpack.c.b16 %v1912, %v1904
    %v2409 = vpack.c.b16 %v1913, %v1905
    %v2410 = vpack.c.b16 %v1914, %v1906
    %v2411 = vpack.c.b16 %v1915, %v1907
    %v2412 = vpack.c.b16 %v1916, %v1908
    %v2413 = vpack.c.b16 %v1925, %v1917
    %v2414 = vpack.c.b16 %v1926, %v1918
    %v2415 = vpack.c.b16 %v1927, %v1919
    %v2416 = vpack.c.b16 %v1928, %v1920
    %v2417 = vpack.c.b16 %v1929, %v1921
    %v2418 = vpack.c.b16 %v1930, %v1922
    %v2419 = vpack.c.b16 %v1931, %v1923
    %v2420 = vpack.c.b16 %v1932, %v1924
    %v2421 = vpack.c.b16 %v1941, %v1933
    %v2422 = vpack.c.b16 %v1942, %v1934
    %v2423 = vpack.c.b16 %v1943, %v1935
    %v2424 = vpack.c.b16 %v1944, %v1936
    %v2425 = vpack.c.b16 %v1945, %v1937
    %v2426 = vpack.c.b16 %v1946, %v1938
    %v2427 = vpack.c.b16 %v1947, %v1939
    %v2428 = vpack.c.b16 %v1948, %v1940
    %v2429 = vpack.c.b16 %v1957, %v1949
    %v2430 = vpack.c.b16 %v1958, %v1950
    %v2431 = vpack.c.b16 %v1959, %v1951
    %v2432 = vpack.c.b16 %v1960, %v1952
    %v2433 = vpack.c.b16 %v1961, %v1953
    %v2434 = vpack.c.b16 %v1962, %v1954
    %v2435 = vpack.c.b16 %v1963, %v1955
    %v2436 = vpack.c.b16 %v1964, %v1956
    %v2437 = vpack.c.b16 %v1973, %v1965
    %v2438 = vpack.c.b16 %v1974, %v1966
    %v2439 = vpack.c.b16 %v1975, %v1967
    %v2440 = vpack.c.b16 %v1976, %v1968
    %v2441 = vpack.c.b16 %v1977, %v1969
    %v2442 = vpack.c.b16 %v1978, %v1970
    %v2443 = vpack.c.b16 %v1979, %v1971
    %v2444 = vpack.c.b16 %v1980, %v1972
    %v2445 = vpack.c.b16 %v1989, %v1981
    %v2446 = vpack.c.b16 %v1990, %v1982
    %v2447 = vpack.c.b16 %v1991, %v1983
    %v2448 = vpack.c.b16 %v1992, %v1984
    %v2449 = vpack.c.b16 %v1993, %v1985
    %v2450 = vpack.c.b16 %v1994, %v1986
    %v2451 = vpack.c.b16 %v1995, %v1987
    %v2452 = vpack.c.b16 %v1996, %v1988
    %v2453 = vpack.c.b16 %v2005, %v1997
    %v2454 = vpack.c.b16 %v2006, %v1998
    %v2455 = vpack.c.b16 %v2007, %v1999
    %v2456 = vpack.c.b16 %v2008, %v2000
    %v2457 = vpack.c.b16 %v2009, %v2001
    %v2458 = vpack.c.b16 %v2010, %v2002
    %v2459 = vpack.c.b16 %v2011, %v2003
    %v2460 = vpack.c.b16 %v2012, %v2004
    %v2461 = vpack.c.b16 %v2021, %v2013
    %v2462 = vpack.c.b16 %v2022, %v2014
    %v2463 = vpack.c.b16 %v2023, %v2015
    %v2464 = vpack.c.b16 %v2024, %v2016
    %v2465 = vpack.c.b16 %v2025, %v2017
    %v2466 = vpack.c.b16 %v2026, %v2018
    %v2467 = vpack.c.b16 %v2027, %v2019
    %v2468 = vpack.c.b16 %v2028, %v2020
    %v2469 = vpack.c.b16 %v2037, %v2029
    %v2470 = vpack.c.b16 %v2038, %v2030
    %v2471 = vpack.c.b16 %v2039, %v2031
    %v2472 = vpack.c.b16 %v2040, %v2032
    %v2473 = vpack.c.b16 %v2041, %v2033
    %v2474 = vpack.c.b16 %v2042, %v2034
    %v2475 = vpack.c.b16 %v2043, %v2035
    %v2476 = vpack.c.b16 %v2044, %v2036
    %v2477 = vpack.c.b16 %v2053, %v2045
    %v2478 = vpack.c.b16 %v2054, %v2046
    %v2479 = vpack.c.b16 %v2055, %v2047
    %v2480 = vpack.c.b16 %v2056, %v2048
    %v2481 = vpack.c.b16 %v2057, %v2049
    %v2482 = vpack.c.b16 %v2058, %v2050
    %v2483 = vpack.c.b16 %v2059, %v2051
    %v2484 = vpack.c.b16 %v2060, %v2052
    %v2485 = vpack.c.b16 %v2069, %v2061
    %v2486 = vpack.c.b16 %v2070, %v2062
    %v2487 = vpack.c.b16 %v2071, %v2063
    %v2488 = vpack.c.b16 %v2072, %v2064
    %v2489 = vpack.c.b16 %v2073, %v2065
    %v2490 = vpack.c.b16 %v2074, %v2066
    %v2491 = vpack.c.b16 %v2075, %v2067
    %v2492 = vpack.c.b16 %v2076, %v2068
    %v2493 = vpack.c.b16 %v2085, %v2077
    %v2494 = vpack.c.b16 %v2086, %v2078
    %v2495 = vpack.c.b16 %v2087, %v2079
    %v2496 = vpack.c.b16 %v2088, %v2080
    %v2497 = vpack.c.b16 %v2089, %v2081
    %v2498 = vpack.c.b16 %v2090, %v2082
    %v2499 = vpack.c.b16 %v2091, %v2083
    %v2500 = vpack.c.b16 %v2092, %v2084
    %v2501 = vpack.c.b16 %v2101, %v2093
    %v2502 = vpack.c.b16 %v2102, %v2094
    %v2503 = vpack.c.b16 %v2103, %v2095
    %v2504 = vpack.c.b16 %v2104, %v2096
    %v2505 = vpack.c.b16 %v2105, %v2097
    %v2506 = vpack.c.b16 %v2106, %v2098
    %v2507 = vpack.c.b16 %v2107, %v2099
    %v2508 = vpack.c.b16 %v2108, %v2100
    %v2509 = vpack.c.b16 %v2117, %v2109
    %v2510 = vpack.c.b16 %v2118, %v2110
    %v2511 = vpack.c.b16 %v2119, %v2111
    %v2512 = vpack.c.b16 %v2120, %v2112
    %v2513 = vpack.c.b16 %v2121, %v2113
    %v2514 = vpack.c.b16 %v2122, %v2114
    %v2515 = vpack.c.b16 %v2123, %v2115
    %v2516 = vpack.c.b16 %v2124, %v2116
    %v2517 = vpack.c.b16 %v2133, %v2125
    %v2518 = vpack.c.b16 %v2134, %v2126
    %v2519 = vpack.c.b16 %v2135, %v2127
    %v2520 = vpack.c.b16 %v2136, %v2128
    %v2521 = vpack.c.b16 %v2137, %v2129
    %v2522 = vpack.c.b16 %v2138, %v2130
    %v2523 = vpack.c.b16 %v2139, %v2131
    %v2524 = vpack.c.b16 %v2140, %v2132
    %v2525 = vpack.c.b16 %v2149, %v2141
    %v2526 = vpack.c.b16 %v2150, %v2142
    %v2527 = vpack.c.b16 %v2151, %v2143
    %v2528 = vpack.c.b16 %v2152, %v2144
    %v2529 = vpack.c.b16 %v2153, %v2145
    %v2530 = vpack.c.b16 %v2154, %v2146
    %v2531 = vpack.c.b16 %v2155, %v2147
    %v2532 = vpack.c.b16 %v2156, %v2148
    %v2533 = vpack.c.b16 %v2165, %v2157
    %v2534 = vpack.c.b16 %v2166, %v2158
    %v2535 = vpack.c.b16 %v2167, %v2159
    %v2536 = vpack.c.b16 %v2168, %v2160
    %v2537 = vpack.c.b16 %v2169, %v2161
    %v2538 = vpack.c.b16 %v2170, %v2162
    %v2539 = vpack.c.b16 %v2171, %v2163
    %v2540 = vpack.c.b16 %v2172, %v2164
    %v2541 = vpack.c.b16 %v2181, %v2173
    %v2542 = vpack.c.b16 %v2182, %v2174
    %v2543 = vpack.c.b16 %v2183, %v2175
    %v2544 = vpack.c.b16 %v2184, %v2176
    %v2545 = vpack.c.b16 %v2185, %v2177
    %v2546 = vpack.c.b16 %v2186, %v2178
    %v2547 = vpack.c.b16 %v2187, %v2179
    %v2548 = vpack.c.b16 %v2188, %v2180
    %v2549 = vpack.c.b16 %v2197, %v2189
    %v2550 = vpack.c.b16 %v2198, %v2190
    %v2551 = vpack.c.b16 %v2199, %v2191
    %v2552 = vpack.c.b16 %v2200, %v2192
    %v2553 = vpack.c.b16 %v2201, %v2193
    %v2554 = vpack.c.b16 %v2202, %v2194
    %v2555 = vpack.c.b16 %v2203, %v2195
    %v2556 = vpack.c.b16 %v2204, %v2196
    %v2557 = vpack.c.b16 %v2213, %v2205
    %v2558 = vpack.c.b16 %v2214, %v2206
    %v2559 = vpack.c.b16 %v2215, %v2207
    %v2560 = vpack.c.b16 %v2216, %v2208
    %v2561 = vpack.c.b16 %v2217, %v2209
    %v2562 = vpack.c.b16 %v2218, %v2210
    %v2563 = vpack.c.b16 %v2219, %v2211
    %v2564 = vpack.c.b16 %v2220, %v2212
    %v2565 = vpack.c.b16 %v2229, %v2221
    %v2566 = vpack.c.b16 %v2230, %v2222
    %v2567 = vpack.c.b16 %v2231, %v2223
    %v2568 = vpack.c.b16 %v2232, %v2224
    %v2569 = vpack.c.b16 %v2233, %v2225
    %v2570 = vpack.c.b16 %v2234, %v2226
    %v2571 = vpack.c.b16 %v2235, %v2227
    %v2572 = vpack.c.b16 %v2236, %v2228
    %v2573 = vpack.c.b16 %v2245, %v2237
    %v2574 = vpack.c.b16 %v2246, %v2238
    %v2575 = vpack.c.b16 %v2247, %v2239
    %v2576 = vpack.c.b16 %v2248, %v2240
    %v2577 = vpack.c.b16 %v2249, %v2241
    %v2578 = vpack.c.b16 %v2250, %v2242
    %v2579 = vpack.c.b16 %v2251, %v2243
    %v2580 = vpack.c.b16 %v2252, %v2244
    %v2581 = vpack.c.b16 %v2261, %v2253
    %v2582 = vpack.c.b16 %v2262, %v2254
    %v2583 = vpack.c.b16 %v2263, %v2255
    %v2584 = vpack.c.b16 %v2264, %v2256
    %v2585 = vpack.c.b16 %v2265, %v2257
    %v2586 = vpack.c.b16 %v2266, %v2258
    %v2587 = vpack.c.b16 %v2267, %v2259
    %v2588 = vpack.c.b16 %v2268, %v2260
    %v2589 = vpack.c.b16 %v2277, %v2269
    %v2590 = vpack.c.b16 %v2278, %v2270
    %v2591 = vpack.c.b16 %v2279, %v2271
    %v2592 = vpack.c.b16 %v2280, %v2272
    %v2593 = vpack.c.b16 %v2281, %v2273
    %v2594 = vpack.c.b16 %v2282, %v2274
    %v2595 = vpack.c.b16 %v2283, %v2275
    %v2596 = vpack.c.b16 %v2284, %v2276
    %v2597 = vpack.c.b16 %v2293, %v2285
    %v2598 = vpack.c.b16 %v2294, %v2286
    %v2599 = vpack.c.b16 %v2295, %v2287
    %v2600 = vpack.c.b16 %v2296, %v2288
    %v2601 = vpack.c.b16 %v2297, %v2289
    %v2602 = vpack.c.b16 %v2298, %v2290
    %v2603 = vpack.c.b16 %v2299, %v2291
    %v2604 = vpack.c.b16 %v2300, %v2292
    %v2605 = vpack.c.b16 %v2309, %v2301
    %v2606 = vpack.c.b16 %v2310, %v2302
    %v2607 = vpack.c.b16 %v2311, %v2303
    %v2608 = vpack.c.b16 %v2312, %v2304
    %v2609 = vpack.c.b16 %v2313, %v2305
    %v2610 = vpack.c.b16 %v2314, %v2306
    %v2611 = vpack.c.b16 %v2315, %v2307
    %v2612 = vpack.c.b16 %v2316, %v2308
    %v2613 = vpack.c.b16 %v2325, %v2317
    %v2614 = vpack.c.b16 %v2326, %v2318
    %v2615 = vpack.c.b16 %v2327, %v2319
    %v2616 = vpack.c.b16 %v2328, %v2320
    %v2617 = vpack.c.b16 %v2329, %v2321
    %v2618 = vpack.c.b16 %v2330, %v2322
    %v2619 = vpack.c.b16 %v2331, %v2323
    %v2620 = vpack.c.b16 %v2332, %v2324
    %v2621 = vpack.c.b16 %v2341, %v2333
    %v2622 = vpack.c.b16 %v2342, %v2334
    %v2623 = vpack.c.b16 %v2343, %v2335
    %v2624 = vpack.c.b16 %v2344, %v2336
    %v2625 = vpack.c.b16 %v2345, %v2337
    %v2626 = vpack.c.b16 %v2346, %v2338
    %v2627 = vpack.c.b16 %v2347, %v2339
    %v2628 = vpack.c.b16 %v2348, %v2340
    %v2629 = vpack.c.b16 %v2357, %v2349
    %v2630 = vpack.c.b16 %v2358, %v2350
    %v2631 = vpack.c.b16 %v2359, %v2351
    %v2632 = vpack.c.b16 %v2360, %v2352
    %v2633 = vpack.c.b16 %v2361, %v2353
    %v2634 = vpack.c.b16 %v2362, %v2354
    %v2635 = vpack.c.b16 %v2363, %v2355
    %v2636 = vpack.c.b16 %v2364, %v2356
    %v2637 = vpack.c.b16 %v2373, %v2365
    %v2638 = vpack.c.b16 %v2374, %v2366
    %v2639 = vpack.c.b16 %v2375, %v2367
    %v2640 = vpack.c.b16 %v2376, %v2368
    %v2641 = vpack.c.b16 %v2377, %v2369
    %v2642 = vpack.c.b16 %v2378, %v2370
    %v2643 = vpack.c.b16 %v2379, %v2371
    %v2644 = vpack.c.b16 %v2380, %v2372
    %v2645 = vpack.c.b16 %v2389, %v2381
    %v2646 = vpack.c.b16 %v2390, %v2382
    %v2647 = vpack.c.b16 %v2391, %v2383
    %v2648 = vpack.c.b16 %v2392, %v2384
    %v2649 = vpack.c.b16 %v2393, %v2385
    %v2650 = vpack.c.b16 %v2394, %v2386
    %v2651 = vpack.c.b16 %v2395, %v2387
    %v2652 = vpack.c.b16 %v2396, %v2388
    %2909 = vmatprep.subr.bf16.mxu0 %v2454
    %2910 = vmatpush1.bf16.msra.mxu0 %v2453
    %2911 = vmatprep.subr.bf16.mxu0 %v2446
    %2912 = vmatpush1.bf16.msra.mxu0 %v2445
    %2913 = vmatprep.subr.bf16.mxu0 %v2438
    %2914 = vmatpush1.bf16.msra.mxu0 %v2437
    %2915 = vmatprep.subr.bf16.mxu0 %v2430
    %2916 = vmatpush1.bf16.msra.mxu0 %v2429
    %2917 = vmatprep.subr.bf16.mxu0 %v2422
    %2918 = vmatpush1.bf16.msra.mxu0 %v2421
    %2919 = vmatprep.subr.bf16.mxu0 %v2414
    %2920 = vmatpush1.bf16.msra.mxu0 %v2413
    %2921 = vmatprep.subr.bf16.mxu0 %v2406
    %2922 = vmatpush1.bf16.msra.mxu0 %v2405
    %2923 = vmatprep.subr.bf16.mxu0 %v2398
    %2924 = vmatpush1.bf16.msra.mxu0 %v2397
    %2925 = vmatprep.subr.bf16.mxu0 %v2518
    %2926 = vmatpush2.bf16.msra.mxu0 %v2517
    %2927 = vmatprep.subr.bf16.mxu0 %v2510
    %2928 = vmatpush2.bf16.msra.mxu0 %v2509
    %2929 = vmatprep.subr.bf16.mxu0 %v2502
    %2930 = vmatpush2.bf16.msra.mxu0 %v2501
    %2931 = vmatprep.subr.bf16.mxu0 %v2494
    %2932 = vmatpush2.bf16.msra.mxu0 %v2493
    %2933 = vmatprep.subr.bf16.mxu0 %v2486
    %2934 = vmatpush2.bf16.msra.mxu0 %v2485
    %2935 = vmatprep.subr.bf16.mxu0 %v2478
    %2936 = vmatpush2.bf16.msra.mxu0 %v2477
    %2937 = vmatprep.subr.bf16.mxu0 %v2470
    %2938 = vmatpush2.bf16.msra.mxu0 %v2469
    %2939 = vmatprep.subr.bf16.mxu0 %v2462
    %2940 = vmatpush2.bf16.msra.mxu0 %v2461
    %2941 = vmatprep.mubr.bf16.mxu0 %v1328
    %2942 = vmatmul.mubr.bf16.gmra.mxu0 %v1327
    %v2943 = vpop.f32.mrf.mxu0
    %v2944 = vadd.f32 %v1592, %v2943
    %v2945 = vpop.f32.mrf.mxu0
    %v2946 = vadd.f32 %v1596, %v2945
    %v2947 = vpop.f32.mrf.mxu0
    %v2948 = vadd.f32 %v1592, %v2947
    %v2949 = vpop.f32.mrf.mxu0
    %v2950 = vadd.f32 %v1596, %v2949
    %2951 = vdwg.mxu0
    %2952 = vmatprep.subr.bf16.mxu0 %v2582
    %2953 = vmatpush1.bf16.msra.mxu0 %v2581
    %2954 = vmatprep.subr.bf16.mxu0 %v2574
    %2955 = vmatpush1.bf16.msra.mxu0 %v2573
    %2956 = vmatprep.subr.bf16.mxu0 %v2566
    %2957 = vmatpush1.bf16.msra.mxu0 %v2565
    %2958 = vmatprep.subr.bf16.mxu0 %v2558
    %2959 = vmatpush1.bf16.msra.mxu0 %v2557
    %2960 = vmatprep.subr.bf16.mxu0 %v2550
    %2961 = vmatpush1.bf16.msra.mxu0 %v2549
    %2962 = vmatprep.subr.bf16.mxu0 %v2542
    %2963 = vmatpush1.bf16.msra.mxu0 %v2541
    %2964 = vmatprep.subr.bf16.mxu0 %v2534
    %2965 = vmatpush1.bf16.msra.mxu0 %v2533
    %2966 = vmatprep.subr.bf16.mxu0 %v2526
    %2967 = vmatpush1.bf16.msra.mxu0 %v2525
    %2968 = vmatprep.subr.bf16.mxu0 %v2646
    %2969 = vmatpush2.bf16.msra.mxu0 %v2645
    %2970 = vmatprep.subr.bf16.mxu0 %v2638
    %2971 = vmatpush2.bf16.msra.mxu0 %v2637
    %2972 = vmatprep.subr.bf16.mxu0 %v2630
    %2973 = vmatpush2.bf16.msra.mxu0 %v2629
    %2974 = vmatprep.subr.bf16.mxu0 %v2622
    %2975 = vmatpush2.bf16.msra.mxu0 %v2621
    %2976 = vmatprep.subr.bf16.mxu0 %v2614
    %2977 = vmatpush2.bf16.msra.mxu0 %v2613
    %2978 = vmatprep.subr.bf16.mxu0 %v2606
    %2979 = vmatpush2.bf16.msra.mxu0 %v2605
    %2980 = vmatprep.subr.bf16.mxu0 %v2598
    %2981 = vmatpush2.bf16.msra.mxu0 %v2597
    %2982 = vmatprep.subr.bf16.mxu0 %v2590
    %2983 = vmatpush2.bf16.msra.mxu0 %v2589
    %2984 = vmatprep.mubr.bf16.mxu0 %v1330
    %2985 = vmatmul.mubr.bf16.gmra.mxu0 %v1329
    %v2986 = vpop.f32.mrf.mxu0
    %v2987 = vadd.f32 %v2944, %v2986
    %v2988 = vpop.f32.mrf.mxu0
    %v2989 = vadd.f32 %v2946, %v2988
    %v2990 = vpop.f32.mrf.mxu0
    %v2991 = vadd.f32 %v2948, %v2990
    %v2992 = vpop.f32.mrf.mxu0
    %v2993 = vadd.f32 %v2950, %v2992
    %2994 = vdwg.mxu0
    %2995 = vmatprep.subr.bf16.mxu0 %v2456
    %2996 = vmatpush1.bf16.msra.mxu0 %v2455
    %2997 = vmatprep.subr.bf16.mxu0 %v2448
    %2998 = vmatpush1.bf16.msra.mxu0 %v2447
    %2999 = vmatprep.subr.bf16.mxu0 %v2440
    %3000 = vmatpush1.bf16.msra.mxu0 %v2439
    %3001 = vmatprep.subr.bf16.mxu0 %v2432
    %3002 = vmatpush1.bf16.msra.mxu0 %v2431
    %3003 = vmatprep.subr.bf16.mxu0 %v2424
    %3004 = vmatpush1.bf16.msra.mxu0 %v2423
    %3005 = vmatprep.subr.bf16.mxu0 %v2416
    %3006 = vmatpush1.bf16.msra.mxu0 %v2415
    %3007 = vmatprep.subr.bf16.mxu0 %v2408
    %3008 = vmatpush1.bf16.msra.mxu0 %v2407
    %3009 = vmatprep.subr.bf16.mxu0 %v2400
    %3010 = vmatpush1.bf16.msra.mxu0 %v2399
    %3011 = vmatprep.subr.bf16.mxu0 %v2520
    %3012 = vmatpush2.bf16.msra.mxu0 %v2519
    %3013 = vmatprep.subr.bf16.mxu0 %v2512
    %3014 = vmatpush2.bf16.msra.mxu0 %v2511
    %3015 = vmatprep.subr.bf16.mxu0 %v2504
    %3016 = vmatpush2.bf16.msra.mxu0 %v2503
    %3017 = vmatprep.subr.bf16.mxu0 %v2496
    %3018 = vmatpush2.bf16.msra.mxu0 %v2495
    %3019 = vmatprep.subr.bf16.mxu0 %v2488
    %3020 = vmatpush2.bf16.msra.mxu0 %v2487
    %3021 = vmatprep.subr.bf16.mxu0 %v2480
    %3022 = vmatpush2.bf16.msra.mxu0 %v2479
    %3023 = vmatprep.subr.bf16.mxu0 %v2472
    %3024 = vmatpush2.bf16.msra.mxu0 %v2471
    %3025 = vmatprep.subr.bf16.mxu0 %v2464
    %3026 = vmatpush2.bf16.msra.mxu0 %v2463
    %3027 = vmatprep.mubr.bf16.mxu0 %v1328
    %3028 = vmatmul.mubr.bf16.gmra.mxu0 %v1327
    %v3029 = vpop.f32.mrf.mxu0
    %v3030 = vadd.f32 %v1600, %v3029
    %v3031 = vpop.f32.mrf.mxu0
    %v3032 = vadd.f32 %v1604, %v3031
    %v3033 = vpop.f32.mrf.mxu0
    %v3034 = vadd.f32 %v1600, %v3033
    %v3035 = vpop.f32.mrf.mxu0
    %v3036 = vadd.f32 %v1604, %v3035
    %3037 = vdwg.mxu0
    %3038 = vmatprep.subr.bf16.mxu0 %v2584
    %3039 = vmatpush1.bf16.msra.mxu0 %v2583
    %3040 = vmatprep.subr.bf16.mxu0 %v2576
    %3041 = vmatpush1.bf16.msra.mxu0 %v2575
    %3042 = vmatprep.subr.bf16.mxu0 %v2568
    %3043 = vmatpush1.bf16.msra.mxu0 %v2567
    %3044 = vmatprep.subr.bf16.mxu0 %v2560
    %3045 = vmatpush1.bf16.msra.mxu0 %v2559
    %3046 = vmatprep.subr.bf16.mxu0 %v2552
    %3047 = vmatpush1.bf16.msra.mxu0 %v2551
    %3048 = vmatprep.subr.bf16.mxu0 %v2544
    %3049 = vmatpush1.bf16.msra.mxu0 %v2543
    %3050 = vmatprep.subr.bf16.mxu0 %v2536
    %3051 = vmatpush1.bf16.msra.mxu0 %v2535
    %3052 = vmatprep.subr.bf16.mxu0 %v2528
    %3053 = vmatpush1.bf16.msra.mxu0 %v2527
    %3054 = vmatprep.subr.bf16.mxu0 %v2648
    %3055 = vmatpush2.bf16.msra.mxu0 %v2647
    %3056 = vmatprep.subr.bf16.mxu0 %v2640
    %3057 = vmatpush2.bf16.msra.mxu0 %v2639
    %3058 = vmatprep.subr.bf16.mxu0 %v2632
    %3059 = vmatpush2.bf16.msra.mxu0 %v2631
    %3060 = vmatprep.subr.bf16.mxu0 %v2624
    %3061 = vmatpush2.bf16.msra.mxu0 %v2623
    %3062 = vmatprep.subr.bf16.mxu0 %v2616
    %3063 = vmatpush2.bf16.msra.mxu0 %v2615
    %3064 = vmatprep.subr.bf16.mxu0 %v2608
    %3065 = vmatpush2.bf16.msra.mxu0 %v2607
    %3066 = vmatprep.subr.bf16.mxu0 %v2600
    %3067 = vmatpush2.bf16.msra.mxu0 %v2599
    %3068 = vmatprep.subr.bf16.mxu0 %v2592
    %3069 = vmatpush2.bf16.msra.mxu0 %v2591
    %3070 = vmatprep.mubr.bf16.mxu0 %v1330
    %3071 = vmatmul.mubr.bf16.gmra.mxu0 %v1329
    %v3072 = vpop.f32.mrf.mxu0
    %v3073 = vadd.f32 %v3030, %v3072
    %v3074 = vpop.f32.mrf.mxu0
    %v3075 = vadd.f32 %v3032, %v3074
    %v3076 = vpop.f32.mrf.mxu0
    %v3077 = vadd.f32 %v3034, %v3076
    %v3078 = vpop.f32.mrf.mxu0
    %v3079 = vadd.f32 %v3036, %v3078
    %3080 = vdwg.mxu0
    %3081 = vmatprep.subr.bf16.mxu0 %v2458
    %3082 = vmatpush1.bf16.msra.mxu0 %v2457
    %3083 = vmatprep.subr.bf16.mxu0 %v2450
    %3084 = vmatpush1.bf16.msra.mxu0 %v2449
    %3085 = vmatprep.subr.bf16.mxu0 %v2442
    %3086 = vmatpush1.bf16.msra.mxu0 %v2441
    %3087 = vmatprep.subr.bf16.mxu0 %v2434
    %3088 = vmatpush1.bf16.msra.mxu0 %v2433
    %3089 = vmatprep.subr.bf16.mxu0 %v2426
    %3090 = vmatpush1.bf16.msra.mxu0 %v2425
    %3091 = vmatprep.subr.bf16.mxu0 %v2418
    %3092 = vmatpush1.bf16.msra.mxu0 %v2417
    %3093 = vmatprep.subr.bf16.mxu0 %v2410
    %3094 = vmatpush1.bf16.msra.mxu0 %v2409
    %3095 = vmatprep.subr.bf16.mxu0 %v2402
    %3096 = vmatpush1.bf16.msra.mxu0 %v2401
    %3097 = vmatprep.subr.bf16.mxu0 %v2522
    %3098 = vmatpush2.bf16.msra.mxu0 %v2521
    %3099 = vmatprep.subr.bf16.mxu0 %v2514
    %3100 = vmatpush2.bf16.msra.mxu0 %v2513
    %3101 = vmatprep.subr.bf16.mxu0 %v2506
    %3102 = vmatpush2.bf16.msra.mxu0 %v2505
    %3103 = vmatprep.subr.bf16.mxu0 %v2498
    %3104 = vmatpush2.bf16.msra.mxu0 %v2497
    %3105 = vmatprep.subr.bf16.mxu0 %v2490
    %3106 = vmatpush2.bf16.msra.mxu0 %v2489
    %3107 = vmatprep.subr.bf16.mxu0 %v2482
    %3108 = vmatpush2.bf16.msra.mxu0 %v2481
    %3109 = vmatprep.subr.bf16.mxu0 %v2474
    %3110 = vmatpush2.bf16.msra.mxu0 %v2473
    %3111 = vmatprep.subr.bf16.mxu0 %v2466
    %3112 = vmatpush2.bf16.msra.mxu0 %v2465
    %3113 = vmatprep.mubr.bf16.mxu0 %v1328
    %3114 = vmatmul.mubr.bf16.gmra.mxu0 %v1327
    %v3115 = vpop.f32.mrf.mxu0
    %v3116 = vadd.f32 %v1608, %v3115
    %v3117 = vpop.f32.mrf.mxu0
    %v3118 = vadd.f32 %v1612, %v3117
    %v3119 = vpop.f32.mrf.mxu0
    %v3120 = vadd.f32 %v1608, %v3119
    %v3121 = vpop.f32.mrf.mxu0
    %v3122 = vadd.f32 %v1612, %v3121
    %3123 = vdwg.mxu0
    %3124 = vmatprep.subr.bf16.mxu0 %v2586
    %3125 = vmatpush1.bf16.msra.mxu0 %v2585
    %3126 = vmatprep.subr.bf16.mxu0 %v2578
    %3127 = vmatpush1.bf16.msra.mxu0 %v2577
    %3128 = vmatprep.subr.bf16.mxu0 %v2570
    %3129 = vmatpush1.bf16.msra.mxu0 %v2569
    %3130 = vmatprep.subr.bf16.mxu0 %v2562
    %3131 = vmatpush1.bf16.msra.mxu0 %v2561
    %3132 = vmatprep.subr.bf16.mxu0 %v2554
    %3133 = vmatpush1.bf16.msra.mxu0 %v2553
    %3134 = vmatprep.subr.bf16.mxu0 %v2546
    %3135 = vmatpush1.bf16.msra.mxu0 %v2545
    %3136 = vmatprep.subr.bf16.mxu0 %v2538
    %3137 = vmatpush1.bf16.msra.mxu0 %v2537
    %3138 = vmatprep.subr.bf16.mxu0 %v2530
    %3139 = vmatpush1.bf16.msra.mxu0 %v2529
    %3140 = vmatprep.subr.bf16.mxu0 %v2650
    %3141 = vmatpush2.bf16.msra.mxu0 %v2649
    %3142 = vmatprep.subr.bf16.mxu0 %v2642
    %3143 = vmatpush2.bf16.msra.mxu0 %v2641
    %3144 = vmatprep.subr.bf16.mxu0 %v2634
    %3145 = vmatpush2.bf16.msra.mxu0 %v2633
    %3146 = vmatprep.subr.bf16.mxu0 %v2626
    %3147 = vmatpush2.bf16.msra.mxu0 %v2625
    %3148 = vmatprep.subr.bf16.mxu0 %v2618
    %3149 = vmatpush2.bf16.msra.mxu0 %v2617
    %3150 = vmatprep.subr.bf16.mxu0 %v2610
    %3151 = vmatpush2.bf16.msra.mxu0 %v2609
    %3152 = vmatprep.subr.bf16.mxu0 %v2602
    %3153 = vmatpush2.bf16.msra.mxu0 %v2601
    %3154 = vmatprep.subr.bf16.mxu0 %v2594
    %3155 = vmatpush2.bf16.msra.mxu0 %v2593
    %3156 = vmatprep.mubr.bf16.mxu0 %v1330
    %3157 = vmatmul.mubr.bf16.gmra.mxu0 %v1329
    %v3158 = vpop.f32.mrf.mxu0
    %v3159 = vadd.f32 %v3116, %v3158
    %v3160 = vpop.f32.mrf.mxu0
    %v3161 = vadd.f32 %v3118, %v3160
    %v3162 = vpop.f32.mrf.mxu0
    %v3163 = vadd.f32 %v3120, %v3162
    %v3164 = vpop.f32.mrf.mxu0
    %v3165 = vadd.f32 %v3122, %v3164
    %3166 = vdwg.mxu0
    %3167 = vmatprep.subr.bf16.mxu0 %v2460
    %3168 = vmatpush1.bf16.msra.mxu0 %v2459
    %3169 = vmatprep.subr.bf16.mxu0 %v2452
    %3170 = vmatpush1.bf16.msra.mxu0 %v2451
    %3171 = vmatprep.subr.bf16.mxu0 %v2444
    %3172 = vmatpush1.bf16.msra.mxu0 %v2443
    %3173 = vmatprep.subr.bf16.mxu0 %v2436
    %3174 = vmatpush1.bf16.msra.mxu0 %v2435
    %3175 = vmatprep.subr.bf16.mxu0 %v2428
    %3176 = vmatpush1.bf16.msra.mxu0 %v2427
    %3177 = vmatprep.subr.bf16.mxu0 %v2420
    %3178 = vmatpush1.bf16.msra.mxu0 %v2419
    %3179 = vmatprep.subr.bf16.mxu0 %v2412
    %3180 = vmatpush1.bf16.msra.mxu0 %v2411
    %3181 = vmatprep.subr.bf16.mxu0 %v2404
    %3182 = vmatpush1.bf16.msra.mxu0 %v2403
    %3183 = vmatprep.subr.bf16.mxu0 %v2524
    %3184 = vmatpush2.bf16.msra.mxu0 %v2523
    %3185 = vmatprep.subr.bf16.mxu0 %v2516
    %3186 = vmatpush2.bf16.msra.mxu0 %v2515
    %3187 = vmatprep.subr.bf16.mxu0 %v2508
    %3188 = vmatpush2.bf16.msra.mxu0 %v2507
    %3189 = vmatprep.subr.bf16.mxu0 %v2500
    %3190 = vmatpush2.bf16.msra.mxu0 %v2499
    %3191 = vmatprep.subr.bf16.mxu0 %v2492
    %3192 = vmatpush2.bf16.msra.mxu0 %v2491
    %3193 = vmatprep.subr.bf16.mxu0 %v2484
    %3194 = vmatpush2.bf16.msra.mxu0 %v2483
    %3195 = vmatprep.subr.bf16.mxu0 %v2476
    %3196 = vmatpush2.bf16.msra.mxu0 %v2475
    %3197 = vmatprep.subr.bf16.mxu0 %v2468
    %3198 = vmatpush2.bf16.msra.mxu0 %v2467
    %3199 = vmatprep.mubr.bf16.mxu0 %v1328
    %3200 = vmatmul.mubr.bf16.gmra.mxu0 %v1327
    %v3201 = vpop.f32.mrf.mxu0
    %v3202 = vadd.f32 %v1616, %v3201
    %v3203 = vpop.f32.mrf.mxu0
    %v3204 = vadd.f32 %v1620, %v3203
    %v3205 = vpop.f32.mrf.mxu0
    %v3206 = vadd.f32 %v1616, %v3205
    %v3207 = vpop.f32.mrf.mxu0
    %v3208 = vadd.f32 %v1620, %v3207
    %3209 = vdwg.mxu0
    %3210 = vmatprep.subr.bf16.mxu0 %v2588
    %3211 = vmatpush1.bf16.msra.mxu0 %v2587
    %3212 = vmatprep.subr.bf16.mxu0 %v2580
    %3213 = vmatpush1.bf16.msra.mxu0 %v2579
    %3214 = vmatprep.subr.bf16.mxu0 %v2572
    %3215 = vmatpush1.bf16.msra.mxu0 %v2571
    %3216 = vmatprep.subr.bf16.mxu0 %v2564
    %3217 = vmatpush1.bf16.msra.mxu0 %v2563
    %3218 = vmatprep.subr.bf16.mxu0 %v2556
    %3219 = vmatpush1.bf16.msra.mxu0 %v2555
    %3220 = vmatprep.subr.bf16.mxu0 %v2548
    %3221 = vmatpush1.bf16.msra.mxu0 %v2547
    %3222 = vmatprep.subr.bf16.mxu0 %v2540
    %3223 = vmatpush1.bf16.msra.mxu0 %v2539
    %3224 = vmatprep.subr.bf16.mxu0 %v2532
    %3225 = vmatpush1.bf16.msra.mxu0 %v2531
    %3226 = vmatprep.subr.bf16.mxu0 %v2652
    %3227 = vmatpush2.bf16.msra.mxu0 %v2651
    %3228 = vmatprep.subr.bf16.mxu0 %v2644
    %3229 = vmatpush2.bf16.msra.mxu0 %v2643
    %3230 = vmatprep.subr.bf16.mxu0 %v2636
    %3231 = vmatpush2.bf16.msra.mxu0 %v2635
    %3232 = vmatprep.subr.bf16.mxu0 %v2628
    %3233 = vmatpush2.bf16.msra.mxu0 %v2627
    %3234 = vmatprep.subr.bf16.mxu0 %v2620
    %3235 = vmatpush2.bf16.msra.mxu0 %v2619
    %3236 = vmatprep.subr.bf16.mxu0 %v2612
    %3237 = vmatpush2.bf16.msra.mxu0 %v2611
    %3238 = vmatprep.subr.bf16.mxu0 %v2604
    %3239 = vmatpush2.bf16.msra.mxu0 %v2603
    %3240 = vmatprep.subr.bf16.mxu0 %v2596
    %3241 = vmatpush2.bf16.msra.mxu0 %v2595
    %3242 = vmatprep.mubr.bf16.mxu0 %v1330
    %3243 = vmatmul.mubr.bf16.gmra.mxu0 %v1329
    %v3244 = vpop.f32.mrf.mxu0
    %v3245 = vadd.f32 %v3202, %v3244
    %v3246 = vpop.f32.mrf.mxu0
    %v3247 = vadd.f32 %v3204, %v3246
    %v3248 = vpop.f32.mrf.mxu0
    %v3249 = vadd.f32 %v3206, %v3248
    %v3250 = vpop.f32.mrf.mxu0
    %v3251 = vadd.f32 %v3208, %v3250
    %3252 = vdwg.mxu0
    %v3253 = vmul.f32 %v2987, %v462
    %v3254 = vmul.f32 %v2989, %v462
    %v3255 = vmul.f32 %v3073, %v462
    %v3256 = vmul.f32 %v3075, %v462
    %v3257 = vmul.f32 %v3159, %v462
    %v3258 = vmul.f32 %v3161, %v462
    %v3259 = vmul.f32 %v3245, %v462
    %v3260 = vmul.f32 %v3247, %v462
    %v3261 = vmul.f32 %v2991, %v467
    %v3262 = vmul.f32 %v2993, %v467
    %v3263 = vmul.f32 %v3077, %v467
    %v3264 = vmul.f32 %v3079, %v467
    %v3265 = vmul.f32 %v3163, %v467
    %v3266 = vmul.f32 %v3165, %v467
    %v3267 = vmul.f32 %v3249, %v467
    %v3268 = vmul.f32 %v3251, %v467
    %v3269 = vadd.f32 %v3253, %v3261
    %v3270 = vrot.slane %v3269, 4
    %v3271 = vadd.f32 %v3269, %v3270
    %v3272 = vrot.slane %v3271, 2
    %v3273 = vadd.f32 %v3271, %v3272
    %v3274 = vrot.slane %v3273, 1
    %v3275 = vadd.f32 %v3273, %v3274
    %v3276 = vadd.f32 %v3254, %v3262
    %v3277 = vrot.slane %v3276, 4
    %v3278 = vadd.f32 %v3276, %v3277
    %v3279 = vrot.slane %v3278, 2
    %v3280 = vadd.f32 %v3278, %v3279
    %v3281 = vrot.slane %v3280, 1
    %v3282 = vadd.f32 %v3280, %v3281
    %v3283 = vadd.f32 %v3255, %v3263
    %v3284 = vrot.slane %v3283, 4
    %v3285 = vadd.f32 %v3283, %v3284
    %v3286 = vrot.slane %v3285, 2
    %v3287 = vadd.f32 %v3285, %v3286
    %v3288 = vrot.slane %v3287, 1
    %v3289 = vadd.f32 %v3287, %v3288
    %v3290 = vadd.f32 %v3256, %v3264
    %v3291 = vrot.slane %v3290, 4
    %v3292 = vadd.f32 %v3290, %v3291
    %v3293 = vrot.slane %v3292, 2
    %v3294 = vadd.f32 %v3292, %v3293
    %v3295 = vrot.slane %v3294, 1
    %v3296 = vadd.f32 %v3294, %v3295
    %v3297 = vadd.f32 %v3257, %v3265
    %v3298 = vrot.slane %v3297, 4
    %v3299 = vadd.f32 %v3297, %v3298
    %v3300 = vrot.slane %v3299, 2
    %v3301 = vadd.f32 %v3299, %v3300
    %v3302 = vrot.slane %v3301, 1
    %v3303 = vadd.f32 %v3301, %v3302
    %v3304 = vadd.f32 %v3258, %v3266
    %v3305 = vrot.slane %v3304, 4
    %v3306 = vadd.f32 %v3304, %v3305
    %v3307 = vrot.slane %v3306, 2
    %v3308 = vadd.f32 %v3306, %v3307
    %v3309 = vrot.slane %v3308, 1
    %v3310 = vadd.f32 %v3308, %v3309
    %v3311 = vadd.f32 %v3259, %v3267
    %v3312 = vrot.slane %v3311, 4
    %v3313 = vadd.f32 %v3311, %v3312
    %v3314 = vrot.slane %v3313, 2
    %v3315 = vadd.f32 %v3313, %v3314
    %v3316 = vrot.slane %v3315, 1
    %v3317 = vadd.f32 %v3315, %v3316
    %v3318 = vadd.f32 %v3260, %v3268
    %v3319 = vrot.slane %v3318, 4
    %v3320 = vadd.f32 %v3318, %v3319
    %v3321 = vrot.slane %v3320, 2
    %v3322 = vadd.f32 %v3320, %v3321
    %v3323 = vrot.slane %v3322, 1
    %v3324 = vadd.f32 %v3322, %v3323
    %v3325 = vmul.f32 %v3253, %v2987
    %v3326 = vmul.f32 %v3254, %v2989
    %v3327 = vmul.f32 %v3255, %v3073
    %v3328 = vmul.f32 %v3256, %v3075
    %v3329 = vmul.f32 %v3257, %v3159
    %v3330 = vmul.f32 %v3258, %v3161
    %v3331 = vmul.f32 %v3259, %v3245
    %v3332 = vmul.f32 %v3260, %v3247
    %v3333 = vmul.f32 %v3261, %v2991
    %v3334 = vmul.f32 %v3262, %v2993
    %v3335 = vmul.f32 %v3263, %v3077
    %v3336 = vmul.f32 %v3264, %v3079
    %v3337 = vmul.f32 %v3265, %v3163
    %v3338 = vmul.f32 %v3266, %v3165
    %v3339 = vmul.f32 %v3267, %v3249
    %v3340 = vmul.f32 %v3268, %v3251
    %v3341 = vadd.f32 %v3325, %v3333
    %v3342 = vrot.slane %v3341, 4
    %v3343 = vadd.f32 %v3341, %v3342
    %v3344 = vrot.slane %v3343, 2
    %v3345 = vadd.f32 %v3343, %v3344
    %v3346 = vrot.slane %v3345, 1
    %v3347 = vadd.f32 %v3345, %v3346
    %v3348 = vadd.f32 %v3326, %v3334
    %v3349 = vrot.slane %v3348, 4
    %v3350 = vadd.f32 %v3348, %v3349
    %v3351 = vrot.slane %v3350, 2
    %v3352 = vadd.f32 %v3350, %v3351
    %v3353 = vrot.slane %v3352, 1
    %v3354 = vadd.f32 %v3352, %v3353
    %v3355 = vadd.f32 %v3327, %v3335
    %v3356 = vrot.slane %v3355, 4
    %v3357 = vadd.f32 %v3355, %v3356
    %v3358 = vrot.slane %v3357, 2
    %v3359 = vadd.f32 %v3357, %v3358
    %v3360 = vrot.slane %v3359, 1
    %v3361 = vadd.f32 %v3359, %v3360
    %v3362 = vadd.f32 %v3328, %v3336
    %v3363 = vrot.slane %v3362, 4
    %v3364 = vadd.f32 %v3362, %v3363
    %v3365 = vrot.slane %v3364, 2
    %v3366 = vadd.f32 %v3364, %v3365
    %v3367 = vrot.slane %v3366, 1
    %v3368 = vadd.f32 %v3366, %v3367
    %v3369 = vadd.f32 %v3329, %v3337
    %v3370 = vrot.slane %v3369, 4
    %v3371 = vadd.f32 %v3369, %v3370
    %v3372 = vrot.slane %v3371, 2
    %v3373 = vadd.f32 %v3371, %v3372
    %v3374 = vrot.slane %v3373, 1
    %v3375 = vadd.f32 %v3373, %v3374
    %v3376 = vadd.f32 %v3330, %v3338
    %v3377 = vrot.slane %v3376, 4
    %v3378 = vadd.f32 %v3376, %v3377
    %v3379 = vrot.slane %v3378, 2
    %v3380 = vadd.f32 %v3378, %v3379
    %v3381 = vrot.slane %v3380, 1
    %v3382 = vadd.f32 %v3380, %v3381
    %v3383 = vadd.f32 %v3331, %v3339
    %v3384 = vrot.slane %v3383, 4
    %v3385 = vadd.f32 %v3383, %v3384
    %v3386 = vrot.slane %v3385, 2
    %v3387 = vadd.f32 %v3385, %v3386
    %v3388 = vrot.slane %v3387, 1
    %v3389 = vadd.f32 %v3387, %v3388
    %v3390 = vadd.f32 %v3332, %v3340
    %v3391 = vrot.slane %v3390, 4
    %v3392 = vadd.f32 %v3390, %v3391
    %v3393 = vrot.slane %v3392, 2
    %v3394 = vadd.f32 %v3392, %v3393
    %v3395 = vrot.slane %v3394, 1
    %v3396 = vadd.f32 %v3394, %v3395
    %v3397 = vmul.f32 %v3275, %v3275
    %v3398 = vmul.f32 %v3282, %v3282
    %v3399 = vmul.f32 %v3289, %v3289
    %v3400 = vmul.f32 %v3296, %v3296
    %v3401 = vmul.f32 %v3303, %v3303
    %v3402 = vmul.f32 %v3310, %v3310
    %v3403 = vmul.f32 %v3317, %v3317
    %v3404 = vmul.f32 %v3324, %v3324
    %v3405 = vsub.f32 %v3347, %v3397
    %v3406 = vsub.f32 %v3354, %v3398
    %v3407 = vsub.f32 %v3361, %v3399
    %v3408 = vsub.f32 %v3368, %v3400
    %v3409 = vsub.f32 %v3375, %v3401
    %v3410 = vsub.f32 %v3382, %v3402
    %v3411 = vsub.f32 %v3389, %v3403
    %v3412 = vsub.f32 %v3396, %v3404
    %v3413 = vld [vmem:[%s14] sm:$0xff]
    %v3414 = vadd.f32 %v3405, 1e-05
    %v3415 = vadd.f32 %v3406, 1e-05
    %v3416 = vadd.f32 %v3407, 1e-05
    %v3417 = vadd.f32 %v3408, 1e-05
    %v3418 = vadd.f32 %v3409, 1e-05
    %v3419 = vadd.f32 %v3410, 1e-05
    %v3420 = vadd.f32 %v3411, 1e-05
    %v3421 = vadd.f32 %v3412, 1e-05
    %v3422 = vrsqrt.pop %v3414
    %v3423 = vrsqrt.pop %v3415
    %v3424 = vrsqrt.pop %v3416
    %v3425 = vrsqrt.pop %v3417
    %v3426 = vrsqrt.pop %v3418
    %v3427 = vrsqrt.pop %v3419
    %v3428 = vrsqrt.pop %v3420
    %v3429 = vrsqrt.pop %v3421
    %v3438 = vcombine.low %v3422, %v3423
    %v3439 = vcombine.low %v3424, %v3425
    %v3440 = vcombine.low %v3426, %v3427
    %v3441 = vcombine.low %v3428, %v3429
    %v3443 = vunpack.c.l.s4 1966171168
    %v3444 = vunpack.c.0.s8 %v3443
    %v3445 = vlaneseq
    %v3446 = vshrl.u32 %v3445, 7
    %v3447 = vsub.s32 %v3444, %v3446
    %v3448 = vrot.slane %v3438, %v3447
    %v3450 = vunpack.c.l.s4 1966171168
    %v3451 = vunpack.c.0.s8 %v3450
    %v3452 = vlaneseq
    %v3453 = vshrl.u32 %v3452, 7
    %v3454 = vsub.s32 %v3451, %v3453
    %v3455 = vrot.slane %v3439, %v3454
    %v3457 = vunpack.c.l.s4 1966171168
    %v3458 = vunpack.c.0.s8 %v3457
    %v3459 = vlaneseq
    %v3460 = vshrl.u32 %v3459, 7
    %v3461 = vsub.s32 %v3458, %v3460
    %v3462 = vrot.slane %v3440, %v3461
    %v3464 = vunpack.c.l.s4 1966171168
    %v3465 = vunpack.c.0.s8 %v3464
    %v3466 = vlaneseq
    %v3467 = vshrl.u32 %v3466, 7
    %v3468 = vsub.s32 %v3465, %v3467
    %v3469 = vrot.slane %v3441, %v3468
    %v3470 = vcombine.low %v3448, %v3455
    %v3471 = vcombine.low %v3462, %v3469
    %v3473 = vunpack.c.l.s4 1966171168
    %v3474 = vunpack.c.0.s8 %v3473
    %v3475 = vlaneseq
    %v3476 = vshrl.u32 %v3475, 7
    %v3477 = vsub.s32 %v3474, %v3476
    %v3478 = vrot.slane %v3470, %v3477
    %v3480 = vunpack.c.l.s4 1966171168
    %v3481 = vunpack.c.0.s8 %v3480
    %v3482 = vlaneseq
    %v3483 = vshrl.u32 %v3482, 7
    %v3484 = vsub.s32 %v3481, %v3483
    %v3485 = vrot.slane %v3471, %v3484
    %v3486 = vcombine.low %v3478, %v3485
    %v3488 = vmul.f32 %v3413, %v3486
    %v3489 = vld [vmem:[%s15] sm:$0xff]
    %v3491 = vlaneseq
    %v3492 = vshrl.u32 %v3491, 7
    %v3493 = vsub.s32 0, %v3492
    %v3494 = vrot.slane %v3488, %v3493
    %v3495 = vlaneseq
    %v3496 = vshrl.u32 %v3495, 7
    %v3497 = vsub.s32 1, %v3496
    %v3498 = vrot.slane %v3488, %v3497
    %v3499 = vlaneseq
    %v3500 = vshrl.u32 %v3499, 7
    %v3501 = vsub.s32 2, %v3500
    %v3502 = vrot.slane %v3488, %v3501
    %v3503 = vlaneseq
    %v3504 = vshrl.u32 %v3503, 7
    %v3505 = vsub.s32 3, %v3504
    %v3506 = vrot.slane %v3488, %v3505
    %v3507 = vlaneseq
    %v3508 = vshrl.u32 %v3507, 7
    %v3509 = vsub.s32 4, %v3508
    %v3510 = vrot.slane %v3488, %v3509
    %v3511 = vlaneseq
    %v3512 = vshrl.u32 %v3511, 7
    %v3513 = vsub.s32 5, %v3512
    %v3514 = vrot.slane %v3488, %v3513
    %v3515 = vlaneseq
    %v3516 = vshrl.u32 %v3515, 7
    %v3517 = vsub.s32 6, %v3516
    %v3518 = vrot.slane %v3488, %v3517
    %v3519 = vlaneseq
    %v3520 = vshrl.u32 %v3519, 7
    %v3521 = vsub.s32 7, %v3520
    %v3522 = vrot.slane %v3488, %v3521
    %v3531 = vmul.f32 %v3275, %v3494
    %v3532 = vmul.f32 %v3282, %v3498
    %v3533 = vmul.f32 %v3289, %v3502
    %v3534 = vmul.f32 %v3296, %v3506
    %v3535 = vmul.f32 %v3303, %v3510
    %v3536 = vmul.f32 %v3310, %v3514
    %v3537 = vmul.f32 %v3317, %v3518
    %v3538 = vmul.f32 %v3324, %v3522
    %v3547 = vcombine.low %v3531, %v3532
    %v3548 = vcombine.low %v3533, %v3534
    %v3549 = vcombine.low %v3535, %v3536
    %v3550 = vcombine.low %v3537, %v3538
    %v3552 = vunpack.c.l.s4 1966171168
    %v3553 = vunpack.c.0.s8 %v3552
    %v3554 = vlaneseq
    %v3555 = vshrl.u32 %v3554, 7
    %v3556 = vsub.s32 %v3553, %v3555
    %v3557 = vrot.slane %v3547, %v3556
    %v3559 = vunpack.c.l.s4 1966171168
    %v3560 = vunpack.c.0.s8 %v3559
    %v3561 = vlaneseq
    %v3562 = vshrl.u32 %v3561, 7
    %v3563 = vsub.s32 %v3560, %v3562
    %v3564 = vrot.slane %v3548, %v3563
    %v3566 = vunpack.c.l.s4 1966171168
    %v3567 = vunpack.c.0.s8 %v3566
    %v3568 = vlaneseq
    %v3569 = vshrl.u32 %v3568, 7
    %v3570 = vsub.s32 %v3567, %v3569
    %v3571 = vrot.slane %v3549, %v3570
    %v3573 = vunpack.c.l.s4 1966171168
    %v3574 = vunpack.c.0.s8 %v3573
    %v3575 = vlaneseq
    %v3576 = vshrl.u32 %v3575, 7
    %v3577 = vsub.s32 %v3574, %v3576
    %v3578 = vrot.slane %v3550, %v3577
    %v3579 = vcombine.low %v3557, %v3564
    %v3580 = vcombine.low %v3571, %v3578
    %v3582 = vunpack.c.l.s4 1966171168
    %v3583 = vunpack.c.0.s8 %v3582
    %v3584 = vlaneseq
    %v3585 = vshrl.u32 %v3584, 7
    %v3586 = vsub.s32 %v3583, %v3585
    %v3587 = vrot.slane %v3579, %v3586
    %v3589 = vunpack.c.l.s4 1966171168
    %v3590 = vunpack.c.0.s8 %v3589
    %v3591 = vlaneseq
    %v3592 = vshrl.u32 %v3591, 7
    %v3593 = vsub.s32 %v3590, %v3592
    %v3594 = vrot.slane %v3580, %v3593
    %v3595 = vcombine.low %v3587, %v3594
    %v3597 = vsub.f32 %v3489, %v3595
    %v3598 = vmul.f32 %v2987, %v3494
    %v3599 = vmul.f32 %v2989, %v3498
    %v3600 = vmul.f32 %v3073, %v3502
    %v3601 = vmul.f32 %v3075, %v3506
    %v3602 = vmul.f32 %v3159, %v3510
    %v3603 = vmul.f32 %v3161, %v3514
    %v3604 = vmul.f32 %v3245, %v3518
    %v3605 = vmul.f32 %v3247, %v3522
    %v3606 = vmul.f32 %v2991, %v3494
    %v3607 = vmul.f32 %v2993, %v3498
    %v3608 = vmul.f32 %v3077, %v3502
    %v3609 = vmul.f32 %v3079, %v3506
    %v3610 = vmul.f32 %v3163, %v3510
    %v3611 = vmul.f32 %v3165, %v3514
    %v3612 = vmul.f32 %v3249, %v3518
    %v3613 = vmul.f32 %v3251, %v3522
    %v3615 = vlaneseq
    %v3616 = vshrl.u32 %v3615, 7
    %v3617 = vsub.s32 0, %v3616
    %v3618 = vrot.slane %v3597, %v3617
    %v3619 = vlaneseq
    %v3620 = vshrl.u32 %v3619, 7
    %v3621 = vsub.s32 1, %v3620
    %v3622 = vrot.slane %v3597, %v3621
    %v3623 = vlaneseq
    %v3624 = vshrl.u32 %v3623, 7
    %v3625 = vsub.s32 2, %v3624
    %v3626 = vrot.slane %v3597, %v3625
    %v3627 = vlaneseq
    %v3628 = vshrl.u32 %v3627, 7
    %v3629 = vsub.s32 3, %v3628
    %v3630 = vrot.slane %v3597, %v3629
    %v3631 = vlaneseq
    %v3632 = vshrl.u32 %v3631, 7
    %v3633 = vsub.s32 4, %v3632
    %v3634 = vrot.slane %v3597, %v3633
    %v3635 = vlaneseq
    %v3636 = vshrl.u32 %v3635, 7
    %v3637 = vsub.s32 5, %v3636
    %v3638 = vrot.slane %v3597, %v3637
    %v3639 = vlaneseq
    %v3640 = vshrl.u32 %v3639, 7
    %v3641 = vsub.s32 6, %v3640
    %v3642 = vrot.slane %v3597, %v3641
    %v3643 = vlaneseq
    %v3644 = vshrl.u32 %v3643, 7
    %v3645 = vsub.s32 7, %v3644
    %v3646 = vrot.slane %v3597, %v3645
    %v3655 = vadd.f32 %v3598, %v3618
    %v3656 = vadd.f32 %v3599, %v3622
    %v3657 = vadd.f32 %v3600, %v3626
    %v3658 = vadd.f32 %v3601, %v3630
    %v3659 = vadd.f32 %v3602, %v3634
    %v3660 = vadd.f32 %v3603, %v3638
    %v3661 = vadd.f32 %v3604, %v3642
    %v3662 = vadd.f32 %v3605, %v3646
    %v3663 = vadd.f32 %v3606, %v3618
    %v3664 = vadd.f32 %v3607, %v3622
    %v3665 = vadd.f32 %v3608, %v3626
    %v3666 = vadd.f32 %v3609, %v3630
    %v3667 = vadd.f32 %v3610, %v3634
    %v3668 = vadd.f32 %v3611, %v3638
    %v3669 = vadd.f32 %v3612, %v3642
    %v3670 = vadd.f32 %v3613, %v3646
    %vm3671 = vcmp.gt.f32.partialorder %v3655, 0.0
    %vm3672 = vcmp.gt.f32.partialorder %v3656, 0.0
    %vm3673 = vcmp.gt.f32.partialorder %v3657, 0.0
    %vm3674 = vcmp.gt.f32.partialorder %v3658, 0.0
    %vm3675 = vcmp.gt.f32.partialorder %v3659, 0.0
    %vm3676 = vcmp.gt.f32.partialorder %v3660, 0.0
    %vm3677 = vcmp.gt.f32.partialorder %v3661, 0.0
    %vm3678 = vcmp.gt.f32.partialorder %v3662, 0.0
    %vm3679 = vcmp.gt.f32.partialorder %v3663, 0.0
    %vm3680 = vcmp.gt.f32.partialorder %v3664, 0.0
    %vm3681 = vcmp.gt.f32.partialorder %v3665, 0.0
    %vm3682 = vcmp.gt.f32.partialorder %v3666, 0.0
    %vm3683 = vcmp.gt.f32.partialorder %v3667, 0.0
    %vm3684 = vcmp.gt.f32.partialorder %v3668, 0.0
    %vm3685 = vcmp.gt.f32.partialorder %v3669, 0.0
    %vm3686 = vcmp.gt.f32.partialorder %v3670, 0.0
    %v3687 = vmul.f32 %v3655, 0.2
    %v3688 = vmul.f32 %v3656, 0.2
    %v3689 = vmul.f32 %v3657, 0.2
    %v3690 = vmul.f32 %v3658, 0.2
    %v3691 = vmul.f32 %v3659, 0.2
    %v3692 = vmul.f32 %v3660, 0.2
    %v3693 = vmul.f32 %v3661, 0.2
    %v3694 = vmul.f32 %v3662, 0.2
    %v3695 = vmul.f32 %v3663, 0.2
    %v3696 = vmul.f32 %v3664, 0.2
    %v3697 = vmul.f32 %v3665, 0.2
    %v3698 = vmul.f32 %v3666, 0.2
    %v3699 = vmul.f32 %v3667, 0.2
    %v3700 = vmul.f32 %v3668, 0.2
    %v3701 = vmul.f32 %v3669, 0.2
    %v3702 = vmul.f32 %v3670, 0.2
    %v3703 = vsel %vm3671, %v3655, %v3687
    %v3704 = vsel %vm3672, %v3656, %v3688
    %v3705 = vsel %vm3673, %v3657, %v3689
    %v3706 = vsel %vm3674, %v3658, %v3690
    %v3707 = vsel %vm3675, %v3659, %v3691
    %v3708 = vsel %vm3676, %v3660, %v3692
    %v3709 = vsel %vm3677, %v3661, %v3693
    %v3710 = vsel %vm3678, %v3662, %v3694
    %v3711 = vsel %vm3679, %v3663, %v3695
    %v3712 = vsel %vm3680, %v3664, %v3696
    %v3713 = vsel %vm3681, %v3665, %v3697
    %v3714 = vsel %vm3682, %v3666, %v3698
    %v3715 = vsel %vm3683, %v3667, %v3699
    %v3716 = vsel %vm3684, %v3668, %v3700
    %v3717 = vsel %vm3685, %v3669, %v3701
    %v3718 = vsel %vm3686, %v3670, %v3702
    %v3719 = vpack.c.bf16 %v3711, %v3703
    %v3720 = vpack.c.bf16 %v3712, %v3704
    %v3721 = vpack.c.bf16 %v3713, %v3705
    %v3722 = vpack.c.bf16 %v3714, %v3706
    %v3723 = vpack.c.bf16 %v3715, %v3707
    %v3724 = vpack.c.bf16 %v3716, %v3708
    %v3725 = vpack.c.bf16 %v3717, %v3709
    %v3726 = vpack.c.bf16 %v3718, %v3710
    %v3735 = vunpack.c.l.b16 %v3719
    %v3736 = vunpack.c.l.b16 %v3720
    %v3737 = vunpack.c.l.b16 %v3721
    %v3738 = vunpack.c.l.b16 %v3722
    %v3739 = vunpack.c.l.b16 %v3723
    %v3740 = vunpack.c.l.b16 %v3724
    %v3741 = vunpack.c.l.b16 %v3725
    %v3742 = vunpack.c.l.b16 %v3726
    %v3743 = vunpack.c.h.b16 %v3719
    %v3744 = vunpack.c.h.b16 %v3720
    %v3745 = vunpack.c.h.b16 %v3721
    %v3746 = vunpack.c.h.b16 %v3722
    %v3747 = vunpack.c.h.b16 %v3723
    %v3748 = vunpack.c.h.b16 %v3724
    %v3749 = vunpack.c.h.b16 %v3725
    %v3750 = vunpack.c.h.b16 %v3726
    %v3751 = vpack.c.b16 %v3736, %v3735
    %v3752 = vpack.c.b16 %v3738, %v3737
    %v3753 = vpack.c.b16 %v3740, %v3739
    %v3754 = vpack.c.b16 %v3742, %v3741
    %v3755 = vpack.c.b16 %v3744, %v3743
    %v3756 = vpack.c.b16 %v3746, %v3745
    %v3757 = vpack.c.b16 %v3748, %v3747
    %v3758 = vpack.c.b16 %v3750, %v3749
    %3767 = vst [vmem:[#allocation19] sm:$0xff] %v3751
    %3768 = vst [vmem:[#allocation19 + $0x8] sm:$0xff] %v3752
    %3769 = vst [vmem:[#allocation19 + $0x10] sm:$0xff] %v3753
    %3770 = vst [vmem:[#allocation19 + $0x18] sm:$0xff] %v3754
    %3771 = vst [vmem:[#allocation19 + $0x20] sm:$0xff] %v3755
    %3772 = vst [vmem:[#allocation19 + $0x28] sm:$0xff] %v3756
    %3773 = vst [vmem:[#allocation19 + $0x30] sm:$0xff] %v3757
    %3774 = vst [vmem:[#allocation19 + $0x38] sm:$0xff] %v3758
    // Predicated region
    $region106: #{tpu_custom_call.1} parent=1 // pred_check
      _
    $region107: #{tpu_custom_call.1} parent=1 // pred_check_branch
      %3776 = sbr.rel (0) target = $region109
    $region108: #{tpu_custom_call.1} parent=1 // pred_region
      %s3778 = ssub.s32 1024, 1024
      %3779 = vsyncadd [#allocation4], %s3778
      %s3780 = sshll.u32 [#allocation19], 4
      %s3781 = int_to_ptr.vmem [resolvable:$true] %s3780
      %3786 = dma.vmem_to_hbm [thread:$0]  %s3781, 1024, %s16, [#allocation4], 512, 512, 32
    $region109: #{tpu_custom_call.1} parent=1 // pred_fallthru
      _
    // Predicated region
    $region110: #{tpu_custom_call.1} parent=1 // pred_check
      _
    $region111: #{tpu_custom_call.1} parent=1 // pred_check_branch
      %3788 = sbr.rel (0) target = $region113
    $region112: #{tpu_custom_call.1} parent=1 // pred_region
      %3789 = dma.done [#allocation4], 1024
    $region113: #{tpu_custom_call.1} parent=1 // pred_fallthru
      _
    %3790 = vsyncpa [#allocation3], 1
    %3791 = vsyncpa [#allocation6], 1
    %3792 = vsyncpa [#allocation9], 1
    %3793 = vsyncpa [#allocation12], 1
    %3794 = vsyncpa [#allocation15], 1
    %3795 = vsyncpa [#allocation18], 1
    %3796 = vsyncpa [#allocation4], 1

</llo_original>
